<compile_context>
chip_gen: v7x
topology: tpu7x:2x2x1
jax: 0.10.0
libtpu: 0.0.40
codegen_flags: <defaults>
</compile_context>

<pallas_src>
import functools

import jax
import jax.numpy as jnp
from jax import lax
from jax.experimental import pallas as pl
from jax.experimental.pallas import tpu as pltpu

# ---- configuration (matches TransLayer(dim=DIM) with NystromAttention defaults) ----
DIM = 128                    # model dim; kept small for the test
HEADS = 8
DIM_HEAD = DIM // 8          # 16
INNER = HEADS * DIM_HEAD     # 128
NUM_LANDMARKS = DIM // 2     # 64
PINV_ITERS = 6
CONV_K = 33                  # residual_conv_kernel default (depthwise, bias=False)
LN_EPS = 1e-5
SCALE = DIM_HEAD ** -0.5

BATCH = 2
SEQ = 256                    # multiple of NUM_LANDMARKS => no front padding needed


# ---------------------------------------------------------------------------
# small in-kernel helpers (traced inside kernel bodies)
# ---------------------------------------------------------------------------
def _layernorm(x, g, b, eps):
    mu = jnp.mean(x, axis=-1, keepdims=True)
    var = jnp.mean((x - mu) ** 2, axis=-1, keepdims=True)
    return (x - mu) * lax.rsqrt(var + eps) * g + b


def _bf16_dot(a, b):
    # MXU matmul with bf16 operands, f32 accumulation
    return jnp.dot(a.astype(jnp.bfloat16), b.astype(jnp.bfloat16),
                   preferred_element_type=jnp.float32)


def _dot_t_f32(a, b):
    # a @ b.T in f32 (small, precision-sensitive)
    return lax.dot_general(a, b, (((1,), (1,)), ((), ())),
                           preferred_element_type=jnp.float32)


def _dot_t_bf16(a, b):
    # a @ b.T with bf16 operands, f32 accumulation
    return lax.dot_general(a.astype(jnp.bfloat16), b.astype(jnp.bfloat16),
                           (((1,), (1,)), ((), ())),
                           preferred_element_type=jnp.float32)


def _bmm_f32(a, b):
    # batched (leading dim) matmul in f32: (H, i, j) @ (H, j, k) -> (H, i, k)
    return lax.dot_general(a, b, (((2,), (1,)), ((0,), (0,))),
                           preferred_element_type=jnp.float32)


def _softmax_last(s, approx=False):
    s = s - jnp.max(s, axis=-1, keepdims=True)
    e = jnp.exp(s)
    d = jnp.sum(e, axis=-1, keepdims=True)
    if approx:
        return e * pl.reciprocal(d, approx=True)   # EUP slot, otherwise idle
    return e / d


def _pool_matrix(m, n, l):
    # (m, n) mean-pool matrix over groups of l consecutive rows; built once per
    # grid step on the VPU, applied to the lane-dense (n, 128) q/k (N=128 output
    # lanes on the MXU).
    row_ids = lax.broadcasted_iota(jnp.int32, (m, n), 0)
    col_ids = lax.broadcasted_iota(jnp.int32, (m, n), 1)
    in_group = (col_ids >= row_ids * l) & (col_ids < (row_ids + 1) * l)
    return jnp.where(in_group, 1.0 / l, 0.0).astype(jnp.float32)


def _ln_qk(xn, w, inner, scale):
    qk = _bf16_dot(xn, w)                  # (n, width)
    q = qk[:, :inner] * scale
    k = qk[:, inner:2 * inner]
    return q, k, qk


# ---------------------------------------------------------------------------
# kernel 1: per-batch LN + QK projection + landmark pooling + attn2 softmax
#           (attn2 is cached to HBM so pass 2 never recomputes it; the global
#            pinv-scaling denominator is reduced from it in the wrapper)
# ---------------------------------------------------------------------------
def _attn2_kernel(x_ref, g_ref, b_ref, wqk_ref, attn2_ref,
                  *, heads, dim_head, inner, m, l, scale, eps):
    x = x_ref[0]                                           # (n, D)
    n = x.shape[0]
    xn = _layernorm(x, g_ref[...], b_ref[...], eps)
    q, k, _ = _ln_qk(xn, wqk_ref[...], inner, scale)       # lane-dense (n, 128)

    pool = _pool_matrix(m, n, l)
    q_land = jnp.dot(pool, q, preferred_element_type=jnp.float32)   # (m, 128)
    k_land = jnp.dot(pool, k, preferred_element_type=jnp.float32)   # (m, 128)

    a2 = []
    for h in range(heads):
        sl = slice(h * dim_head, (h + 1) * dim_head)
        a2.append(_softmax_last(_dot_t_f32(q_land[:, sl], k_land[:, sl])))
    attn2_ref[0] = jnp.stack(a2, axis=0)                   # (H, m, m) f32


# ---------------------------------------------------------------------------
# kernel 2: fused LN+QKV -> Nystrom attention (head-batched pinv) -> depthwise
#           conv residual (shifted VPU FMAs) -> out-projection + residual
# ---------------------------------------------------------------------------
def _main_kernel(denom_ref, x_ref, g_ref, b_ref, wqkv_ref, attn2_ref, convw_ref,
                 wout_ref, bout_ref, y_ref,
                 *, heads, dim_head, inner, m, l, scale, eps, iters, conv_k):
    x = x_ref[0]                                           # (n, D) f32
    n = x.shape[0]

    # --- prologue: LayerNorm + QKV (q pre-scaled), lane-dense (n, 128) ---
    xn = _layernorm(x, g_ref[...], b_ref[...], eps)
    q, k, qkv = _ln_qk(xn, wqkv_ref[...], inner, scale)
    v = qkv[:, 2 * inner:]

    pool = _pool_matrix(m, n, l)
    q_land = jnp.dot(pool, q, preferred_element_type=jnp.float32)   # (m, 128)
    k_land = jnp.dot(pool, k, preferred_element_type=jnp.float32)   # (m, 128)

    # --- Moore-Penrose pinv of cached attn2, batched over heads (8 independent
    #     chains interleaved in every matmul push; f32 throughout) ---
    attn2 = attn2_ref[0]                                   # (H, m, m) f32
    denom = denom_ref[0, 0]
    z = jnp.stack([attn2[h].T for h in range(heads)], axis=0) / denom   # (H, m, m)
    ri = lax.broadcasted_iota(jnp.int32, (m, m), 0)
    ci = lax.broadcasted_iota(jnp.int32, (m, m), 1)
    eye = (ri == ci).astype(jnp.float32)[None]             # (1, m, m), bcast over H
    for _ in range(iters):
        xz = _bmm_f32(attn2, z)
        t = 7.0 * eye - xz
        t = 15.0 * eye - _bmm_f32(xz, t)
        t = 13.0 * eye - _bmm_f32(xz, t)
        z = 0.25 * _bmm_f32(z, t)

    # --- per-head Nystrom combine; results concatenated back to lane-dense ---
    head_outs = []
    for h in range(heads):
        sl = slice(h * dim_head, (h + 1) * dim_head)
        qh, kh, vh = q[:, sl], k[:, sl], v[:, sl]
        qlh, klh = q_land[:, sl], k_land[:, sl]
        attn1 = _softmax_last(_dot_t_bf16(qh, klh), approx=True)   # (n, m)
        attn3 = _softmax_last(_dot_t_bf16(qlh, kh), approx=True)   # (m, n)
        tmp = _bf16_dot(attn3, vh)                                 # (m, dh)
        a1z = _bf16_dot(attn1, z[h])                               # (n, m)
        head_outs.append(_bf16_dot(a1z, tmp))                      # (n, dh)
    out = jnp.concatenate(head_outs, axis=-1)                      # (n, 128)

    # --- depthwise residual conv along seq: 33 shifted VPU FMAs on lane-dense v,
    #     per-head weights pre-expanded to lanes (no (Np,Np) conv matrix) ---
    p = conv_k // 2
    zpad = jnp.zeros((p, inner), jnp.float32)
    vpad = jnp.concatenate([zpad, v, zpad], axis=0)                # (n + 2p, 128)
    cw = convw_ref[...]                                            # (conv_k, 128)
    conv = cw[0:1, :] * vpad[0:n, :]
    for t in range(1, conv_k):
        conv = conv + cw[t:t + 1, :] * vpad[t:t + n, :]
    out = out + conv

    # --- epilogue: output projection + residual with the original x ---
    y = _bf16_dot(out, wout_ref[...]) + bout_ref[...] + x
    y_ref[0] = y.astype(y_ref.dtype)


# ---------------------------------------------------------------------------
# wrapper
# ---------------------------------------------------------------------------
def trans_layer_forward(x, params):
    B, n, D = x.shape
    H, Dh, I, m = HEADS, DIM_HEAD, INNER, NUM_LANDMARKS
    # TODO(synk): front zero-padding path for n % NUM_LANDMARKS != 0 is not wired
    # into the fused kernels (not needed at these shapes).
    assert n % m == 0, "seq must be a multiple of num_landmarks"
    l = n // m
    f32 = jnp.float32
    par = pltpu.CompilerParams(dimension_semantics=("parallel",))

    # --- pass 1: cached attn2 per (batch, head) ---
    w_qk = params["w_qkv"][:, :2 * I]                      # only q/k needed here
    attn2 = pl.pallas_call(
        functools.partial(_attn2_kernel, heads=H, dim_head=Dh, inner=I,
                          m=m, l=l, scale=SCALE, eps=LN_EPS),
        out_shape=jax.ShapeDtypeStruct((B, H, m, m), f32),
        grid=(B,),
        in_specs=[
            pl.BlockSpec((1, n, D), lambda b: (b, 0, 0)),
            pl.BlockSpec((1, D), lambda b: (0, 0)),
            pl.BlockSpec((1, D), lambda b: (0, 0)),
            pl.BlockSpec((D, 2 * I), lambda b: (0, 0)),
        ],
        out_specs=pl.BlockSpec((1, H, m, m), lambda b: (b, 0, 0, 0)),
        compiler_params=par,
    )(x, params["ln_gamma"], params["ln_beta"], w_qk)

    # global pinv scaling: torch.max over batch & heads of abs row/col sums
    absa = jnp.abs(attn2)
    denom = jnp.max(jnp.sum(absa, axis=-1)) * jnp.max(jnp.sum(absa, axis=-2))
    denom = denom.reshape(1, 1).astype(f32)

    # lane-expanded depthwise conv weights: (CONV_K, 128), column h*Dh+d <- conv_w[h, t]
    conv_lane = jnp.repeat(params["conv_w"].T, Dh, axis=1).astype(f32)

    # --- pass 2: fused LN+QKV + Nystrom + conv residual + out-proj + residual ---
    y = pl.pallas_call(
        functools.partial(_main_kernel, heads=H, dim_head=Dh, inner=I, m=m, l=l,
                          scale=SCALE, eps=LN_EPS, iters=PINV_ITERS, conv_k=CONV_K),
        out_shape=jax.ShapeDtypeStruct((B, n, D), f32),
        grid=(B,),
        in_specs=[
            pl.BlockSpec(memory_space=pltpu.MemorySpace.SMEM),   # denom scalar (1,1)
            pl.BlockSpec((1, n, D), lambda b: (b, 0, 0)),        # x
            pl.BlockSpec((1, D), lambda b: (0, 0)),              # ln gamma
            pl.BlockSpec((1, D), lambda b: (0, 0)),              # ln beta
            pl.BlockSpec((D, 3 * I), lambda b: (0, 0)),          # w_qkv
            pl.BlockSpec((1, H, m, m), lambda b: (b, 0, 0, 0)),  # cached attn2
            pl.BlockSpec((CONV_K, I), lambda b: (0, 0)),         # lane-expanded conv w
            pl.BlockSpec((I, D), lambda b: (0, 0)),              # w_out
            pl.BlockSpec((1, D), lambda b: (0, 0)),              # b_out
        ],
        out_specs=pl.BlockSpec((1, n, D), lambda b: (b, 0, 0)),
        compiler_params=par,
    )(denom, x, params["ln_gamma"], params["ln_beta"], params["w_qkv"],
      attn2, conv_lane, params["w_out"], params["b_out"])
    return y


# ---------------------------------------------------------------------------
if __name__ == "__main__":
    key = jax.random.PRNGKey(0)
    kx, kg, kb, kq, ko, kbo, kc = jax.random.split(key, 7)

    x = jax.random.normal(kx, (BATCH, SEQ, DIM), dtype=jnp.float32)

    params = {
        "ln_gamma": 1.0 + 0.1 * jax.random.normal(kg, (1, DIM), dtype=jnp.float32),
        "ln_beta": 0.1 * jax.random.normal(kb, (1, DIM), dtype=jnp.float32),
        "w_qkv": jax.random.normal(kq, (DIM, 3 * INNER), dtype=jnp.float32) * (DIM ** -0.5),
        "w_out": jax.random.normal(ko, (INNER, DIM), dtype=jnp.float32) * (INNER ** -0.5),
        "b_out": 0.01 * jax.random.normal(kbo, (1, DIM), dtype=jnp.float32),
        "conv_w": 0.1 * jax.random.normal(kc, (HEADS, CONV_K), dtype=jnp.float32),
    }
    # TODO(synk): Dropout layers (attn dropout / to_out dropout) are identity in
    # eval mode and therefore omitted.

    out = trans_layer_forward(x, params)
    out = jax.block_until_ready(out)
    assert out.shape == (BATCH, SEQ, DIM)
    assert bool(jnp.all(jnp.isfinite(out)))
    print("KERNEL_OK")
</pallas_src>

<mosaic_0001>
module attributes {stable_mosaic.version = 11 : i64} {
  func.func @_attn2_kernel(%arg0: i32, %arg1: memref<1x256x128xf32, #tpu.memory_space<vmem>>, %arg2: memref<1x128xf32, #tpu.memory_space<vmem>>, %arg3: memref<1x128xf32, #tpu.memory_space<vmem>>, %arg4: memref<128x256xf32, #tpu.memory_space<vmem>>, %arg5: memref<1x8x64x64xf32, #tpu.memory_space<vmem>>) attributes {dimension_semantics = [#tpu.dimension_semantics<parallel>], iteration_bounds = array<i64: 2>, scalar_prefetch = 0 : i64, scratch_operands = 0 : i64, tpu.core_type = #tpu.core_type<tc>, window_params = [{transform_indices = @transform_0, window_bounds = array<i64: 1, 256, 128>}, {pipeline_mode = #tpu.pipeline_mode<synchronous>, transform_indices = @transform_1, window_bounds = array<i64: 1, 128>}, {pipeline_mode = #tpu.pipeline_mode<synchronous>, transform_indices = @transform_2, window_bounds = array<i64: 1, 128>}, {pipeline_mode = #tpu.pipeline_mode<synchronous>, transform_indices = @transform_3, window_bounds = array<i64: 128, 256>}, {transform_indices = @transform_4, window_bounds = array<i64: 1, 8, 64, 64>}]} {
    %c0 = arith.constant 0 : index
    %c0_0 = arith.constant 0 : index
    %c0_1 = arith.constant 0 : index
    %0 = vector.load %arg1[%c0, %c0_0, %c0_1] : memref<1x256x128xf32, #tpu.memory_space<vmem>>, vector<1x256x128xf32>
    %1 = vector.shape_cast %0 : vector<1x256x128xf32> to vector<256x128xf32>
    %c0_2 = arith.constant 0 : index
    %c0_3 = arith.constant 0 : index
    %2 = vector.load %arg2[%c0_2, %c0_3] : memref<1x128xf32, #tpu.memory_space<vmem>>, vector<1x128xf32>
    %c0_4 = arith.constant 0 : index
    %c0_5 = arith.constant 0 : index
    %3 = vector.load %arg3[%c0_4, %c0_5] : memref<1x128xf32, #tpu.memory_space<vmem>>, vector<1x128xf32>
    %cst = arith.constant dense<0.000000e+00> : vector<256xf32>
    %4 = vector.multi_reduction <add>, %1, %cst [1] : vector<256x128xf32> to vector<256xf32>
    %5 = vector.shape_cast %4 : vector<256xf32> to vector<256x1xf32>
    %cst_6 = arith.constant 1.280000e+02 : f32
    %6 = vector.broadcast %cst_6 : f32 to vector<256x1xf32>
    %7 = arith.divf %5, %6 : vector<256x1xf32>
    %8 = vector.broadcast %7 : vector<256x1xf32> to vector<256x128xf32>
    %9 = arith.subf %1, %8 : vector<256x128xf32>
    %10 = arith.mulf %9, %9 : vector<256x128xf32>
    %cst_7 = arith.constant dense<0.000000e+00> : vector<256xf32>
    %11 = vector.multi_reduction <add>, %10, %cst_7 [1] : vector<256x128xf32> to vector<256xf32>
    %12 = vector.shape_cast %11 : vector<256xf32> to vector<256x1xf32>
    %cst_8 = arith.constant 1.280000e+02 : f32
    %13 = vector.broadcast %cst_8 : f32 to vector<256x1xf32>
    %14 = arith.divf %12, %13 : vector<256x1xf32>
    %15 = vector.broadcast %7 : vector<256x1xf32> to vector<256x128xf32>
    %16 = arith.subf %1, %15 : vector<256x128xf32>
    %cst_9 = arith.constant 9.99999974E-6 : f32
    %17 = vector.broadcast %cst_9 : f32 to vector<256x1xf32>
    %18 = arith.addf %14, %17 : vector<256x1xf32>
    %19 = math.rsqrt %18 : vector<256x1xf32>
    %20 = vector.broadcast %19 : vector<256x1xf32> to vector<256x128xf32>
    %21 = arith.mulf %16, %20 : vector<256x128xf32>
    %22 = vector.broadcast %2 : vector<1x128xf32> to vector<256x128xf32>
    %23 = arith.mulf %21, %22 : vector<256x128xf32>
    %24 = vector.broadcast %3 : vector<1x128xf32> to vector<256x128xf32>
    %25 = arith.addf %23, %24 : vector<256x128xf32>
    %c0_10 = arith.constant 0 : index
    %c0_11 = arith.constant 0 : index
    %26 = vector.load %arg4[%c0_10, %c0_11] : memref<128x256xf32, #tpu.memory_space<vmem>>, vector<128x256xf32>
    %27 = arith.truncf %25 : vector<256x128xf32> to vector<256x128xbf16>
    %28 = arith.truncf %26 : vector<128x256xf32> to vector<128x256xbf16>
    %cst_12 = arith.constant dense<0.000000e+00> : vector<256x256xf32>
    %29 = tpu.matmul %27, %28, %cst_12 {dimension_numbers = #tpu.dot_dimension_numbers<[1], [0], [0], [1], [0, 0, 1, 1], [], []>} : vector<256x128xbf16>, vector<128x256xbf16>, vector<256x256xf32> -> vector<256x256xf32>
    %30 = vector.extract_strided_slice %29 {offsets = [0, 0], sizes = [256, 128], strides = [1, 1]} : vector<256x256xf32> to vector<256x128xf32>
    %cst_13 = arith.constant 2.500000e-01 : f32
    %31 = vector.broadcast %cst_13 : f32 to vector<256x128xf32>
    %32 = arith.mulf %30, %31 : vector<256x128xf32>
    %33 = vector.extract_strided_slice %29 {offsets = [0, 128], sizes = [256, 128], strides = [1, 1]} : vector<256x256xf32> to vector<256x128xf32>
    %34 = tpu.iota {dimensions = array<i32: 0>} : vector<64x256xi32>
    %35 = tpu.iota {dimensions = array<i32: 1>} : vector<64x256xi32>
    %c4_i32 = arith.constant 4 : i32
    %36 = vector.broadcast %c4_i32 : i32 to vector<64x256xi32>
    %37 = arith.muli %34, %36 : vector<64x256xi32>
    %38 = arith.cmpi sge, %35, %37 : vector<64x256xi32>
    %c1_i32 = arith.constant 1 : i32
    %39 = vector.broadcast %c1_i32 : i32 to vector<64x256xi32>
    %40 = arith.addi %34, %39 : vector<64x256xi32>
    %c4_i32_14 = arith.constant 4 : i32
    %41 = vector.broadcast %c4_i32_14 : i32 to vector<64x256xi32>
    %42 = arith.muli %40, %41 : vector<64x256xi32>
    %43 = arith.cmpi slt, %35, %42 : vector<64x256xi32>
    %44 = arith.andi %38, %43 : vector<64x256xi1>
    %cst_15 = arith.constant 2.500000e-01 : f32
    %cst_16 = arith.constant 0.000000e+00 : f32
    %45 = vector.broadcast %cst_15 : f32 to vector<64x256xf32>
    %46 = vector.broadcast %cst_16 : f32 to vector<64x256xf32>
    %47 = arith.select %44, %45, %46 : vector<64x256xi1>, vector<64x256xf32>
    %cst_17 = arith.constant dense<0.000000e+00> : vector<64x128xf32>
    %48 = tpu.matmul %47, %32, %cst_17 {dimension_numbers = #tpu.dot_dimension_numbers<[1], [0], [0], [1], [0, 0, 1, 1], [], []>} : vector<64x256xf32>, vector<256x128xf32>, vector<64x128xf32> -> vector<64x128xf32>
    %cst_18 = arith.constant dense<0.000000e+00> : vector<64x128xf32>
    %49 = tpu.matmul %47, %33, %cst_18 {dimension_numbers = #tpu.dot_dimension_numbers<[1], [0], [0], [1], [0, 0, 1, 1], [], []>} : vector<64x256xf32>, vector<256x128xf32>, vector<64x128xf32> -> vector<64x128xf32>
    %50 = vector.extract_strided_slice %48 {offsets = [0, 0], sizes = [64, 16], strides = [1, 1]} : vector<64x128xf32> to vector<64x16xf32>
    %51 = vector.extract_strided_slice %49 {offsets = [0, 0], sizes = [64, 16], strides = [1, 1]} : vector<64x128xf32> to vector<64x16xf32>
    %cst_19 = arith.constant dense<0.000000e+00> : vector<64x64xf32>
    %52 = tpu.matmul %50, %51, %cst_19 {dimension_numbers = #tpu.dot_dimension_numbers<[1], [1], [0], [0], [0, 0, 1, 0], [], []>} : vector<64x16xf32>, vector<64x16xf32>, vector<64x64xf32> -> vector<64x64xf32>
    %cst_20 = arith.constant dense<0xFF800000> : vector<64xf32>
    %53 = vector.multi_reduction <maximumf>, %52, %cst_20 [1] : vector<64x64xf32> to vector<64xf32>
    %54 = vector.shape_cast %53 : vector<64xf32> to vector<64x1xf32>
    %55 = vector.broadcast %54 : vector<64x1xf32> to vector<64x64xf32>
    %56 = arith.subf %52, %55 : vector<64x64xf32>
    %57 = math.exp %56 : vector<64x64xf32>
    %cst_21 = arith.constant dense<0.000000e+00> : vector<64xf32>
    %58 = vector.multi_reduction <add>, %57, %cst_21 [1] : vector<64x64xf32> to vector<64xf32>
    %59 = vector.shape_cast %58 : vector<64xf32> to vector<64x1xf32>
    %60 = vector.broadcast %59 : vector<64x1xf32> to vector<64x64xf32>
    %61 = arith.divf %57, %60 : vector<64x64xf32>
    %62 = vector.extract_strided_slice %48 {offsets = [0, 16], sizes = [64, 16], strides = [1, 1]} : vector<64x128xf32> to vector<64x16xf32>
    %63 = vector.extract_strided_slice %49 {offsets = [0, 16], sizes = [64, 16], strides = [1, 1]} : vector<64x128xf32> to vector<64x16xf32>
    %cst_22 = arith.constant dense<0.000000e+00> : vector<64x64xf32>
    %64 = tpu.matmul %62, %63, %cst_22 {dimension_numbers = #tpu.dot_dimension_numbers<[1], [1], [0], [0], [0, 0, 1, 0], [], []>} : vector<64x16xf32>, vector<64x16xf32>, vector<64x64xf32> -> vector<64x64xf32>
    %cst_23 = arith.constant dense<0xFF800000> : vector<64xf32>
    %65 = vector.multi_reduction <maximumf>, %64, %cst_23 [1] : vector<64x64xf32> to vector<64xf32>
    %66 = vector.shape_cast %65 : vector<64xf32> to vector<64x1xf32>
    %67 = vector.broadcast %66 : vector<64x1xf32> to vector<64x64xf32>
    %68 = arith.subf %64, %67 : vector<64x64xf32>
    %69 = math.exp %68 : vector<64x64xf32>
    %cst_24 = arith.constant dense<0.000000e+00> : vector<64xf32>
    %70 = vector.multi_reduction <add>, %69, %cst_24 [1] : vector<64x64xf32> to vector<64xf32>
    %71 = vector.shape_cast %70 : vector<64xf32> to vector<64x1xf32>
    %72 = vector.broadcast %71 : vector<64x1xf32> to vector<64x64xf32>
    %73 = arith.divf %69, %72 : vector<64x64xf32>
    %74 = vector.extract_strided_slice %48 {offsets = [0, 32], sizes = [64, 16], strides = [1, 1]} : vector<64x128xf32> to vector<64x16xf32>
    %75 = vector.extract_strided_slice %49 {offsets = [0, 32], sizes = [64, 16], strides = [1, 1]} : vector<64x128xf32> to vector<64x16xf32>
    %cst_25 = arith.constant dense<0.000000e+00> : vector<64x64xf32>
    %76 = tpu.matmul %74, %75, %cst_25 {dimension_numbers = #tpu.dot_dimension_numbers<[1], [1], [0], [0], [0, 0, 1, 0], [], []>} : vector<64x16xf32>, vector<64x16xf32>, vector<64x64xf32> -> vector<64x64xf32>
    %cst_26 = arith.constant dense<0xFF800000> : vector<64xf32>
    %77 = vector.multi_reduction <maximumf>, %76, %cst_26 [1] : vector<64x64xf32> to vector<64xf32>
    %78 = vector.shape_cast %77 : vector<64xf32> to vector<64x1xf32>
    %79 = vector.broadcast %78 : vector<64x1xf32> to vector<64x64xf32>
    %80 = arith.subf %76, %79 : vector<64x64xf32>
    %81 = math.exp %80 : vector<64x64xf32>
    %cst_27 = arith.constant dense<0.000000e+00> : vector<64xf32>
    %82 = vector.multi_reduction <add>, %81, %cst_27 [1] : vector<64x64xf32> to vector<64xf32>
    %83 = vector.shape_cast %82 : vector<64xf32> to vector<64x1xf32>
    %84 = vector.broadcast %83 : vector<64x1xf32> to vector<64x64xf32>
    %85 = arith.divf %81, %84 : vector<64x64xf32>
    %86 = vector.extract_strided_slice %48 {offsets = [0, 48], sizes = [64, 16], strides = [1, 1]} : vector<64x128xf32> to vector<64x16xf32>
    %87 = vector.extract_strided_slice %49 {offsets = [0, 48], sizes = [64, 16], strides = [1, 1]} : vector<64x128xf32> to vector<64x16xf32>
    %cst_28 = arith.constant dense<0.000000e+00> : vector<64x64xf32>
    %88 = tpu.matmul %86, %87, %cst_28 {dimension_numbers = #tpu.dot_dimension_numbers<[1], [1], [0], [0], [0, 0, 1, 0], [], []>} : vector<64x16xf32>, vector<64x16xf32>, vector<64x64xf32> -> vector<64x64xf32>
    %cst_29 = arith.constant dense<0xFF800000> : vector<64xf32>
    %89 = vector.multi_reduction <maximumf>, %88, %cst_29 [1] : vector<64x64xf32> to vector<64xf32>
    %90 = vector.shape_cast %89 : vector<64xf32> to vector<64x1xf32>
    %91 = vector.broadcast %90 : vector<64x1xf32> to vector<64x64xf32>
    %92 = arith.subf %88, %91 : vector<64x64xf32>
    %93 = math.exp %92 : vector<64x64xf32>
    %cst_30 = arith.constant dense<0.000000e+00> : vector<64xf32>
    %94 = vector.multi_reduction <add>, %93, %cst_30 [1] : vector<64x64xf32> to vector<64xf32>
    %95 = vector.shape_cast %94 : vector<64xf32> to vector<64x1xf32>
    %96 = vector.broadcast %95 : vector<64x1xf32> to vector<64x64xf32>
    %97 = arith.divf %93, %96 : vector<64x64xf32>
    %98 = vector.extract_strided_slice %48 {offsets = [0, 64], sizes = [64, 16], strides = [1, 1]} : vector<64x128xf32> to vector<64x16xf32>
    %99 = vector.extract_strided_slice %49 {offsets = [0, 64], sizes = [64, 16], strides = [1, 1]} : vector<64x128xf32> to vector<64x16xf32>
    %cst_31 = arith.constant dense<0.000000e+00> : vector<64x64xf32>
    %100 = tpu.matmul %98, %99, %cst_31 {dimension_numbers = #tpu.dot_dimension_numbers<[1], [1], [0], [0], [0, 0, 1, 0], [], []>} : vector<64x16xf32>, vector<64x16xf32>, vector<64x64xf32> -> vector<64x64xf32>
    %cst_32 = arith.constant dense<0xFF800000> : vector<64xf32>
    %101 = vector.multi_reduction <maximumf>, %100, %cst_32 [1] : vector<64x64xf32> to vector<64xf32>
    %102 = vector.shape_cast %101 : vector<64xf32> to vector<64x1xf32>
    %103 = vector.broadcast %102 : vector<64x1xf32> to vector<64x64xf32>
    %104 = arith.subf %100, %103 : vector<64x64xf32>
    %105 = math.exp %104 : vector<64x64xf32>
    %cst_33 = arith.constant dense<0.000000e+00> : vector<64xf32>
    %106 = vector.multi_reduction <add>, %105, %cst_33 [1] : vector<64x64xf32> to vector<64xf32>
    %107 = vector.shape_cast %106 : vector<64xf32> to vector<64x1xf32>
    %108 = vector.broadcast %107 : vector<64x1xf32> to vector<64x64xf32>
    %109 = arith.divf %105, %108 : vector<64x64xf32>
    %110 = vector.extract_strided_slice %48 {offsets = [0, 80], sizes = [64, 16], strides = [1, 1]} : vector<64x128xf32> to vector<64x16xf32>
    %111 = vector.extract_strided_slice %49 {offsets = [0, 80], sizes = [64, 16], strides = [1, 1]} : vector<64x128xf32> to vector<64x16xf32>
    %cst_34 = arith.constant dense<0.000000e+00> : vector<64x64xf32>
    %112 = tpu.matmul %110, %111, %cst_34 {dimension_numbers = #tpu.dot_dimension_numbers<[1], [1], [0], [0], [0, 0, 1, 0], [], []>} : vector<64x16xf32>, vector<64x16xf32>, vector<64x64xf32> -> vector<64x64xf32>
    %cst_35 = arith.constant dense<0xFF800000> : vector<64xf32>
    %113 = vector.multi_reduction <maximumf>, %112, %cst_35 [1] : vector<64x64xf32> to vector<64xf32>
    %114 = vector.shape_cast %113 : vector<64xf32> to vector<64x1xf32>
    %115 = vector.broadcast %114 : vector<64x1xf32> to vector<64x64xf32>
    %116 = arith.subf %112, %115 : vector<64x64xf32>
    %117 = math.exp %116 : vector<64x64xf32>
    %cst_36 = arith.constant dense<0.000000e+00> : vector<64xf32>
    %118 = vector.multi_reduction <add>, %117, %cst_36 [1] : vector<64x64xf32> to vector<64xf32>
    %119 = vector.shape_cast %118 : vector<64xf32> to vector<64x1xf32>
    %120 = vector.broadcast %119 : vector<64x1xf32> to vector<64x64xf32>
    %121 = arith.divf %117, %120 : vector<64x64xf32>
    %122 = vector.extract_strided_slice %48 {offsets = [0, 96], sizes = [64, 16], strides = [1, 1]} : vector<64x128xf32> to vector<64x16xf32>
    %123 = vector.extract_strided_slice %49 {offsets = [0, 96], sizes = [64, 16], strides = [1, 1]} : vector<64x128xf32> to vector<64x16xf32>
    %cst_37 = arith.constant dense<0.000000e+00> : vector<64x64xf32>
    %124 = tpu.matmul %122, %123, %cst_37 {dimension_numbers = #tpu.dot_dimension_numbers<[1], [1], [0], [0], [0, 0, 1, 0], [], []>} : vector<64x16xf32>, vector<64x16xf32>, vector<64x64xf32> -> vector<64x64xf32>
    %cst_38 = arith.constant dense<0xFF800000> : vector<64xf32>
    %125 = vector.multi_reduction <maximumf>, %124, %cst_38 [1] : vector<64x64xf32> to vector<64xf32>
    %126 = vector.shape_cast %125 : vector<64xf32> to vector<64x1xf32>
    %127 = vector.broadcast %126 : vector<64x1xf32> to vector<64x64xf32>
    %128 = arith.subf %124, %127 : vector<64x64xf32>
    %129 = math.exp %128 : vector<64x64xf32>
    %cst_39 = arith.constant dense<0.000000e+00> : vector<64xf32>
    %130 = vector.multi_reduction <add>, %129, %cst_39 [1] : vector<64x64xf32> to vector<64xf32>
    %131 = vector.shape_cast %130 : vector<64xf32> to vector<64x1xf32>
    %132 = vector.broadcast %131 : vector<64x1xf32> to vector<64x64xf32>
    %133 = arith.divf %129, %132 : vector<64x64xf32>
    %134 = vector.extract_strided_slice %48 {offsets = [0, 112], sizes = [64, 16], strides = [1, 1]} : vector<64x128xf32> to vector<64x16xf32>
    %135 = vector.extract_strided_slice %49 {offsets = [0, 112], sizes = [64, 16], strides = [1, 1]} : vector<64x128xf32> to vector<64x16xf32>
    %cst_40 = arith.constant dense<0.000000e+00> : vector<64x64xf32>
    %136 = tpu.matmul %134, %135, %cst_40 {dimension_numbers = #tpu.dot_dimension_numbers<[1], [1], [0], [0], [0, 0, 1, 0], [], []>} : vector<64x16xf32>, vector<64x16xf32>, vector<64x64xf32> -> vector<64x64xf32>
    %cst_41 = arith.constant dense<0xFF800000> : vector<64xf32>
    %137 = vector.multi_reduction <maximumf>, %136, %cst_41 [1] : vector<64x64xf32> to vector<64xf32>
    %138 = vector.shape_cast %137 : vector<64xf32> to vector<64x1xf32>
    %139 = vector.broadcast %138 : vector<64x1xf32> to vector<64x64xf32>
    %140 = arith.subf %136, %139 : vector<64x64xf32>
    %141 = math.exp %140 : vector<64x64xf32>
    %cst_42 = arith.constant dense<0.000000e+00> : vector<64xf32>
    %142 = vector.multi_reduction <add>, %141, %cst_42 [1] : vector<64x64xf32> to vector<64xf32>
    %143 = vector.shape_cast %142 : vector<64xf32> to vector<64x1xf32>
    %144 = vector.broadcast %143 : vector<64x1xf32> to vector<64x64xf32>
    %145 = arith.divf %141, %144 : vector<64x64xf32>
    %146 = vector.shape_cast %61 : vector<64x64xf32> to vector<1x64x64xf32>
    %147 = vector.shape_cast %73 : vector<64x64xf32> to vector<1x64x64xf32>
    %148 = vector.shape_cast %85 : vector<64x64xf32> to vector<1x64x64xf32>
    %149 = vector.shape_cast %97 : vector<64x64xf32> to vector<1x64x64xf32>
    %150 = vector.shape_cast %109 : vector<64x64xf32> to vector<1x64x64xf32>
    %151 = vector.shape_cast %121 : vector<64x64xf32> to vector<1x64x64xf32>
    %152 = vector.shape_cast %133 : vector<64x64xf32> to vector<1x64x64xf32>
    %153 = vector.shape_cast %145 : vector<64x64xf32> to vector<1x64x64xf32>
    %154 = tpu.concatenate %146, %147, %148, %149, %150, %151, %152, %153 in 0 : vector<1x64x64xf32>, vector<1x64x64xf32>, vector<1x64x64xf32>, vector<1x64x64xf32>, vector<1x64x64xf32>, vector<1x64x64xf32>, vector<1x64x64xf32>, vector<1x64x64xf32> -> vector<8x64x64xf32>
    %c0_43 = arith.constant 0 : index
    %c0_44 = arith.constant 0 : index
    %c0_45 = arith.constant 0 : index
    %c0_46 = arith.constant 0 : index
    %155 = vector.load %arg5[%c0_43, %c0_44, %c0_45, %c0_46] : memref<1x8x64x64xf32, #tpu.memory_space<vmem>>, vector<1x8x64x64xf32>
    %156 = vector.shape_cast %155 : vector<1x8x64x64xf32> to vector<8x64x64xf32>
    %157 = vector.shape_cast %154 : vector<8x64x64xf32> to vector<1x8x64x64xf32>
    tpu.vector_store %arg5[%c0_43, %c0_44, %c0_45, %c0_46], %157 {strides = array<i32>} : memref<1x8x64x64xf32, #tpu.memory_space<vmem>>, vector<1x8x64x64xf32>,
    return
  }
  func.func @transform_0(%arg0: i32) -> (i32, i32, i32) {
    %c0_i32 = arith.constant 0 : i32
    %c0_i32_0 = arith.constant 0 : i32
    %c0_i32_1 = arith.constant 0 : i32
    return %arg0, %c0_i32, %c0_i32_0 : i32, i32, i32
  }
  func.func @transform_1(%arg0: i32) -> (i32, i32) {
    %c0_i32 = arith.constant 0 : i32
    %c0_i32_0 = arith.constant 0 : i32
    %c0_i32_1 = arith.constant 0 : i32
    return %c0_i32, %c0_i32_0 : i32, i32
  }
  func.func @transform_2(%arg0: i32) -> (i32, i32) {
    %c0_i32 = arith.constant 0 : i32
    %c0_i32_0 = arith.constant 0 : i32
    %c0_i32_1 = arith.constant 0 : i32
    return %c0_i32, %c0_i32_0 : i32, i32
  }
  func.func @transform_3(%arg0: i32) -> (i32, i32) {
    %c0_i32 = arith.constant 0 : i32
    %c0_i32_0 = arith.constant 0 : i32
    %c0_i32_1 = arith.constant 0 : i32
    return %c0_i32, %c0_i32_0 : i32, i32
  }
  func.func @transform_4(%arg0: i32) -> (i32, i32, i32, i32) {
    %c0_i32 = arith.constant 0 : i32
    %c0_i32_0 = arith.constant 0 : i32
    %c0_i32_1 = arith.constant 0 : i32
    %c0_i32_2 = arith.constant 0 : i32
    return %arg0, %c0_i32, %c0_i32_0, %c0_i32_1 : i32, i32, i32, i32
  }
}

</mosaic_0001>

<llo_original>
// kernel: tpu_custom_call.1
$region0: #{tpu_custom_call.1}
  #allocation0 [shape = 'u32[]', space=smem, size = 0x4, offset = 0x4, fixed_abs, tag = 'smem constant byte address 0x4 - core index']
  #allocation1 [shape = 'u32[144,128]{1,0:T(1,128)}', space=vmem, size = 0x12000, scoped, tag = 'internal scratch']
  %s0 = inlined_call_operand.hbm [shape: f32[2,256,128], index: 0, kind: input, shape index: {}]
  %s1 = inlined_call_operand.vmem [shape: f32[1,128], index: 1, kind: input, shape index: {}]
  %s2 = inlined_call_operand.vmem [shape: f32[1,128], index: 2, kind: input, shape index: {}]
  %s3 = inlined_call_operand.hbm [shape: f32[128,256], index: 3, kind: input, shape index: {}]
  %s4 = inlined_call_operand.hbm [shape: f32[2,8,64,64], index: 4, kind: output, shape index: {}]
  %s5 = sld [smem:[#allocation0]]
  $region57: #{tpu_custom_call.1} parent=0
    _
  %s7 = ssub.s32 1, %s5
  %s8 = scalar_select 0, %s7, %s5
  $region1: #{tpu_custom_call.1} parent=0
    #allocation2 [shape = 'u8[262144]{0}', space=vmem, size = 0x40000, scoped, tag = 'input window, operand 0']
    #allocation3 [shape = 's32[2]{0}', space=sflag, size = 0x8, scoped, tag = 'scoped memory for tpu_custom_call.1']
    #allocation4 [shape = 's32[2]{0}', space=sflag, size = 0x8, scoped, tag = 'scoped memory for tpu_custom_call.1']
    #allocation5 [shape = 'u8[131072]{0}', space=vmem, size = 0x20000, scoped, tag = 'input window, operand 3, single buffered']
    #allocation6 [shape = 's32[1]{0}', space=sflag, size = 0x4, scoped, tag = 'scoped memory for tpu_custom_call.1']
    #allocation7 [shape = 'u8[524288]{0}', space=vmem, size = 0x80000, scoped, tag = 'output window, operand 0']
    %9 = vsyncpa [#allocation3], 0
    %s10 = scalar_lea.sflag [#allocation3], 1
    %11 = vsyncpa %s10, 0
    %12 = vsyncpa [#allocation6], 0
    %13 = vsyncpa [#allocation4], 0
    %s14 = scalar_lea.sflag [#allocation4], 1
    %15 = vsyncpa %s14, 0
    loop: start=0, step=1, limit=4
    $region2: #{tpu_custom_call.1} parent=1 // loop_pre_header
      _
    $region3: #{tpu_custom_call.1} parent=1 // loop_header
      %s17 = sphi 0, %s21
      %p18 = scmp.ge.s32.totalorder %s17, 4
      %s27 = sphi 0, %s29
      %s30 = sphi 0, %s27
      %s31 = sphi 0, %s30
      %s47 = sphi 0, %s31
      %s51 = sphi 0, %s51
      %s53 = sphi 0, %s51
      %s54 = sphi 0, %s53
      %s68 = sphi 0, %s54
      %s72 = sphi 0, %s72
      %s74 = sphi 0, %s72
      %s75 = sphi 0, %s74
      %s89 = sphi 0, %s75
      %s93 = sphi 0, %s93
      %s95 = sphi 0, %s93
      %s96 = sphi 0, %s95
      %s110 = sphi 0, %s96
      %s116 = sphi 0, %s118
      %s119 = sphi 0, %s116
      %s120 = sphi 0, %s119
      %s136 = sphi 0, %s120
    $region4: #{tpu_custom_call.1} parent=1 // loop_header_branch
      %20 = sbr.rel (%p18) target = $region8
    $region5: #{tpu_custom_call.1} parent=1 // loop_body
      %s22 = ssub.s32 %s17, 1
      %s23 = ssub.s32 %s17, 2
      %s24 = sadd.s32 %s17, 1
      %s25 = ssub.s32 %s17, %s24
      %p26 = scmp.eq.s32.totalorder %s25, 0
      %s28 = sadd.s32 %s27, 1
      %s29 = scalar_select %p26, %s27, %s28
      %p32 = pneg %p26
      %p33 = scmp.eq.s32.totalorder %s17, 1
      %p34 = por %p32, %p33
      %p35 = scmp.ne.s32.totalorder %s27, %s30
      %p36 = scmp.eq.s32.totalorder %s17, 0
      %p37 = por %p35, %p36
      %p38 = scmp.ne.s32.totalorder %s27, %s30
      %p39 = scmp.eq.s32.totalorder %s22, 1
      %p40 = por %p38, %p39
      %p41 = scmp.ne.s32.totalorder %s30, %s31
      %p42 = scmp.eq.s32.totalorder %s22, 0
      %p43 = por %p41, %p42
      %p44 = scmp.ne.s32.totalorder %s30, %s31
      %p45 = scmp.eq.s32.totalorder %s23, 1
      %p46 = por %p44, %p45
      %p48 = scmp.ne.s32.totalorder %s31, %s47
      %p49 = scmp.eq.s32.totalorder %s23, 0
      %p50 = por %p48, %p49
      %s52 = sadd.s32 %s51, 1
      %p55 = scmp.eq.s32.totalorder %s17, 1
      %p56 = scmp.ne.s32.totalorder %s51, %s53
      %p57 = scmp.eq.s32.totalorder %s17, 0
      %p58 = por %p56, %p57
      %p59 = scmp.ne.s32.totalorder %s51, %s53
      %p60 = scmp.eq.s32.totalorder %s22, 1
      %p61 = por %p59, %p60
      %p62 = scmp.ne.s32.totalorder %s53, %s54
      %p63 = scmp.eq.s32.totalorder %s22, 0
      %p64 = por %p62, %p63
      %p65 = scmp.ne.s32.totalorder %s53, %s54
      %p66 = scmp.eq.s32.totalorder %s23, 1
      %p67 = por %p65, %p66
      %p69 = scmp.ne.s32.totalorder %s54, %s68
      %p70 = scmp.eq.s32.totalorder %s23, 0
      %p71 = por %p69, %p70
      %s73 = sadd.s32 %s72, 1
      %p76 = scmp.eq.s32.totalorder %s17, 1
      %p77 = scmp.ne.s32.totalorder %s72, %s74
      %p78 = scmp.eq.s32.totalorder %s17, 0
      %p79 = por %p77, %p78
      %p80 = scmp.ne.s32.totalorder %s72, %s74
      %p81 = scmp.eq.s32.totalorder %s22, 1
      %p82 = por %p80, %p81
      %p83 = scmp.ne.s32.totalorder %s74, %s75
      %p84 = scmp.eq.s32.totalorder %s22, 0
      %p85 = por %p83, %p84
      %p86 = scmp.ne.s32.totalorder %s74, %s75
      %p87 = scmp.eq.s32.totalorder %s23, 1
      %p88 = por %p86, %p87
      %p90 = scmp.ne.s32.totalorder %s75, %s89
      %p91 = scmp.eq.s32.totalorder %s23, 0
      %p92 = por %p90, %p91
      %s94 = sadd.s32 %s93, 1
      %p97 = scmp.eq.s32.totalorder %s17, 1
      %p98 = scmp.ne.s32.totalorder %s93, %s95
      %p99 = scmp.eq.s32.totalorder %s17, 0
      %p100 = por %p98, %p99
      %p101 = scmp.ne.s32.totalorder %s93, %s95
      %p102 = scmp.eq.s32.totalorder %s22, 1
      %p103 = por %p101, %p102
      %p104 = scmp.ne.s32.totalorder %s95, %s96
      %p105 = scmp.eq.s32.totalorder %s22, 0
      %p106 = por %p104, %p105
      %p107 = scmp.ne.s32.totalorder %s95, %s96
      %p108 = scmp.eq.s32.totalorder %s23, 1
      %p109 = por %p107, %p108
      %p111 = scmp.ne.s32.totalorder %s96, %s110
      %p112 = scmp.eq.s32.totalorder %s23, 0
      %p113 = por %p111, %p112
      %s114 = ssub.s32 %s17, %s24
      %p115 = scmp.eq.s32.totalorder %s114, 0
      %s117 = sadd.s32 %s116, 1
      %s118 = scalar_select %p115, %s116, %s117
      %p121 = pneg %p115
      %p122 = scmp.eq.s32.totalorder %s17, 1
      %p123 = por %p121, %p122
      %p124 = scmp.ne.s32.totalorder %s116, %s119
      %p125 = scmp.eq.s32.totalorder %s17, 0
      %p126 = por %p124, %p125
      %p127 = scmp.ne.s32.totalorder %s116, %s119
      %p128 = scmp.eq.s32.totalorder %s22, 1
      %p129 = por %p127, %p128
      %p130 = scmp.ne.s32.totalorder %s119, %s120
      %p131 = scmp.eq.s32.totalorder %s22, 0
      %p132 = por %p130, %p131
      %p133 = scmp.ne.s32.totalorder %s119, %s120
      %p134 = scmp.eq.s32.totalorder %s23, 1
      %p135 = por %p133, %p134
      %p137 = scmp.ne.s32.totalorder %s120, %s136
      %p138 = scmp.eq.s32.totalorder %s23, 0
      %p139 = por %p137, %p138
      %p140 = scmp.le.s32.totalorder 1, %s17
      %p141 = scmp.lt.s32.totalorder %s17, 3
      %p142 = pnand %p140, %p141
      %p143 = pneg %p142
      // Predicated region
      $region9: #{tpu_custom_call.1} parent=5 // pred_check
        _
      $region10: #{tpu_custom_call.1} parent=5 // pred_check_branch
        %145 = sbr.rel (%p142) target = $region12
      $region11: #{tpu_custom_call.1} parent=5 // pred_region
        %s146 = ssub.s32 %s17, 1
        // Predicated region
        $region13: #{tpu_custom_call.1} parent=11 // pred_check
          %p147 = pneg %p64
        $region14: #{tpu_custom_call.1} parent=11 // pred_check_branch
          %149 = sbr.rel (%p147) target = $region16
        $region15: #{tpu_custom_call.1} parent=11 // pred_region
          _
        $region16: #{tpu_custom_call.1} parent=11 // pred_fallthru
          _
        // Predicated region
        $region17: #{tpu_custom_call.1} parent=11 // pred_check
          %p150 = pneg %p85
        $region18: #{tpu_custom_call.1} parent=11 // pred_check_branch
          %152 = sbr.rel (%p150) target = $region20
        $region19: #{tpu_custom_call.1} parent=11 // pred_region
          _
        $region20: #{tpu_custom_call.1} parent=11 // pred_fallthru
          _
        // Predicated region
        $region21: #{tpu_custom_call.1} parent=11 // pred_check
          %p153 = pneg %p106
        $region22: #{tpu_custom_call.1} parent=11 // pred_check_branch
          %155 = sbr.rel (%p153) target = $region24
        $region23: #{tpu_custom_call.1} parent=11 // pred_region
          %s157 = ssub.s32 4096, 4096
          %158 = vsyncadd [#allocation6], %s157
          %s159 = sshll.u32 [#allocation5], 4
          %s160 = int_to_ptr.vmem [resolvable:$true] %s159
          %165 = dma.hbm_to_vmem [thread:$0]  %s3, 4096, %s160, [#allocation6], 256, 256, 16
        $region24: #{tpu_custom_call.1} parent=11 // pred_fallthru
          _
      $region12: #{tpu_custom_call.1} parent=5 // pred_fallthru
        _
      %p166 = scmp.lt.s32.totalorder %s17, 2
      // Predicated region
      $region25: #{tpu_custom_call.1} parent=5 // pred_check
        %p167 = pneg %p166
      $region26: #{tpu_custom_call.1} parent=5 // pred_check_branch
        %169 = sbr.rel (%p167) target = $region28
      $region27: #{tpu_custom_call.1} parent=5 // pred_region
        // Predicated region
        $region29: #{tpu_custom_call.1} parent=27 // pred_check
          %p170 = pneg %p37
        $region30: #{tpu_custom_call.1} parent=27 // pred_check_branch
          %172 = sbr.rel (%p170) target = $region32
        $region31: #{tpu_custom_call.1} parent=27 // pred_region
          %s173 = sand.u32 %s27, 1
          %s174 = scalar_lea.sflag [#allocation3], %s173
          %s175 = sand.u32 %s27, 1
          %s176 = smul.addr %s175, 256
          %s177 = scalar_lea.vmem [#allocation2], %s176
          %s179 = ssub.s32 4096, 4096
          %180 = vsyncadd %s174, %s179
          %s181 = smul.addr %s17, 32
          %s182 = smul.addr %s181, 128
          %s183 = scalar_lea.hbm %s0, %s182
          %s184 = sshll.u32 %s177, 4
          %s185 = int_to_ptr.vmem [resolvable:$true] %s184
          %190 = dma.hbm_to_vmem [thread:$0]  %s183, 4096, %s185, %s174, 128, 128, 8
        $region32: #{tpu_custom_call.1} parent=27 // pred_fallthru
          _
      $region28: #{tpu_custom_call.1} parent=5 // pred_fallthru
        _
      %p191 = scmp.le.s32.totalorder 1, %s17
      %p192 = scmp.lt.s32.totalorder %s17, 3
      %p193 = pnand %p191, %p192
      %p194 = pneg %p193
      // Predicated region
      $region33: #{tpu_custom_call.1} parent=5 // pred_check
        _
      $region34: #{tpu_custom_call.1} parent=5 // pred_check_branch
        %196 = sbr.rel (%p193) target = $region36
      $region35: #{tpu_custom_call.1} parent=5 // pred_region
        %s197 = ssub.s32 %s17, 1
        %s198 = sand.u32 %s30, 1
        %s199 = scalar_lea.sflag [#allocation3], %s198
        %s200 = sand.u32 %s30, 1
        %s201 = smul.addr %s200, 256
        %s202 = scalar_lea.vmem [#allocation2], %s201
        // Predicated region
        $region37: #{tpu_custom_call.1} parent=35 // pred_check
          %p203 = pneg %p43
        $region38: #{tpu_custom_call.1} parent=35 // pred_check_branch
          %205 = sbr.rel (%p203) target = $region40
        $region39: #{tpu_custom_call.1} parent=35 // pred_region
          %206 = dma.done %s199, 4096
        $region40: #{tpu_custom_call.1} parent=35 // pred_fallthru
          _
        // Predicated region
        $region41: #{tpu_custom_call.1} parent=35 // pred_check
          %p207 = pneg %p106
        $region42: #{tpu_custom_call.1} parent=35 // pred_check_branch
          %209 = sbr.rel (%p207) target = $region44
        $region43: #{tpu_custom_call.1} parent=35 // pred_region
          %210 = dma.done [#allocation6], 4096
        $region44: #{tpu_custom_call.1} parent=35 // pred_fallthru
          _
        %s211 = sand.u32 %s30, 1
        %s212 = scalar_lea.sflag [#allocation3], %s211
        %s213 = sand.u32 %s30, 1
        %s214 = smul.addr %s213, 256
        %s215 = scalar_lea.vmem [#allocation2], %s214
        %p216 = pneg %p43
        %p217 = pneg %p40
        %p218 = pneg %p64
        %p219 = pneg %p61
        %p220 = pneg %p85
        %p221 = pneg %p82
        %p222 = pneg %p106
        %p223 = pneg %p103
        %p224 = pneg %p132
        %p225 = pneg %p129
        %s226 = sand.u32 %s119, 1
        %s227 = scalar_lea.sflag [#allocation4], %s226
        %s228 = sand.u32 %s119, 1
        %s229 = smul.addr %s228, 512
        %s230 = scalar_lea.vmem [#allocation7], %s229
        %v232 = vld [vmem:[%s202] sm:$0xff]
        %v233 = vld [vmem:[%s202 + $0x8] sm:$0xff]
        %v234 = vld [vmem:[%s202 + $0x10] sm:$0xff]
        %v235 = vld [vmem:[%s202 + $0x18] sm:$0xff]
        %v236 = vld [vmem:[%s202 + $0x20] sm:$0xff]
        %v237 = vld [vmem:[%s202 + $0x28] sm:$0xff]
        %v238 = vld [vmem:[%s202 + $0x30] sm:$0xff]
        %v239 = vld [vmem:[%s202 + $0x38] sm:$0xff]
        %v240 = vld [vmem:[%s202 + $0x40] sm:$0xff]
        %v241 = vld [vmem:[%s202 + $0x48] sm:$0xff]
        %v242 = vld [vmem:[%s202 + $0x50] sm:$0xff]
        %v243 = vld [vmem:[%s202 + $0x58] sm:$0xff]
        %v244 = vld [vmem:[%s202 + $0x60] sm:$0xff]
        %v245 = vld [vmem:[%s202 + $0x68] sm:$0xff]
        %v246 = vld [vmem:[%s202 + $0x70] sm:$0xff]
        %v247 = vld [vmem:[%s202 + $0x78] sm:$0xff]
        %v248 = vld [vmem:[%s202 + $0x80] sm:$0xff]
        %v249 = vld [vmem:[%s202 + $0x88] sm:$0xff]
        %v250 = vld [vmem:[%s202 + $0x90] sm:$0xff]
        %v251 = vld [vmem:[%s202 + $0x98] sm:$0xff]
        %v252 = vld [vmem:[%s202 + $0xa0] sm:$0xff]
        %v253 = vld [vmem:[%s202 + $0xa8] sm:$0xff]
        %v254 = vld [vmem:[%s202 + $0xb0] sm:$0xff]
        %v255 = vld [vmem:[%s202 + $0xb8] sm:$0xff]
        %v256 = vld [vmem:[%s202 + $0xc0] sm:$0xff]
        %v257 = vld [vmem:[%s202 + $0xc8] sm:$0xff]
        %v258 = vld [vmem:[%s202 + $0xd0] sm:$0xff]
        %v259 = vld [vmem:[%s202 + $0xd8] sm:$0xff]
        %v260 = vld [vmem:[%s202 + $0xe0] sm:$0xff]
        %v261 = vld [vmem:[%s202 + $0xe8] sm:$0xff]
        %v262 = vld [vmem:[%s202 + $0xf0] sm:$0xff]
        %v263 = vld [vmem:[%s202 + $0xf8] sm:$0xff]
        %v264 = vld [vmem:[%s1] sm:$0x1]
        %v265 = vld [vmem:[%s2] sm:$0x1]
        %266 = vadd.xlane.f32.xlu0 %v232
        %v267 = vpop.xlane.xlu0 %266
        %268 = vadd.xlane.f32.xlu0 %v233
        %v269 = vpop.xlane.xlu0 %268
        %270 = vadd.xlane.f32.xlu0 %v234
        %v271 = vpop.xlane.xlu0 %270
        %272 = vadd.xlane.f32.xlu0 %v235
        %v273 = vpop.xlane.xlu0 %272
        %274 = vadd.xlane.f32.xlu0 %v236
        %v275 = vpop.xlane.xlu0 %274
        %276 = vadd.xlane.f32.xlu0 %v237
        %v277 = vpop.xlane.xlu0 %276
        %278 = vadd.xlane.f32.xlu0 %v238
        %v279 = vpop.xlane.xlu0 %278
        %280 = vadd.xlane.f32.xlu0 %v239
        %v281 = vpop.xlane.xlu0 %280
        %282 = vadd.xlane.f32.xlu0 %v240
        %v283 = vpop.xlane.xlu0 %282
        %284 = vadd.xlane.f32.xlu0 %v241
        %v285 = vpop.xlane.xlu0 %284
        %286 = vadd.xlane.f32.xlu0 %v242
        %v287 = vpop.xlane.xlu0 %286
        %288 = vadd.xlane.f32.xlu0 %v243
        %v289 = vpop.xlane.xlu0 %288
        %290 = vadd.xlane.f32.xlu0 %v244
        %v291 = vpop.xlane.xlu0 %290
        %292 = vadd.xlane.f32.xlu0 %v245
        %v293 = vpop.xlane.xlu0 %292
        %294 = vadd.xlane.f32.xlu0 %v246
        %v295 = vpop.xlane.xlu0 %294
        %296 = vadd.xlane.f32.xlu0 %v247
        %v297 = vpop.xlane.xlu0 %296
        %298 = vadd.xlane.f32.xlu0 %v248
        %v299 = vpop.xlane.xlu0 %298
        %300 = vadd.xlane.f32.xlu0 %v249
        %v301 = vpop.xlane.xlu0 %300
        %302 = vadd.xlane.f32.xlu0 %v250
        %v303 = vpop.xlane.xlu0 %302
        %304 = vadd.xlane.f32.xlu0 %v251
        %v305 = vpop.xlane.xlu0 %304
        %306 = vadd.xlane.f32.xlu0 %v252
        %v307 = vpop.xlane.xlu0 %306
        %308 = vadd.xlane.f32.xlu0 %v253
        %v309 = vpop.xlane.xlu0 %308
        %310 = vadd.xlane.f32.xlu0 %v254
        %v311 = vpop.xlane.xlu0 %310
        %312 = vadd.xlane.f32.xlu0 %v255
        %v313 = vpop.xlane.xlu0 %312
        %314 = vadd.xlane.f32.xlu0 %v256
        %v315 = vpop.xlane.xlu0 %314
        %316 = vadd.xlane.f32.xlu0 %v257
        %v317 = vpop.xlane.xlu0 %316
        %318 = vadd.xlane.f32.xlu0 %v258
        %v319 = vpop.xlane.xlu0 %318
        %320 = vadd.xlane.f32.xlu0 %v259
        %v321 = vpop.xlane.xlu0 %320
        %322 = vadd.xlane.f32.xlu0 %v260
        %v323 = vpop.xlane.xlu0 %322
        %324 = vadd.xlane.f32.xlu0 %v261
        %v325 = vpop.xlane.xlu0 %324
        %326 = vadd.xlane.f32.xlu0 %v262
        %v327 = vpop.xlane.xlu0 %326
        %328 = vadd.xlane.f32.xlu0 %v263
        %v329 = vpop.xlane.xlu0 %328
        %v330 = vrcp.pop 128.0
        %v331 = vmul.f32 %v267, %v330
        %v332 = vmul.f32 %v269, %v330
        %v333 = vmul.f32 %v271, %v330
        %v334 = vmul.f32 %v273, %v330
        %v335 = vmul.f32 %v275, %v330
        %v336 = vmul.f32 %v277, %v330
        %v337 = vmul.f32 %v279, %v330
        %v338 = vmul.f32 %v281, %v330
        %v339 = vmul.f32 %v283, %v330
        %v340 = vmul.f32 %v285, %v330
        %v341 = vmul.f32 %v287, %v330
        %v342 = vmul.f32 %v289, %v330
        %v343 = vmul.f32 %v291, %v330
        %v344 = vmul.f32 %v293, %v330
        %v345 = vmul.f32 %v295, %v330
        %v346 = vmul.f32 %v297, %v330
        %v347 = vmul.f32 %v299, %v330
        %v348 = vmul.f32 %v301, %v330
        %v349 = vmul.f32 %v303, %v330
        %v350 = vmul.f32 %v305, %v330
        %v351 = vmul.f32 %v307, %v330
        %v352 = vmul.f32 %v309, %v330
        %v353 = vmul.f32 %v311, %v330
        %v354 = vmul.f32 %v313, %v330
        %v355 = vmul.f32 %v315, %v330
        %v356 = vmul.f32 %v317, %v330
        %v357 = vmul.f32 %v319, %v330
        %v358 = vmul.f32 %v321, %v330
        %v359 = vmul.f32 %v323, %v330
        %v360 = vmul.f32 %v325, %v330
        %v361 = vmul.f32 %v327, %v330
        %v362 = vmul.f32 %v329, %v330
        %v363 = vsub.f32 %v232, %v331
        %v364 = vsub.f32 %v233, %v332
        %v365 = vsub.f32 %v234, %v333
        %v366 = vsub.f32 %v235, %v334
        %v367 = vsub.f32 %v236, %v335
        %v368 = vsub.f32 %v237, %v336
        %v369 = vsub.f32 %v238, %v337
        %v370 = vsub.f32 %v239, %v338
        %v371 = vsub.f32 %v240, %v339
        %v372 = vsub.f32 %v241, %v340
        %v373 = vsub.f32 %v242, %v341
        %v374 = vsub.f32 %v243, %v342
        %v375 = vsub.f32 %v244, %v343
        %v376 = vsub.f32 %v245, %v344
        %v377 = vsub.f32 %v246, %v345
        %v378 = vsub.f32 %v247, %v346
        %v379 = vsub.f32 %v248, %v347
        %v380 = vsub.f32 %v249, %v348
        %v381 = vsub.f32 %v250, %v349
        %v382 = vsub.f32 %v251, %v350
        %v383 = vsub.f32 %v252, %v351
        %v384 = vsub.f32 %v253, %v352
        %v385 = vsub.f32 %v254, %v353
        %v386 = vsub.f32 %v255, %v354
        %v387 = vsub.f32 %v256, %v355
        %v388 = vsub.f32 %v257, %v356
        %v389 = vsub.f32 %v258, %v357
        %v390 = vsub.f32 %v259, %v358
        %v391 = vsub.f32 %v260, %v359
        %v392 = vsub.f32 %v261, %v360
        %v393 = vsub.f32 %v262, %v361
        %v394 = vsub.f32 %v263, %v362
        %v395 = vmul.f32 %v363, %v363
        %v396 = vmul.f32 %v364, %v364
        %v397 = vmul.f32 %v365, %v365
        %v398 = vmul.f32 %v366, %v366
        %v399 = vmul.f32 %v367, %v367
        %v400 = vmul.f32 %v368, %v368
        %v401 = vmul.f32 %v369, %v369
        %v402 = vmul.f32 %v370, %v370
        %v403 = vmul.f32 %v371, %v371
        %v404 = vmul.f32 %v372, %v372
        %v405 = vmul.f32 %v373, %v373
        %v406 = vmul.f32 %v374, %v374
        %v407 = vmul.f32 %v375, %v375
        %v408 = vmul.f32 %v376, %v376
        %v409 = vmul.f32 %v377, %v377
        %v410 = vmul.f32 %v378, %v378
        %v411 = vmul.f32 %v379, %v379
        %v412 = vmul.f32 %v380, %v380
        %v413 = vmul.f32 %v381, %v381
        %v414 = vmul.f32 %v382, %v382
        %v415 = vmul.f32 %v383, %v383
        %v416 = vmul.f32 %v384, %v384
        %v417 = vmul.f32 %v385, %v385
        %v418 = vmul.f32 %v386, %v386
        %v419 = vmul.f32 %v387, %v387
        %v420 = vmul.f32 %v388, %v388
        %v421 = vmul.f32 %v389, %v389
        %v422 = vmul.f32 %v390, %v390
        %v423 = vmul.f32 %v391, %v391
        %v424 = vmul.f32 %v392, %v392
        %v425 = vmul.f32 %v393, %v393
        %v426 = vmul.f32 %v394, %v394
        %427 = vadd.xlane.f32.xlu0 %v395
        %v428 = vpop.xlane.xlu0 %427
        %429 = vadd.xlane.f32.xlu0 %v396
        %v430 = vpop.xlane.xlu0 %429
        %431 = vadd.xlane.f32.xlu0 %v397
        %v432 = vpop.xlane.xlu0 %431
        %433 = vadd.xlane.f32.xlu0 %v398
        %v434 = vpop.xlane.xlu0 %433
        %435 = vadd.xlane.f32.xlu0 %v399
        %v436 = vpop.xlane.xlu0 %435
        %437 = vadd.xlane.f32.xlu0 %v400
        %v438 = vpop.xlane.xlu0 %437
        %439 = vadd.xlane.f32.xlu0 %v401
        %v440 = vpop.xlane.xlu0 %439
        %441 = vadd.xlane.f32.xlu0 %v402
        %v442 = vpop.xlane.xlu0 %441
        %443 = vadd.xlane.f32.xlu0 %v403
        %v444 = vpop.xlane.xlu0 %443
        %445 = vadd.xlane.f32.xlu0 %v404
        %v446 = vpop.xlane.xlu0 %445
        %447 = vadd.xlane.f32.xlu0 %v405
        %v448 = vpop.xlane.xlu0 %447
        %449 = vadd.xlane.f32.xlu0 %v406
        %v450 = vpop.xlane.xlu0 %449
        %451 = vadd.xlane.f32.xlu0 %v407
        %v452 = vpop.xlane.xlu0 %451
        %453 = vadd.xlane.f32.xlu0 %v408
        %v454 = vpop.xlane.xlu0 %453
        %455 = vadd.xlane.f32.xlu0 %v409
        %v456 = vpop.xlane.xlu0 %455
        %457 = vadd.xlane.f32.xlu0 %v410
        %v458 = vpop.xlane.xlu0 %457
        %459 = vadd.xlane.f32.xlu0 %v411
        %v460 = vpop.xlane.xlu0 %459
        %461 = vadd.xlane.f32.xlu0 %v412
        %v462 = vpop.xlane.xlu0 %461
        %463 = vadd.xlane.f32.xlu0 %v413
        %v464 = vpop.xlane.xlu0 %463
        %465 = vadd.xlane.f32.xlu0 %v414
        %v466 = vpop.xlane.xlu0 %465
        %467 = vadd.xlane.f32.xlu0 %v415
        %v468 = vpop.xlane.xlu0 %467
        %469 = vadd.xlane.f32.xlu0 %v416
        %v470 = vpop.xlane.xlu0 %469
        %471 = vadd.xlane.f32.xlu0 %v417
        %v472 = vpop.xlane.xlu0 %471
        %473 = vadd.xlane.f32.xlu0 %v418
        %v474 = vpop.xlane.xlu0 %473
        %475 = vadd.xlane.f32.xlu0 %v419
        %v476 = vpop.xlane.xlu0 %475
        %477 = vadd.xlane.f32.xlu0 %v420
        %v478 = vpop.xlane.xlu0 %477
        %479 = vadd.xlane.f32.xlu0 %v421
        %v480 = vpop.xlane.xlu0 %479
        %481 = vadd.xlane.f32.xlu0 %v422
        %v482 = vpop.xlane.xlu0 %481
        %483 = vadd.xlane.f32.xlu0 %v423
        %v484 = vpop.xlane.xlu0 %483
        %485 = vadd.xlane.f32.xlu0 %v424
        %v486 = vpop.xlane.xlu0 %485
        %487 = vadd.xlane.f32.xlu0 %v425
        %v488 = vpop.xlane.xlu0 %487
        %489 = vadd.xlane.f32.xlu0 %v426
        %v490 = vpop.xlane.xlu0 %489
        %v491 = vmul.f32 %v428, %v330
        %v492 = vmul.f32 %v430, %v330
        %v493 = vmul.f32 %v432, %v330
        %v494 = vmul.f32 %v434, %v330
        %v495 = vmul.f32 %v436, %v330
        %v496 = vmul.f32 %v438, %v330
        %v497 = vmul.f32 %v440, %v330
        %v498 = vmul.f32 %v442, %v330
        %v499 = vmul.f32 %v444, %v330
        %v500 = vmul.f32 %v446, %v330
        %v501 = vmul.f32 %v448, %v330
        %v502 = vmul.f32 %v450, %v330
        %v503 = vmul.f32 %v452, %v330
        %v504 = vmul.f32 %v454, %v330
        %v505 = vmul.f32 %v456, %v330
        %v506 = vmul.f32 %v458, %v330
        %v507 = vmul.f32 %v460, %v330
        %v508 = vmul.f32 %v462, %v330
        %v509 = vmul.f32 %v464, %v330
        %v510 = vmul.f32 %v466, %v330
        %v511 = vmul.f32 %v468, %v330
        %v512 = vmul.f32 %v470, %v330
        %v513 = vmul.f32 %v472, %v330
        %v514 = vmul.f32 %v474, %v330
        %v515 = vmul.f32 %v476, %v330
        %v516 = vmul.f32 %v478, %v330
        %v517 = vmul.f32 %v480, %v330
        %v518 = vmul.f32 %v482, %v330
        %v519 = vmul.f32 %v484, %v330
        %v520 = vmul.f32 %v486, %v330
        %v521 = vmul.f32 %v488, %v330
        %v522 = vmul.f32 %v490, %v330
        %v523 = vadd.f32 %v491, 1e-05
        %v524 = vadd.f32 %v492, 1e-05
        %v525 = vadd.f32 %v493, 1e-05
        %v526 = vadd.f32 %v494, 1e-05
        %v527 = vadd.f32 %v495, 1e-05
        %v528 = vadd.f32 %v496, 1e-05
        %v529 = vadd.f32 %v497, 1e-05
        %v530 = vadd.f32 %v498, 1e-05
        %v531 = vadd.f32 %v499, 1e-05
        %v532 = vadd.f32 %v500, 1e-05
        %v533 = vadd.f32 %v501, 1e-05
        %v534 = vadd.f32 %v502, 1e-05
        %v535 = vadd.f32 %v503, 1e-05
        %v536 = vadd.f32 %v504, 1e-05
        %v537 = vadd.f32 %v505, 1e-05
        %v538 = vadd.f32 %v506, 1e-05
        %v539 = vadd.f32 %v507, 1e-05
        %v540 = vadd.f32 %v508, 1e-05
        %v541 = vadd.f32 %v509, 1e-05
        %v542 = vadd.f32 %v510, 1e-05
        %v543 = vadd.f32 %v511, 1e-05
        %v544 = vadd.f32 %v512, 1e-05
        %v545 = vadd.f32 %v513, 1e-05
        %v546 = vadd.f32 %v514, 1e-05
        %v547 = vadd.f32 %v515, 1e-05
        %v548 = vadd.f32 %v516, 1e-05
        %v549 = vadd.f32 %v517, 1e-05
        %v550 = vadd.f32 %v518, 1e-05
        %v551 = vadd.f32 %v519, 1e-05
        %v552 = vadd.f32 %v520, 1e-05
        %v553 = vadd.f32 %v521, 1e-05
        %v554 = vadd.f32 %v522, 1e-05
        %v555 = vrsqrt.pop %v523
        %v556 = vrsqrt.pop %v524
        %v557 = vrsqrt.pop %v525
        %v558 = vrsqrt.pop %v526
        %v559 = vrsqrt.pop %v527
        %v560 = vrsqrt.pop %v528
        %v561 = vrsqrt.pop %v529
        %v562 = vrsqrt.pop %v530
        %v563 = vrsqrt.pop %v531
        %v564 = vrsqrt.pop %v532
        %v565 = vrsqrt.pop %v533
        %v566 = vrsqrt.pop %v534
        %v567 = vrsqrt.pop %v535
        %v568 = vrsqrt.pop %v536
        %v569 = vrsqrt.pop %v537
        %v570 = vrsqrt.pop %v538
        %v571 = vrsqrt.pop %v539
        %v572 = vrsqrt.pop %v540
        %v573 = vrsqrt.pop %v541
        %v574 = vrsqrt.pop %v542
        %v575 = vrsqrt.pop %v543
        %v576 = vrsqrt.pop %v544
        %v577 = vrsqrt.pop %v545
        %v578 = vrsqrt.pop %v546
        %v579 = vrsqrt.pop %v547
        %v580 = vrsqrt.pop %v548
        %v581 = vrsqrt.pop %v549
        %v582 = vrsqrt.pop %v550
        %v583 = vrsqrt.pop %v551
        %v584 = vrsqrt.pop %v552
        %v585 = vrsqrt.pop %v553
        %v586 = vrsqrt.pop %v554
        %v587 = vmul.f32 %v363, %v555
        %v588 = vmul.f32 %v364, %v556
        %v589 = vmul.f32 %v365, %v557
        %v590 = vmul.f32 %v366, %v558
        %v591 = vmul.f32 %v367, %v559
        %v592 = vmul.f32 %v368, %v560
        %v593 = vmul.f32 %v369, %v561
        %v594 = vmul.f32 %v370, %v562
        %v595 = vmul.f32 %v371, %v563
        %v596 = vmul.f32 %v372, %v564
        %v597 = vmul.f32 %v373, %v565
        %v598 = vmul.f32 %v374, %v566
        %v599 = vmul.f32 %v375, %v567
        %v600 = vmul.f32 %v376, %v568
        %v601 = vmul.f32 %v377, %v569
        %v602 = vmul.f32 %v378, %v570
        %v603 = vmul.f32 %v379, %v571
        %v604 = vmul.f32 %v380, %v572
        %v605 = vmul.f32 %v381, %v573
        %v606 = vmul.f32 %v382, %v574
        %v607 = vmul.f32 %v383, %v575
        %v608 = vmul.f32 %v384, %v576
        %v609 = vmul.f32 %v385, %v577
        %v610 = vmul.f32 %v386, %v578
        %v611 = vmul.f32 %v387, %v579
        %v612 = vmul.f32 %v388, %v580
        %v613 = vmul.f32 %v389, %v581
        %v614 = vmul.f32 %v390, %v582
        %v615 = vmul.f32 %v391, %v583
        %v616 = vmul.f32 %v392, %v584
        %v617 = vmul.f32 %v393, %v585
        %v618 = vmul.f32 %v394, %v586
        %v620 = vlaneseq
        %v621 = vshrl.u32 %v620, 7
        %v622 = vsub.s32 0, %v621
        %v623 = vrot.slane %v264, %v622
        %v625 = vmul.f32 %v587, %v623
        %v626 = vmul.f32 %v588, %v623
        %v627 = vmul.f32 %v589, %v623
        %v628 = vmul.f32 %v590, %v623
        %v629 = vmul.f32 %v591, %v623
        %v630 = vmul.f32 %v592, %v623
        %v631 = vmul.f32 %v593, %v623
        %v632 = vmul.f32 %v594, %v623
        %v633 = vmul.f32 %v595, %v623
        %v634 = vmul.f32 %v596, %v623
        %v635 = vmul.f32 %v597, %v623
        %v636 = vmul.f32 %v598, %v623
        %v637 = vmul.f32 %v599, %v623
        %v638 = vmul.f32 %v600, %v623
        %v639 = vmul.f32 %v601, %v623
        %v640 = vmul.f32 %v602, %v623
        %v641 = vmul.f32 %v603, %v623
        %v642 = vmul.f32 %v604, %v623
        %v643 = vmul.f32 %v605, %v623
        %v644 = vmul.f32 %v606, %v623
        %v645 = vmul.f32 %v607, %v623
        %v646 = vmul.f32 %v608, %v623
        %v647 = vmul.f32 %v609, %v623
        %v648 = vmul.f32 %v610, %v623
        %v649 = vmul.f32 %v611, %v623
        %v650 = vmul.f32 %v612, %v623
        %v651 = vmul.f32 %v613, %v623
        %v652 = vmul.f32 %v614, %v623
        %v653 = vmul.f32 %v615, %v623
        %v654 = vmul.f32 %v616, %v623
        %v655 = vmul.f32 %v617, %v623
        %v656 = vmul.f32 %v618, %v623
        %v658 = vlaneseq
        %v659 = vshrl.u32 %v658, 7
        %v660 = vsub.s32 0, %v659
        %v661 = vrot.slane %v265, %v660
        %v663 = vadd.f32 %v625, %v661
        %v664 = vadd.f32 %v626, %v661
        %v665 = vadd.f32 %v627, %v661
        %v666 = vadd.f32 %v628, %v661
        %v667 = vadd.f32 %v629, %v661
        %v668 = vadd.f32 %v630, %v661
        %v669 = vadd.f32 %v631, %v661
        %v670 = vadd.f32 %v632, %v661
        %v671 = vadd.f32 %v633, %v661
        %v672 = vadd.f32 %v634, %v661
        %v673 = vadd.f32 %v635, %v661
        %v674 = vadd.f32 %v636, %v661
        %v675 = vadd.f32 %v637, %v661
        %v676 = vadd.f32 %v638, %v661
        %v677 = vadd.f32 %v639, %v661
        %v678 = vadd.f32 %v640, %v661
        %v679 = vadd.f32 %v641, %v661
        %v680 = vadd.f32 %v642, %v661
        %v681 = vadd.f32 %v643, %v661
        %v682 = vadd.f32 %v644, %v661
        %v683 = vadd.f32 %v645, %v661
        %v684 = vadd.f32 %v646, %v661
        %v685 = vadd.f32 %v647, %v661
        %v686 = vadd.f32 %v648, %v661
        %v687 = vadd.f32 %v649, %v661
        %v688 = vadd.f32 %v650, %v661
        %v689 = vadd.f32 %v651, %v661
        %v690 = vadd.f32 %v652, %v661
        %v691 = vadd.f32 %v653, %v661
        %v692 = vadd.f32 %v654, %v661
        %v693 = vadd.f32 %v655, %v661
        %v694 = vadd.f32 %v656, %v661
        %v695 = vld [vmem:[#allocation5] sm:$0xff]
        %v696 = vld [vmem:[#allocation5 + $0x8] sm:$0xff]
        %v697 = vld [vmem:[#allocation5 + $0x10] sm:$0xff]
        %v698 = vld [vmem:[#allocation5 + $0x18] sm:$0xff]
        %v699 = vld [vmem:[#allocation5 + $0x20] sm:$0xff]
        %v700 = vld [vmem:[#allocation5 + $0x28] sm:$0xff]
        %v701 = vld [vmem:[#allocation5 + $0x30] sm:$0xff]
        %v702 = vld [vmem:[#allocation5 + $0x38] sm:$0xff]
        %v703 = vld [vmem:[#allocation5 + $0x40] sm:$0xff]
        %v704 = vld [vmem:[#allocation5 + $0x48] sm:$0xff]
        %v705 = vld [vmem:[#allocation5 + $0x50] sm:$0xff]
        %v706 = vld [vmem:[#allocation5 + $0x58] sm:$0xff]
        %v707 = vld [vmem:[#allocation5 + $0x60] sm:$0xff]
        %v708 = vld [vmem:[#allocation5 + $0x68] sm:$0xff]
        %v709 = vld [vmem:[#allocation5 + $0x70] sm:$0xff]
        %v710 = vld [vmem:[#allocation5 + $0x78] sm:$0xff]
        %v711 = vld [vmem:[#allocation5 + $0x80] sm:$0xff]
        %v712 = vld [vmem:[#allocation5 + $0x88] sm:$0xff]
        %v713 = vld [vmem:[#allocation5 + $0x90] sm:$0xff]
        %v714 = vld [vmem:[#allocation5 + $0x98] sm:$0xff]
        %v715 = vld [vmem:[#allocation5 + $0xa0] sm:$0xff]
        %v716 = vld [vmem:[#allocation5 + $0xa8] sm:$0xff]
        %v717 = vld [vmem:[#allocation5 + $0xb0] sm:$0xff]
        %v718 = vld [vmem:[#allocation5 + $0xb8] sm:$0xff]
        %v719 = vld [vmem:[#allocation5 + $0xc0] sm:$0xff]
        %v720 = vld [vmem:[#allocation5 + $0xc8] sm:$0xff]
        %v721 = vld [vmem:[#allocation5 + $0xd0] sm:$0xff]
        %v722 = vld [vmem:[#allocation5 + $0xd8] sm:$0xff]
        %v723 = vld [vmem:[#allocation5 + $0xe0] sm:$0xff]
        %v724 = vld [vmem:[#allocation5 + $0xe8] sm:$0xff]
        %v725 = vld [vmem:[#allocation5 + $0xf0] sm:$0xff]
        %v726 = vld [vmem:[#allocation5 + $0xf8] sm:$0xff]
        %v727 = vpack.c.bf16 %v664, %v663
        %v728 = vpack.c.bf16 %v666, %v665
        %v729 = vpack.c.bf16 %v668, %v667
        %v730 = vpack.c.bf16 %v670, %v669
        %v731 = vpack.c.bf16 %v672, %v671
        %v732 = vpack.c.bf16 %v674, %v673
        %v733 = vpack.c.bf16 %v676, %v675
        %v734 = vpack.c.bf16 %v678, %v677
        %v735 = vpack.c.bf16 %v680, %v679
        %v736 = vpack.c.bf16 %v682, %v681
        %v737 = vpack.c.bf16 %v684, %v683
        %v738 = vpack.c.bf16 %v686, %v685
        %v739 = vpack.c.bf16 %v688, %v687
        %v740 = vpack.c.bf16 %v690, %v689
        %v741 = vpack.c.bf16 %v692, %v691
        %v742 = vpack.c.bf16 %v694, %v693
        %v743 = vpack.c.bf16 %v697, %v695
        %v744 = vpack.c.bf16 %v698, %v696
        %v745 = vpack.c.bf16 %v701, %v699
        %v746 = vpack.c.bf16 %v702, %v700
        %v747 = vpack.c.bf16 %v705, %v703
        %v748 = vpack.c.bf16 %v706, %v704
        %v749 = vpack.c.bf16 %v709, %v707
        %v750 = vpack.c.bf16 %v710, %v708
        %v751 = vpack.c.bf16 %v713, %v711
        %v752 = vpack.c.bf16 %v714, %v712
        %v753 = vpack.c.bf16 %v717, %v715
        %v754 = vpack.c.bf16 %v718, %v716
        %v755 = vpack.c.bf16 %v721, %v719
        %v756 = vpack.c.bf16 %v722, %v720
        %v757 = vpack.c.bf16 %v725, %v723
        %v758 = vpack.c.bf16 %v726, %v724
        %759 = vmatprep.subr.bf16.mxu0 %v744
        %760 = vmatpush1.bf16.msra.mxu0 %v743
        %761 = vmatprep.subr.bf16.mxu0 %v746
        %762 = vmatpush1.bf16.msra.mxu0 %v745
        %763 = vmatprep.subr.bf16.mxu0 %v748
        %764 = vmatpush1.bf16.msra.mxu0 %v747
        %765 = vmatprep.subr.bf16.mxu0 %v750
        %766 = vmatpush1.bf16.msra.mxu0 %v749
        %767 = vmatprep.subr.bf16.mxu0 %v752
        %768 = vmatpush1.bf16.msra.mxu0 %v751
        %769 = vmatprep.subr.bf16.mxu0 %v754
        %770 = vmatpush1.bf16.msra.mxu0 %v753
        %771 = vmatprep.subr.bf16.mxu0 %v756
        %772 = vmatpush1.bf16.msra.mxu0 %v755
        %773 = vmatprep.subr.bf16.mxu0 %v758
        %774 = vmatpush1.bf16.msra.mxu0 %v757
        %775 = vmatprep.subr.bf16.mxu0 0
        %776 = vmatpush1.bf16.msra.mxu0 0
        %777 = vmatprep.subr.bf16.mxu0 0
        %778 = vmatpush1.bf16.msra.mxu0 0
        %779 = vmatprep.subr.bf16.mxu0 0
        %780 = vmatpush1.bf16.msra.mxu0 0
        %781 = vmatprep.subr.bf16.mxu0 0
        %782 = vmatpush1.bf16.msra.mxu0 0
        %783 = vmatprep.subr.bf16.mxu0 0
        %784 = vmatpush1.bf16.msra.mxu0 0
        %785 = vmatprep.subr.bf16.mxu0 0
        %786 = vmatpush1.bf16.msra.mxu0 0
        %787 = vmatprep.subr.bf16.mxu0 0
        %788 = vmatpush1.bf16.msra.mxu0 0
        %789 = vmatprep.subr.bf16.mxu0 0
        %790 = vmatpush1.bf16.msra.mxu0 0
        %791 = vmatprep.mubr.bf16.mxu0 0
        %792 = vmatmul.mubr.bf16.gmra.mrb[0].mxu0 %v727
        %v793 = vpop.f32.mrb[0].mxu0
        %v794 = vadd.f32 0.0, %v793
        %v795 = vpop.f32.mrb[0].mxu0
        %v796 = vadd.f32 0.0, %v795
        %v797 = vpop.f32.mrb[0].mxu0
        %v798 = vadd.f32 0.0, %v797
        %v799 = vpop.f32.mrb[0].mxu0
        %v800 = vadd.f32 0.0, %v799
        %801 = vmatprep.mubr.bf16.mxu0 0
        %802 = vmatmul.mubr.bf16.gmra.mrb[0].mxu0 %v728
        %v803 = vpop.f32.mrb[0].mxu0
        %v804 = vadd.f32 0.0, %v803
        %v805 = vpop.f32.mrb[0].mxu0
        %v806 = vadd.f32 0.0, %v805
        %v807 = vpop.f32.mrb[0].mxu0
        %v808 = vadd.f32 0.0, %v807
        %v809 = vpop.f32.mrb[0].mxu0
        %v810 = vadd.f32 0.0, %v809
        %811 = vmatprep.mubr.bf16.mxu0 0
        %812 = vmatmul.mubr.bf16.gmra.mrb[0].mxu0 %v729
        %v813 = vpop.f32.mrb[0].mxu0
        %v814 = vadd.f32 0.0, %v813
        %v815 = vpop.f32.mrb[0].mxu0
        %v816 = vadd.f32 0.0, %v815
        %v817 = vpop.f32.mrb[0].mxu0
        %v818 = vadd.f32 0.0, %v817
        %v819 = vpop.f32.mrb[0].mxu0
        %v820 = vadd.f32 0.0, %v819
        %821 = vmatprep.mubr.bf16.mxu0 0
        %822 = vmatmul.mubr.bf16.gmra.mrb[0].mxu0 %v730
        %v823 = vpop.f32.mrb[0].mxu0
        %v824 = vadd.f32 0.0, %v823
        %v825 = vpop.f32.mrb[0].mxu0
        %v826 = vadd.f32 0.0, %v825
        %v827 = vpop.f32.mrb[0].mxu0
        %v828 = vadd.f32 0.0, %v827
        %v829 = vpop.f32.mrb[0].mxu0
        %v830 = vadd.f32 0.0, %v829
        %831 = vmatprep.mubr.bf16.mxu0 0
        %832 = vmatmul.mubr.bf16.gmra.mrb[0].mxu0 %v731
        %v833 = vpop.f32.mrb[0].mxu0
        %v834 = vadd.f32 0.0, %v833
        %v835 = vpop.f32.mrb[0].mxu0
        %v836 = vadd.f32 0.0, %v835
        %v837 = vpop.f32.mrb[0].mxu0
        %v838 = vadd.f32 0.0, %v837
        %v839 = vpop.f32.mrb[0].mxu0
        %v840 = vadd.f32 0.0, %v839
        %841 = vmatprep.mubr.bf16.mxu0 0
        %842 = vmatmul.mubr.bf16.gmra.mrb[0].mxu0 %v732
        %v843 = vpop.f32.mrb[0].mxu0
        %v844 = vadd.f32 0.0, %v843
        %v845 = vpop.f32.mrb[0].mxu0
        %v846 = vadd.f32 0.0, %v845
        %v847 = vpop.f32.mrb[0].mxu0
        %v848 = vadd.f32 0.0, %v847
        %v849 = vpop.f32.mrb[0].mxu0
        %v850 = vadd.f32 0.0, %v849
        %851 = vmatprep.mubr.bf16.mxu0 0
        %852 = vmatmul.mubr.bf16.gmra.mrb[0].mxu0 %v733
        %v853 = vpop.f32.mrb[0].mxu0
        %v854 = vadd.f32 0.0, %v853
        %v855 = vpop.f32.mrb[0].mxu0
        %v856 = vadd.f32 0.0, %v855
        %v857 = vpop.f32.mrb[0].mxu0
        %v858 = vadd.f32 0.0, %v857
        %v859 = vpop.f32.mrb[0].mxu0
        %v860 = vadd.f32 0.0, %v859
        %861 = vmatprep.mubr.bf16.mxu0 0
        %862 = vmatmul.mubr.bf16.gmra.mrb[0].mxu0 %v734
        %v863 = vpop.f32.mrb[0].mxu0
        %v864 = vadd.f32 0.0, %v863
        %v865 = vpop.f32.mrb[0].mxu0
        %v866 = vadd.f32 0.0, %v865
        %v867 = vpop.f32.mrb[0].mxu0
        %v868 = vadd.f32 0.0, %v867
        %v869 = vpop.f32.mrb[0].mxu0
        %v870 = vadd.f32 0.0, %v869
        %871 = vmatprep.mubr.bf16.mxu0 0
        %872 = vmatmul.mubr.bf16.gmra.mrb[0].mxu0 %v735
        %v873 = vpop.f32.mrb[0].mxu0
        %v874 = vadd.f32 0.0, %v873
        %v875 = vpop.f32.mrb[0].mxu0
        %v876 = vadd.f32 0.0, %v875
        %v877 = vpop.f32.mrb[0].mxu0
        %v878 = vadd.f32 0.0, %v877
        %v879 = vpop.f32.mrb[0].mxu0
        %v880 = vadd.f32 0.0, %v879
        %881 = vmatprep.mubr.bf16.mxu0 0
        %882 = vmatmul.mubr.bf16.gmra.mrb[0].mxu0 %v736
        %v883 = vpop.f32.mrb[0].mxu0
        %v884 = vadd.f32 0.0, %v883
        %v885 = vpop.f32.mrb[0].mxu0
        %v886 = vadd.f32 0.0, %v885
        %v887 = vpop.f32.mrb[0].mxu0
        %v888 = vadd.f32 0.0, %v887
        %v889 = vpop.f32.mrb[0].mxu0
        %v890 = vadd.f32 0.0, %v889
        %891 = vmatprep.mubr.bf16.mxu0 0
        %892 = vmatmul.mubr.bf16.gmra.mrb[0].mxu0 %v737
        %v893 = vpop.f32.mrb[0].mxu0
        %v894 = vadd.f32 0.0, %v893
        %v895 = vpop.f32.mrb[0].mxu0
        %v896 = vadd.f32 0.0, %v895
        %v897 = vpop.f32.mrb[0].mxu0
        %v898 = vadd.f32 0.0, %v897
        %v899 = vpop.f32.mrb[0].mxu0
        %v900 = vadd.f32 0.0, %v899
        %901 = vmatprep.mubr.bf16.mxu0 0
        %902 = vmatmul.mubr.bf16.gmra.mrb[0].mxu0 %v738
        %v903 = vpop.f32.mrb[0].mxu0
        %v904 = vadd.f32 0.0, %v903
        %v905 = vpop.f32.mrb[0].mxu0
        %v906 = vadd.f32 0.0, %v905
        %v907 = vpop.f32.mrb[0].mxu0
        %v908 = vadd.f32 0.0, %v907
        %v909 = vpop.f32.mrb[0].mxu0
        %v910 = vadd.f32 0.0, %v909
        %911 = vmatprep.mubr.bf16.mxu0 0
        %912 = vmatmul.mubr.bf16.gmra.mrb[0].mxu0 %v739
        %v913 = vpop.f32.mrb[0].mxu0
        %v914 = vadd.f32 0.0, %v913
        %v915 = vpop.f32.mrb[0].mxu0
        %v916 = vadd.f32 0.0, %v915
        %v917 = vpop.f32.mrb[0].mxu0
        %v918 = vadd.f32 0.0, %v917
        %v919 = vpop.f32.mrb[0].mxu0
        %v920 = vadd.f32 0.0, %v919
        %921 = vmatprep.mubr.bf16.mxu0 0
        %922 = vmatmul.mubr.bf16.gmra.mrb[0].mxu0 %v740
        %v923 = vpop.f32.mrb[0].mxu0
        %v924 = vadd.f32 0.0, %v923
        %v925 = vpop.f32.mrb[0].mxu0
        %v926 = vadd.f32 0.0, %v925
        %v927 = vpop.f32.mrb[0].mxu0
        %v928 = vadd.f32 0.0, %v927
        %v929 = vpop.f32.mrb[0].mxu0
        %v930 = vadd.f32 0.0, %v929
        %931 = vmatprep.mubr.bf16.mxu0 0
        %932 = vmatmul.mubr.bf16.gmra.mrb[0].mxu0 %v741
        %v933 = vpop.f32.mrb[0].mxu0
        %v934 = vadd.f32 0.0, %v933
        %v935 = vpop.f32.mrb[0].mxu0
        %v936 = vadd.f32 0.0, %v935
        %v937 = vpop.f32.mrb[0].mxu0
        %v938 = vadd.f32 0.0, %v937
        %v939 = vpop.f32.mrb[0].mxu0
        %v940 = vadd.f32 0.0, %v939
        %941 = vmatprep.mubr.bf16.mxu0 0
        %942 = vmatmul.mubr.bf16.gmra.mrb[0].mxu0 %v742
        %v943 = vpop.f32.mrb[0].mxu0
        %v944 = vadd.f32 0.0, %v943
        %v945 = vpop.f32.mrb[0].mxu0
        %v946 = vadd.f32 0.0, %v945
        %v947 = vpop.f32.mrb[0].mxu0
        %v948 = vadd.f32 0.0, %v947
        %v949 = vpop.f32.mrb[0].mxu0
        %v950 = vadd.f32 0.0, %v949
        %951 = vdwg.mxu0
        %v952 = vmul.f32 %v794, 0.25
        %v953 = vmul.f32 %v798, 0.25
        %v954 = vmul.f32 %v804, 0.25
        %v955 = vmul.f32 %v808, 0.25
        %v956 = vmul.f32 %v814, 0.25
        %v957 = vmul.f32 %v818, 0.25
        %v958 = vmul.f32 %v824, 0.25
        %v959 = vmul.f32 %v828, 0.25
        %v960 = vmul.f32 %v834, 0.25
        %v961 = vmul.f32 %v838, 0.25
        %v962 = vmul.f32 %v844, 0.25
        %v963 = vmul.f32 %v848, 0.25
        %v964 = vmul.f32 %v854, 0.25
        %v965 = vmul.f32 %v858, 0.25
        %v966 = vmul.f32 %v864, 0.25
        %v967 = vmul.f32 %v868, 0.25
        %v968 = vmul.f32 %v874, 0.25
        %v969 = vmul.f32 %v878, 0.25
        %v970 = vmul.f32 %v884, 0.25
        %v971 = vmul.f32 %v888, 0.25
        %v972 = vmul.f32 %v894, 0.25
        %v973 = vmul.f32 %v898, 0.25
        %v974 = vmul.f32 %v904, 0.25
        %v975 = vmul.f32 %v908, 0.25
        %v976 = vmul.f32 %v914, 0.25
        %v977 = vmul.f32 %v918, 0.25
        %v978 = vmul.f32 %v924, 0.25
        %v979 = vmul.f32 %v928, 0.25
        %v980 = vmul.f32 %v934, 0.25
        %v981 = vmul.f32 %v938, 0.25
        %v982 = vmul.f32 %v944, 0.25
        %v983 = vmul.f32 %v948, 0.25
        %v984 = vlaneseq
        %v985 = vshrl.u32 %v984, 7
        %v986 = vadd.s32 %v985, 8
        %v987 = vadd.s32 %v985, 16
        %v988 = vadd.s32 %v985, 24
        %v989 = vadd.s32 %v985, 32
        %v990 = vadd.s32 %v985, 40
        %v991 = vadd.s32 %v985, 48
        %v992 = vadd.s32 %v985, 56
        %v993 = vlaneseq
        %v994 = vand.u32 %v993, 127
        %v995 = vadd.s32 %v994, 128
        %v996 = vmul.u32 %v985, 4
        %v997 = vmul.u32 %v986, 4
        %v998 = vmul.u32 %v987, 4
        %v999 = vmul.u32 %v988, 4
        %v1000 = vmul.u32 %v989, 4
        %v1001 = vmul.u32 %v990, 4
        %v1002 = vmul.u32 %v991, 4
        %v1003 = vmul.u32 %v992, 4
        %vm1004 = vcmp.ge.s32.totalorder %v994, %v996
        %vm1005 = vcmp.ge.s32.totalorder %v995, %v996
        %vm1006 = vcmp.ge.s32.totalorder %v994, %v997
        %vm1007 = vcmp.ge.s32.totalorder %v995, %v997
        %vm1008 = vcmp.ge.s32.totalorder %v994, %v998
        %vm1009 = vcmp.ge.s32.totalorder %v995, %v998
        %vm1010 = vcmp.ge.s32.totalorder %v994, %v999
        %vm1011 = vcmp.ge.s32.totalorder %v995, %v999
        %vm1012 = vcmp.ge.s32.totalorder %v994, %v1000
        %vm1013 = vcmp.ge.s32.totalorder %v995, %v1000
        %vm1014 = vcmp.ge.s32.totalorder %v994, %v1001
        %vm1015 = vcmp.ge.s32.totalorder %v995, %v1001
        %vm1016 = vcmp.ge.s32.totalorder %v994, %v1002
        %vm1017 = vcmp.ge.s32.totalorder %v995, %v1002
        %vm1018 = vcmp.ge.s32.totalorder %v994, %v1003
        %vm1019 = vcmp.ge.s32.totalorder %v995, %v1003
        %v1020 = vadd.s32 %v985, 1
        %v1021 = vadd.s32 %v986, 1
        %v1022 = vadd.s32 %v987, 1
        %v1023 = vadd.s32 %v988, 1
        %v1024 = vadd.s32 %v989, 1
        %v1025 = vadd.s32 %v990, 1
        %v1026 = vadd.s32 %v991, 1
        %v1027 = vadd.s32 %v992, 1
        %v1028 = vmul.u32 %v1020, 4
        %v1029 = vmul.u32 %v1021, 4
        %v1030 = vmul.u32 %v1022, 4
        %v1031 = vmul.u32 %v1023, 4
        %v1032 = vmul.u32 %v1024, 4
        %v1033 = vmul.u32 %v1025, 4
        %v1034 = vmul.u32 %v1026, 4
        %v1035 = vmul.u32 %v1027, 4
        %vm1036 = vcmp.lt.s32.totalorder %v994, %v1028
        %vm1037 = vcmp.lt.s32.totalorder %v995, %v1028
        %vm1038 = vcmp.lt.s32.totalorder %v994, %v1029
        %vm1039 = vcmp.lt.s32.totalorder %v995, %v1029
        %vm1040 = vcmp.lt.s32.totalorder %v994, %v1030
        %vm1041 = vcmp.lt.s32.totalorder %v995, %v1030
        %vm1042 = vcmp.lt.s32.totalorder %v994, %v1031
        %vm1043 = vcmp.lt.s32.totalorder %v995, %v1031
        %vm1044 = vcmp.lt.s32.totalorder %v994, %v1032
        %vm1045 = vcmp.lt.s32.totalorder %v995, %v1032
        %vm1046 = vcmp.lt.s32.totalorder %v994, %v1033
        %vm1047 = vcmp.lt.s32.totalorder %v995, %v1033
        %vm1048 = vcmp.lt.s32.totalorder %v994, %v1034
        %vm1049 = vcmp.lt.s32.totalorder %v995, %v1034
        %vm1050 = vcmp.lt.s32.totalorder %v994, %v1035
        %vm1051 = vcmp.lt.s32.totalorder %v995, %v1035
        %vm1052 = vmand %vm1004, %vm1036
        %vm1053 = vmand %vm1005, %vm1037
        %vm1054 = vmand %vm1006, %vm1038
        %vm1055 = vmand %vm1007, %vm1039
        %vm1056 = vmand %vm1008, %vm1040
        %vm1057 = vmand %vm1009, %vm1041
        %vm1058 = vmand %vm1010, %vm1042
        %vm1059 = vmand %vm1011, %vm1043
        %vm1060 = vmand %vm1012, %vm1044
        %vm1061 = vmand %vm1013, %vm1045
        %vm1062 = vmand %vm1014, %vm1046
        %vm1063 = vmand %vm1015, %vm1047
        %vm1064 = vmand %vm1016, %vm1048
        %vm1065 = vmand %vm1017, %vm1049
        %vm1066 = vmand %vm1018, %vm1050
        %vm1067 = vmand %vm1019, %vm1051
        %v1068 = vsel %vm1052, 0.25, 0.0
        %v1069 = vsel %vm1053, 0.25, 0.0
        %v1070 = vsel %vm1054, 0.25, 0.0
        %v1071 = vsel %vm1055, 0.25, 0.0
        %v1072 = vsel %vm1056, 0.25, 0.0
        %v1073 = vsel %vm1057, 0.25, 0.0
        %v1074 = vsel %vm1058, 0.25, 0.0
        %v1075 = vsel %vm1059, 0.25, 0.0
        %v1076 = vsel %vm1060, 0.25, 0.0
        %v1077 = vsel %vm1061, 0.25, 0.0
        %v1078 = vsel %vm1062, 0.25, 0.0
        %v1079 = vsel %vm1063, 0.25, 0.0
        %v1080 = vsel %vm1064, 0.25, 0.0
        %v1081 = vsel %vm1065, 0.25, 0.0
        %v1082 = vsel %vm1066, 0.25, 0.0
        %v1083 = vsel %vm1067, 0.25, 0.0
        %1084 = vmatprep.subr.mxu0 0.0
        %1085 = vmatpush1.msra.mxu0 %v952
        %1086 = vmatprep.subr.mxu0 0.0
        %1087 = vmatpush1.msra.mxu0 %v953
        %1088 = vmatprep.subr.mxu0 0.0
        %1089 = vmatpush1.msra.mxu0 %v954
        %1090 = vmatprep.subr.mxu0 0.0
        %1091 = vmatpush1.msra.mxu0 %v955
        %1092 = vmatprep.subr.mxu0 0.0
        %1093 = vmatpush1.msra.mxu0 %v956
        %1094 = vmatprep.subr.mxu0 0.0
        %1095 = vmatpush1.msra.mxu0 %v957
        %1096 = vmatprep.subr.mxu0 0.0
        %1097 = vmatpush1.msra.mxu0 %v958
        %1098 = vmatprep.subr.mxu0 0.0
        %1099 = vmatpush1.msra.mxu0 %v959
        %1100 = vmatprep.subr.mxu0 0.0
        %1101 = vmatpush1.msra.mxu0 %v960
        %1102 = vmatprep.subr.mxu0 0.0
        %1103 = vmatpush1.msra.mxu0 %v961
        %1104 = vmatprep.subr.mxu0 0.0
        %1105 = vmatpush1.msra.mxu0 %v962
        %1106 = vmatprep.subr.mxu0 0.0
        %1107 = vmatpush1.msra.mxu0 %v963
        %1108 = vmatprep.subr.mxu0 0.0
        %1109 = vmatpush1.msra.mxu0 %v964
        %1110 = vmatprep.subr.mxu0 0.0
        %1111 = vmatpush1.msra.mxu0 %v965
        %1112 = vmatprep.subr.mxu0 0.0
        %1113 = vmatpush1.msra.mxu0 %v966
        %1114 = vmatprep.subr.mxu0 0.0
        %1115 = vmatpush1.msra.mxu0 %v967
        %1116 = vmatprep.subr.mxu0 0.0
        %1117 = vmatpush1.msra.mxu0 %v968
        %1118 = vmatprep.subr.mxu0 0.0
        %1119 = vmatpush1.msra.mxu0 %v969
        %1120 = vmatprep.subr.mxu0 0.0
        %1121 = vmatpush1.msra.mxu0 %v970
        %1122 = vmatprep.subr.mxu0 0.0
        %1123 = vmatpush1.msra.mxu0 %v971
        %1124 = vmatprep.subr.mxu0 0.0
        %1125 = vmatpush1.msra.mxu0 %v972
        %1126 = vmatprep.subr.mxu0 0.0
        %1127 = vmatpush1.msra.mxu0 %v973
        %1128 = vmatprep.subr.mxu0 0.0
        %1129 = vmatpush1.msra.mxu0 %v974
        %1130 = vmatprep.subr.mxu0 0.0
        %1131 = vmatpush1.msra.mxu0 %v975
        %1132 = vmatprep.subr.mxu0 0.0
        %1133 = vmatpush1.msra.mxu0 %v976
        %1134 = vmatprep.subr.mxu0 0.0
        %1135 = vmatpush1.msra.mxu0 %v977
        %1136 = vmatprep.subr.mxu0 0.0
        %1137 = vmatpush1.msra.mxu0 %v978
        %1138 = vmatprep.subr.mxu0 0.0
        %1139 = vmatpush1.msra.mxu0 %v979
        %1140 = vmatprep.subr.mxu0 0.0
        %1141 = vmatpush1.msra.mxu0 %v980
        %1142 = vmatprep.subr.mxu0 0.0
        %1143 = vmatpush1.msra.mxu0 %v981
        %1144 = vmatprep.subr.mxu0 0.0
        %1145 = vmatpush1.msra.mxu0 %v982
        %1146 = vmatprep.subr.mxu0 0.0
        %1147 = vmatpush1.msra.mxu0 %v983
        %1148 = vmatprep.mubr.f32.mxu0 %v1069
        %1149 = vmatmul.mubr.f32.gmra.mrb[0].mxu0 %v1068
        %v1150 = vpop.f32.mrb[0].mxu0
        %v1151 = vadd.f32 0.0, %v1150
        %v1152 = vpop.f32.mrb[0].mxu0
        %1153 = vmatprep.mubr.f32.mxu0 %v1071
        %1154 = vmatmul.mubr.f32.gmra.mrb[0].mxu0 %v1070
        %v1155 = vpop.f32.mrb[0].mxu0
        %v1156 = vadd.f32 0.0, %v1155
        %v1157 = vpop.f32.mrb[0].mxu0
        %1158 = vmatprep.mubr.f32.mxu0 %v1073
        %1159 = vmatmul.mubr.f32.gmra.mrb[0].mxu0 %v1072
        %v1160 = vpop.f32.mrb[0].mxu0
        %v1161 = vadd.f32 0.0, %v1160
        %v1162 = vpop.f32.mrb[0].mxu0
        %1163 = vmatprep.mubr.f32.mxu0 %v1075
        %1164 = vmatmul.mubr.f32.gmra.mrb[0].mxu0 %v1074
        %v1165 = vpop.f32.mrb[0].mxu0
        %v1166 = vadd.f32 0.0, %v1165
        %v1167 = vpop.f32.mrb[0].mxu0
        %1168 = vmatprep.mubr.f32.mxu0 %v1077
        %1169 = vmatmul.mubr.f32.gmra.mrb[0].mxu0 %v1076
        %v1170 = vpop.f32.mrb[0].mxu0
        %v1171 = vadd.f32 0.0, %v1170
        %v1172 = vpop.f32.mrb[0].mxu0
        %1173 = vmatprep.mubr.f32.mxu0 %v1079
        %1174 = vmatmul.mubr.f32.gmra.mrb[0].mxu0 %v1078
        %v1175 = vpop.f32.mrb[0].mxu0
        %v1176 = vadd.f32 0.0, %v1175
        %v1177 = vpop.f32.mrb[0].mxu0
        %1178 = vmatprep.mubr.f32.mxu0 %v1081
        %1179 = vmatmul.mubr.f32.gmra.mrb[0].mxu0 %v1080
        %v1180 = vpop.f32.mrb[0].mxu0
        %v1181 = vadd.f32 0.0, %v1180
        %v1182 = vpop.f32.mrb[0].mxu0
        %1183 = vmatprep.mubr.f32.mxu0 %v1083
        %1184 = vmatmul.mubr.f32.gmra.mrb[0].mxu0 %v1082
        %v1185 = vpop.f32.mrb[0].mxu0
        %v1186 = vadd.f32 0.0, %v1185
        %v1187 = vpop.f32.mrb[0].mxu0
        %1188 = vdwg.mxu0
        %1189 = vmatprep.subr.mxu0 0.0
        %1190 = vmatpush1.msra.mxu0 %v796
        %1191 = vmatprep.subr.mxu0 0.0
        %1192 = vmatpush1.msra.mxu0 %v800
        %1193 = vmatprep.subr.mxu0 0.0
        %1194 = vmatpush1.msra.mxu0 %v806
        %1195 = vmatprep.subr.mxu0 0.0
        %1196 = vmatpush1.msra.mxu0 %v810
        %1197 = vmatprep.subr.mxu0 0.0
        %1198 = vmatpush1.msra.mxu0 %v816
        %1199 = vmatprep.subr.mxu0 0.0
        %1200 = vmatpush1.msra.mxu0 %v820
        %1201 = vmatprep.subr.mxu0 0.0
        %1202 = vmatpush1.msra.mxu0 %v826
        %1203 = vmatprep.subr.mxu0 0.0
        %1204 = vmatpush1.msra.mxu0 %v830
        %1205 = vmatprep.subr.mxu0 0.0
        %1206 = vmatpush1.msra.mxu0 %v836
        %1207 = vmatprep.subr.mxu0 0.0
        %1208 = vmatpush1.msra.mxu0 %v840
        %1209 = vmatprep.subr.mxu0 0.0
        %1210 = vmatpush1.msra.mxu0 %v846
        %1211 = vmatprep.subr.mxu0 0.0
        %1212 = vmatpush1.msra.mxu0 %v850
        %1213 = vmatprep.subr.mxu0 0.0
        %1214 = vmatpush1.msra.mxu0 %v856
        %1215 = vmatprep.subr.mxu0 0.0
        %1216 = vmatpush1.msra.mxu0 %v860
        %1217 = vmatprep.subr.mxu0 0.0
        %1218 = vmatpush1.msra.mxu0 %v866
        %1219 = vmatprep.subr.mxu0 0.0
        %1220 = vmatpush1.msra.mxu0 %v870
        %1221 = vmatprep.subr.mxu0 0.0
        %1222 = vmatpush1.msra.mxu0 %v876
        %1223 = vmatprep.subr.mxu0 0.0
        %1224 = vmatpush1.msra.mxu0 %v880
        %1225 = vmatprep.subr.mxu0 0.0
        %1226 = vmatpush1.msra.mxu0 %v886
        %1227 = vmatprep.subr.mxu0 0.0
        %1228 = vmatpush1.msra.mxu0 %v890
        %1229 = vmatprep.subr.mxu0 0.0
        %1230 = vmatpush1.msra.mxu0 %v896
        %1231 = vmatprep.subr.mxu0 0.0
        %1232 = vmatpush1.msra.mxu0 %v900
        %1233 = vmatprep.subr.mxu0 0.0
        %1234 = vmatpush1.msra.mxu0 %v906
        %1235 = vmatprep.subr.mxu0 0.0
        %1236 = vmatpush1.msra.mxu0 %v910
        %1237 = vmatprep.subr.mxu0 0.0
        %1238 = vmatpush1.msra.mxu0 %v916
        %1239 = vmatprep.subr.mxu0 0.0
        %1240 = vmatpush1.msra.mxu0 %v920
        %1241 = vmatprep.subr.mxu0 0.0
        %1242 = vmatpush1.msra.mxu0 %v926
        %1243 = vmatprep.subr.mxu0 0.0
        %1244 = vmatpush1.msra.mxu0 %v930
        %1245 = vmatprep.subr.mxu0 0.0
        %1246 = vmatpush1.msra.mxu0 %v936
        %1247 = vmatprep.subr.mxu0 0.0
        %1248 = vmatpush1.msra.mxu0 %v940
        %1249 = vmatprep.subr.mxu0 0.0
        %1250 = vmatpush1.msra.mxu0 %v946
        %1251 = vmatprep.subr.mxu0 0.0
        %1252 = vmatpush1.msra.mxu0 %v950
        %1253 = vmatprep.mubr.f32.mxu0 %v1069
        %1254 = vmatmul.mubr.f32.gmra.mrb[0].mxu0 %v1068
        %v1255 = vpop.f32.mrb[0].mxu0
        %v1256 = vadd.f32 0.0, %v1255
        %v1257 = vpop.f32.mrb[0].mxu0
        %1258 = vmatprep.mubr.f32.mxu0 %v1071
        %1259 = vmatmul.mubr.f32.gmra.mrb[0].mxu0 %v1070
        %v1260 = vpop.f32.mrb[0].mxu0
        %v1261 = vadd.f32 0.0, %v1260
        %v1262 = vpop.f32.mrb[0].mxu0
        %1263 = vmatprep.mubr.f32.mxu0 %v1073
        %1264 = vmatmul.mubr.f32.gmra.mrb[0].mxu0 %v1072
        %v1265 = vpop.f32.mrb[0].mxu0
        %v1266 = vadd.f32 0.0, %v1265
        %v1267 = vpop.f32.mrb[0].mxu0
        %1268 = vmatprep.mubr.f32.mxu0 %v1075
        %1269 = vmatmul.mubr.f32.gmra.mrb[0].mxu0 %v1074
        %v1270 = vpop.f32.mrb[0].mxu0
        %v1271 = vadd.f32 0.0, %v1270
        %v1272 = vpop.f32.mrb[0].mxu0
        %1273 = vmatprep.mubr.f32.mxu0 %v1077
        %1274 = vmatmul.mubr.f32.gmra.mrb[0].mxu0 %v1076
        %v1275 = vpop.f32.mrb[0].mxu0
        %v1276 = vadd.f32 0.0, %v1275
        %v1277 = vpop.f32.mrb[0].mxu0
        %1278 = vmatprep.mubr.f32.mxu0 %v1079
        %1279 = vmatmul.mubr.f32.gmra.mrb[0].mxu0 %v1078
        %v1280 = vpop.f32.mrb[0].mxu0
        %v1281 = vadd.f32 0.0, %v1280
        %v1282 = vpop.f32.mrb[0].mxu0
        %1283 = vmatprep.mubr.f32.mxu0 %v1081
        %1284 = vmatmul.mubr.f32.gmra.mrb[0].mxu0 %v1080
        %v1285 = vpop.f32.mrb[0].mxu0
        %v1286 = vadd.f32 0.0, %v1285
        %v1287 = vpop.f32.mrb[0].mxu0
        %1288 = vmatprep.mubr.f32.mxu0 %v1083
        %1289 = vmatmul.mubr.f32.gmra.mrb[0].mxu0 %v1082
        %v1290 = vpop.f32.mrb[0].mxu0
        %v1291 = vadd.f32 0.0, %v1290
        %v1292 = vpop.f32.mrb[0].mxu0
        %1293 = vdwg.mxu0
        %vm1294 = vcmask 130048
        %v1296 = vsel %vm1294, %v1151, 0
        %v1299 = vsel %vm1294, %v1156, 0
        %v1302 = vsel %vm1294, %v1161, 0
        %v1305 = vsel %vm1294, %v1166, 0
        %v1308 = vsel %vm1294, %v1171, 0
        %v1311 = vsel %vm1294, %v1176, 0
        %v1314 = vsel %vm1294, %v1181, 0
        %v1317 = vsel %vm1294, %v1186, 0
        %v1320 = vsel %vm1294, %v1256, 0
        %v1323 = vsel %vm1294, %v1261, 0
        %v1326 = vsel %vm1294, %v1266, 0
        %v1329 = vsel %vm1294, %v1271, 0
        %v1332 = vsel %vm1294, %v1276, 0
        %v1335 = vsel %vm1294, %v1281, 0
        %v1338 = vsel %vm1294, %v1286, 0
        %v1341 = vsel %vm1294, %v1291, 0
        %1343 = vmatprep.subr.mxu0 0.0
        %1344 = vmatpush1.xpose.msra.mxu0 %v1320
        %1345 = vmatprep.subr.mxu0 0.0
        %1346 = vmatpush1.xpose.msra.mxu0 %v1323
        %1347 = vmatprep.subr.mxu0 0.0
        %1348 = vmatpush1.xpose.msra.mxu0 %v1326
        %1349 = vmatprep.subr.mxu0 0.0
        %1350 = vmatpush1.xpose.msra.mxu0 %v1329
        %1351 = vmatprep.subr.mxu0 0.0
        %1352 = vmatpush1.xpose.msra.mxu0 %v1332
        %1353 = vmatprep.subr.mxu0 0.0
        %1354 = vmatpush1.xpose.msra.mxu0 %v1335
        %1355 = vmatprep.subr.mxu0 0.0
        %1356 = vmatpush1.xpose.msra.mxu0 %v1338
        %1357 = vmatprep.subr.mxu0 0.0
        %1358 = vmatpush1.xpose.msra.mxu0 %v1341
        %1359 = vmatprep.subr.mxu0 0.0
        %1360 = vmatpush1.xpose.msra.mxu0 0.0
        %1361 = vmatprep.subr.mxu0 0.0
        %1362 = vmatpush1.xpose.msra.mxu0 0.0
        %1363 = vmatprep.subr.mxu0 0.0
        %1364 = vmatpush1.xpose.msra.mxu0 0.0
        %1365 = vmatprep.subr.mxu0 0.0
        %1366 = vmatpush1.xpose.msra.mxu0 0.0
        %1367 = vmatprep.subr.mxu0 0.0
        %1368 = vmatpush1.xpose.msra.mxu0 0.0
        %1369 = vmatprep.subr.mxu0 0.0
        %1370 = vmatpush1.xpose.msra.mxu0 0.0
        %1371 = vmatprep.subr.mxu0 0.0
        %1372 = vmatpush1.xpose.msra.mxu0 0.0
        %1373 = vmatprep.subr.mxu0 0.0
        %1374 = vmatpush1.xpose.msra.mxu0 0.0
        %1375 = vmatprep.subr.mxu0 0.0
        %1376 = vmatpush1.xpose.msra.mxu0 0.0
        %1377 = vmatprep.subr.mxu0 0.0
        %1378 = vmatpush1.xpose.msra.mxu0 0.0
        %1379 = vmatprep.subr.mxu0 0.0
        %1380 = vmatpush1.xpose.msra.mxu0 0.0
        %1381 = vmatprep.subr.mxu0 0.0
        %1382 = vmatpush1.xpose.msra.mxu0 0.0
        %1383 = vmatprep.subr.mxu0 0.0
        %1384 = vmatpush1.xpose.msra.mxu0 0.0
        %1385 = vmatprep.subr.mxu0 0.0
        %1386 = vmatpush1.xpose.msra.mxu0 0.0
        %1387 = vmatprep.subr.mxu0 0.0
        %1388 = vmatpush1.xpose.msra.mxu0 0.0
        %1389 = vmatprep.subr.mxu0 0.0
        %1390 = vmatpush1.xpose.msra.mxu0 0.0
        %1391 = vmatprep.subr.mxu0 0.0
        %1392 = vmatpush1.xpose.msra.mxu0 0.0
        %1393 = vmatprep.subr.mxu0 0.0
        %1394 = vmatpush1.xpose.msra.mxu0 0.0
        %1395 = vmatprep.subr.mxu0 0.0
        %1396 = vmatpush1.xpose.msra.mxu0 0.0
        %1397 = vmatprep.subr.mxu0 0.0
        %1398 = vmatpush1.xpose.msra.mxu0 0.0
        %1399 = vmatprep.subr.mxu0 0.0
        %1400 = vmatpush1.xpose.msra.mxu0 0.0
        %1401 = vmatprep.subr.mxu0 0.0
        %1402 = vmatpush1.xpose.msra.mxu0 0.0
        %1403 = vmatprep.subr.mxu0 0.0
        %1404 = vmatpush1.xpose.msra.mxu0 0.0
        %1405 = vmatprep.subr.mxu0 0.0
        %1406 = vmatpush1.xpose.msra.mxu0 0.0
        %1407 = vmatprep.mubr.f32.mxu0 0.0
        %1408 = vmatmul.mubr.f32.gmra.mrb[0].mxu0 %v1296
        %v1409 = vpop.f32.mrb[0].mxu0
        %v1410 = vadd.f32 0.0, %v1409
        %v1411 = vpop.f32.mrb[0].mxu0
        %1412 = vmatprep.mubr.f32.mxu0 0.0
        %1413 = vmatmul.mubr.f32.gmra.mrb[0].mxu0 %v1299
        %v1414 = vpop.f32.mrb[0].mxu0
        %v1415 = vadd.f32 0.0, %v1414
        %v1416 = vpop.f32.mrb[0].mxu0
        %1417 = vmatprep.mubr.f32.mxu0 0.0
        %1418 = vmatmul.mubr.f32.gmra.mrb[0].mxu0 %v1302
        %v1419 = vpop.f32.mrb[0].mxu0
        %v1420 = vadd.f32 0.0, %v1419
        %v1421 = vpop.f32.mrb[0].mxu0
        %1422 = vmatprep.mubr.f32.mxu0 0.0
        %1423 = vmatmul.mubr.f32.gmra.mrb[0].mxu0 %v1305
        %v1424 = vpop.f32.mrb[0].mxu0
        %v1425 = vadd.f32 0.0, %v1424
        %v1426 = vpop.f32.mrb[0].mxu0
        %1427 = vmatprep.mubr.f32.mxu0 0.0
        %1428 = vmatmul.mubr.f32.gmra.mrb[0].mxu0 %v1308
        %v1429 = vpop.f32.mrb[0].mxu0
        %v1430 = vadd.f32 0.0, %v1429
        %v1431 = vpop.f32.mrb[0].mxu0
        %1432 = vmatprep.mubr.f32.mxu0 0.0
        %1433 = vmatmul.mubr.f32.gmra.mrb[0].mxu0 %v1311
        %v1434 = vpop.f32.mrb[0].mxu0
        %v1435 = vadd.f32 0.0, %v1434
        %v1436 = vpop.f32.mrb[0].mxu0
        %1437 = vmatprep.mubr.f32.mxu0 0.0
        %1438 = vmatmul.mubr.f32.gmra.mrb[0].mxu0 %v1314
        %v1439 = vpop.f32.mrb[0].mxu0
        %v1440 = vadd.f32 0.0, %v1439
        %v1441 = vpop.f32.mrb[0].mxu0
        %1442 = vmatprep.mubr.f32.mxu0 0.0
        %1443 = vmatmul.mubr.f32.gmra.mrb[0].mxu0 %v1317
        %v1444 = vpop.f32.mrb[0].mxu0
        %v1445 = vadd.f32 0.0, %v1444
        %v1446 = vpop.f32.mrb[0].mxu0
        %1447 = vdwg.mxu0
        %vm1448 = vcmask 523264
        %v1449 = vsel %vm1448, %v1410, -inf
        %1450 = vmax.xlane.f32.xlu0 %v1449
        %v1451 = vpop.xlane.xlu0 %1450
        %v1452 = vsel %vm1448, %v1415, -inf
        %1453 = vmax.xlane.f32.xlu0 %v1452
        %v1454 = vpop.xlane.xlu0 %1453
        %v1455 = vsel %vm1448, %v1420, -inf
        %1456 = vmax.xlane.f32.xlu0 %v1455
        %v1457 = vpop.xlane.xlu0 %1456
        %v1458 = vsel %vm1448, %v1425, -inf
        %1459 = vmax.xlane.f32.xlu0 %v1458
        %v1460 = vpop.xlane.xlu0 %1459
        %v1461 = vsel %vm1448, %v1430, -inf
        %1462 = vmax.xlane.f32.xlu0 %v1461
        %v1463 = vpop.xlane.xlu0 %1462
        %v1464 = vsel %vm1448, %v1435, -inf
        %1465 = vmax.xlane.f32.xlu0 %v1464
        %v1466 = vpop.xlane.xlu0 %1465
        %v1467 = vsel %vm1448, %v1440, -inf
        %1468 = vmax.xlane.f32.xlu0 %v1467
        %v1469 = vpop.xlane.xlu0 %1468
        %v1470 = vsel %vm1448, %v1445, -inf
        %1471 = vmax.xlane.f32.xlu0 %v1470
        %v1472 = vpop.xlane.xlu0 %1471
        %v1473 = vsub.f32 %v1410, %v1451
        %v1474 = vsub.f32 %v1415, %v1454
        %v1475 = vsub.f32 %v1420, %v1457
        %v1476 = vsub.f32 %v1425, %v1460
        %v1477 = vsub.f32 %v1430, %v1463
        %v1478 = vsub.f32 %v1435, %v1466
        %v1479 = vsub.f32 %v1440, %v1469
        %v1480 = vsub.f32 %v1445, %v1472
        %v1481 = vmul.f32 %v1473, 1.442695
        %v1482 = vpow.pop %v1481
        %v1483 = vmul.f32 %v1474, 1.442695
        %v1484 = vpow.pop %v1483
        %v1485 = vmul.f32 %v1475, 1.442695
        %v1486 = vpow.pop %v1485
        %v1487 = vmul.f32 %v1476, 1.442695
        %v1488 = vpow.pop %v1487
        %v1489 = vmul.f32 %v1477, 1.442695
        %v1490 = vpow.pop %v1489
        %v1491 = vmul.f32 %v1478, 1.442695
        %v1492 = vpow.pop %v1491
        %v1493 = vmul.f32 %v1479, 1.442695
        %v1494 = vpow.pop %v1493
        %v1495 = vmul.f32 %v1480, 1.442695
        %v1496 = vpow.pop %v1495
        %v1497 = vsel %vm1448, %v1482, 0.0
        %1498 = vadd.xlane.f32.xlu0 %v1497
        %v1499 = vpop.xlane.xlu0 %1498
        %v1500 = vsel %vm1448, %v1484, 0.0
        %1501 = vadd.xlane.f32.xlu0 %v1500
        %v1502 = vpop.xlane.xlu0 %1501
        %v1503 = vsel %vm1448, %v1486, 0.0
        %1504 = vadd.xlane.f32.xlu0 %v1503
        %v1505 = vpop.xlane.xlu0 %1504
        %v1506 = vsel %vm1448, %v1488, 0.0
        %1507 = vadd.xlane.f32.xlu0 %v1506
        %v1508 = vpop.xlane.xlu0 %1507
        %v1509 = vsel %vm1448, %v1490, 0.0
        %1510 = vadd.xlane.f32.xlu0 %v1509
        %v1511 = vpop.xlane.xlu0 %1510
        %v1512 = vsel %vm1448, %v1492, 0.0
        %1513 = vadd.xlane.f32.xlu0 %v1512
        %v1514 = vpop.xlane.xlu0 %1513
        %v1515 = vsel %vm1448, %v1494, 0.0
        %1516 = vadd.xlane.f32.xlu0 %v1515
        %v1517 = vpop.xlane.xlu0 %1516
        %v1518 = vsel %vm1448, %v1496, 0.0
        %1519 = vadd.xlane.f32.xlu0 %v1518
        %v1520 = vpop.xlane.xlu0 %1519
        %v1521 = vrcp.pop %v1499
        %v1522 = vmul.f32 %v1482, %v1521
        %v1523 = vrcp.pop %v1502
        %v1524 = vmul.f32 %v1484, %v1523
        %v1525 = vrcp.pop %v1505
        %v1526 = vmul.f32 %v1486, %v1525
        %v1527 = vrcp.pop %v1508
        %v1528 = vmul.f32 %v1488, %v1527
        %v1529 = vrcp.pop %v1511
        %v1530 = vmul.f32 %v1490, %v1529
        %v1531 = vrcp.pop %v1514
        %v1532 = vmul.f32 %v1492, %v1531
        %v1533 = vrcp.pop %v1517
        %v1534 = vmul.f32 %v1494, %v1533
        %v1535 = vrcp.pop %v1520
        %v1536 = vmul.f32 %v1496, %v1535
        %1537 = vrot.lane.b32.xlu0 %v1151, 112
        %v1538 = vpop.permute.xlu0 %1537
        %1539 = vrot.lane.b32.xlu0 %v1156, 112
        %v1540 = vpop.permute.xlu0 %1539
        %1541 = vrot.lane.b32.xlu0 %v1161, 112
        %v1542 = vpop.permute.xlu0 %1541
        %1543 = vrot.lane.b32.xlu0 %v1166, 112
        %v1544 = vpop.permute.xlu0 %1543
        %1545 = vrot.lane.b32.xlu0 %v1171, 112
        %v1546 = vpop.permute.xlu0 %1545
        %1547 = vrot.lane.b32.xlu0 %v1176, 112
        %v1548 = vpop.permute.xlu0 %1547
        %1549 = vrot.lane.b32.xlu0 %v1181, 112
        %v1550 = vpop.permute.xlu0 %1549
        %1551 = vrot.lane.b32.xlu0 %v1186, 112
        %v1552 = vpop.permute.xlu0 %1551
        %1553 = vrot.lane.b32.xlu0 %v1256, 112
        %v1554 = vpop.permute.xlu0 %1553
        %1555 = vrot.lane.b32.xlu0 %v1261, 112
        %v1556 = vpop.permute.xlu0 %1555
        %1557 = vrot.lane.b32.xlu0 %v1266, 112
        %v1558 = vpop.permute.xlu0 %1557
        %1559 = vrot.lane.b32.xlu0 %v1271, 112
        %v1560 = vpop.permute.xlu0 %1559
        %1561 = vrot.lane.b32.xlu0 %v1276, 112
        %v1562 = vpop.permute.xlu0 %1561
        %1563 = vrot.lane.b32.xlu0 %v1281, 112
        %v1564 = vpop.permute.xlu0 %1563
        %1565 = vrot.lane.b32.xlu0 %v1286, 112
        %v1566 = vpop.permute.xlu0 %1565
        %1567 = vrot.lane.b32.xlu0 %v1291, 112
        %v1568 = vpop.permute.xlu0 %1567
        %v1569 = vsel %vm1294, %v1538, 0
        %v1571 = vsel %vm1294, %v1540, 0
        %v1573 = vsel %vm1294, %v1542, 0
        %v1575 = vsel %vm1294, %v1544, 0
        %v1577 = vsel %vm1294, %v1546, 0
        %v1579 = vsel %vm1294, %v1548, 0
        %v1581 = vsel %vm1294, %v1550, 0
        %v1583 = vsel %vm1294, %v1552, 0
        %v1585 = vsel %vm1294, %v1554, 0
        %v1587 = vsel %vm1294, %v1556, 0
        %v1589 = vsel %vm1294, %v1558, 0
        %v1591 = vsel %vm1294, %v1560, 0
        %v1593 = vsel %vm1294, %v1562, 0
        %v1595 = vsel %vm1294, %v1564, 0
        %v1597 = vsel %vm1294, %v1566, 0
        %v1599 = vsel %vm1294, %v1568, 0
        %1601 = vmatprep.subr.mxu0 0.0
        %1602 = vmatpush1.xpose.msra.mxu0 %v1585
        %1603 = vmatprep.subr.mxu0 0.0
        %1604 = vmatpush1.xpose.msra.mxu0 %v1587
        %1605 = vmatprep.subr.mxu0 0.0
        %1606 = vmatpush1.xpose.msra.mxu0 %v1589
        %1607 = vmatprep.subr.mxu0 0.0
        %1608 = vmatpush1.xpose.msra.mxu0 %v1591
        %1609 = vmatprep.subr.mxu0 0.0
        %1610 = vmatpush1.xpose.msra.mxu0 %v1593
        %1611 = vmatprep.subr.mxu0 0.0
        %1612 = vmatpush1.xpose.msra.mxu0 %v1595
        %1613 = vmatprep.subr.mxu0 0.0
        %1614 = vmatpush1.xpose.msra.mxu0 %v1597
        %1615 = vmatprep.subr.mxu0 0.0
        %1616 = vmatpush1.xpose.msra.mxu0 %v1599
        %1617 = vmatprep.subr.mxu0 0.0
        %1618 = vmatpush1.xpose.msra.mxu0 0.0
        %1619 = vmatprep.subr.mxu0 0.0
        %1620 = vmatpush1.xpose.msra.mxu0 0.0
        %1621 = vmatprep.subr.mxu0 0.0
        %1622 = vmatpush1.xpose.msra.mxu0 0.0
        %1623 = vmatprep.subr.mxu0 0.0
        %1624 = vmatpush1.xpose.msra.mxu0 0.0
        %1625 = vmatprep.subr.mxu0 0.0
        %1626 = vmatpush1.xpose.msra.mxu0 0.0
        %1627 = vmatprep.subr.mxu0 0.0
        %1628 = vmatpush1.xpose.msra.mxu0 0.0
        %1629 = vmatprep.subr.mxu0 0.0
        %1630 = vmatpush1.xpose.msra.mxu0 0.0
        %1631 = vmatprep.subr.mxu0 0.0
        %1632 = vmatpush1.xpose.msra.mxu0 0.0
        %1633 = vmatprep.subr.mxu0 0.0
        %1634 = vmatpush1.xpose.msra.mxu0 0.0
        %1635 = vmatprep.subr.mxu0 0.0
        %1636 = vmatpush1.xpose.msra.mxu0 0.0
        %1637 = vmatprep.subr.mxu0 0.0
        %1638 = vmatpush1.xpose.msra.mxu0 0.0
        %1639 = vmatprep.subr.mxu0 0.0
        %1640 = vmatpush1.xpose.msra.mxu0 0.0
        %1641 = vmatprep.subr.mxu0 0.0
        %1642 = vmatpush1.xpose.msra.mxu0 0.0
        %1643 = vmatprep.subr.mxu0 0.0
        %1644 = vmatpush1.xpose.msra.mxu0 0.0
        %1645 = vmatprep.subr.mxu0 0.0
        %1646 = vmatpush1.xpose.msra.mxu0 0.0
        %1647 = vmatprep.subr.mxu0 0.0
        %1648 = vmatpush1.xpose.msra.mxu0 0.0
        %1649 = vmatprep.subr.mxu0 0.0
        %1650 = vmatpush1.xpose.msra.mxu0 0.0
        %1651 = vmatprep.subr.mxu0 0.0
        %1652 = vmatpush1.xpose.msra.mxu0 0.0
        %1653 = vmatprep.subr.mxu0 0.0
        %1654 = vmatpush1.xpose.msra.mxu0 0.0
        %1655 = vmatprep.subr.mxu0 0.0
        %1656 = vmatpush1.xpose.msra.mxu0 0.0
        %1657 = vmatprep.subr.mxu0 0.0
        %1658 = vmatpush1.xpose.msra.mxu0 0.0
        %1659 = vmatprep.subr.mxu0 0.0
        %1660 = vmatpush1.xpose.msra.mxu0 0.0
        %1661 = vmatprep.subr.mxu0 0.0
        %1662 = vmatpush1.xpose.msra.mxu0 0.0
        %1663 = vmatprep.subr.mxu0 0.0
        %1664 = vmatpush1.xpose.msra.mxu0 0.0
        %1665 = vmatprep.mubr.f32.mxu0 0.0
        %1666 = vmatmul.mubr.f32.gmra.mrb[0].mxu0 %v1569
        %v1667 = vpop.f32.mrb[0].mxu0
        %v1668 = vadd.f32 0.0, %v1667
        %v1669 = vpop.f32.mrb[0].mxu0
        %1670 = vmatprep.mubr.f32.mxu0 0.0
        %1671 = vmatmul.mubr.f32.gmra.mrb[0].mxu0 %v1571
        %v1672 = vpop.f32.mrb[0].mxu0
        %v1673 = vadd.f32 0.0, %v1672
        %v1674 = vpop.f32.mrb[0].mxu0
        %1675 = vmatprep.mubr.f32.mxu0 0.0
        %1676 = vmatmul.mubr.f32.gmra.mrb[0].mxu0 %v1573
        %v1677 = vpop.f32.mrb[0].mxu0
        %v1678 = vadd.f32 0.0, %v1677
        %v1679 = vpop.f32.mrb[0].mxu0
        %1680 = vmatprep.mubr.f32.mxu0 0.0
        %1681 = vmatmul.mubr.f32.gmra.mrb[0].mxu0 %v1575
        %v1682 = vpop.f32.mrb[0].mxu0
        %v1683 = vadd.f32 0.0, %v1682
        %v1684 = vpop.f32.mrb[0].mxu0
        %1685 = vmatprep.mubr.f32.mxu0 0.0
        %1686 = vmatmul.mubr.f32.gmra.mrb[0].mxu0 %v1577
        %v1687 = vpop.f32.mrb[0].mxu0
        %v1688 = vadd.f32 0.0, %v1687
        %v1689 = vpop.f32.mrb[0].mxu0
        %1690 = vmatprep.mubr.f32.mxu0 0.0
        %1691 = vmatmul.mubr.f32.gmra.mrb[0].mxu0 %v1579
        %v1692 = vpop.f32.mrb[0].mxu0
        %v1693 = vadd.f32 0.0, %v1692
        %v1694 = vpop.f32.mrb[0].mxu0
        %1695 = vmatprep.mubr.f32.mxu0 0.0
        %1696 = vmatmul.mubr.f32.gmra.mrb[0].mxu0 %v1581
        %v1697 = vpop.f32.mrb[0].mxu0
        %v1698 = vadd.f32 0.0, %v1697
        %v1699 = vpop.f32.mrb[0].mxu0
        %1700 = vmatprep.mubr.f32.mxu0 0.0
        %1701 = vmatmul.mubr.f32.gmra.mrb[0].mxu0 %v1583
        %v1702 = vpop.f32.mrb[0].mxu0
        %v1703 = vadd.f32 0.0, %v1702
        %v1704 = vpop.f32.mrb[0].mxu0
        %1705 = vdwg.mxu0
        %v1706 = vsel %vm1448, %v1668, -inf
        %1707 = vmax.xlane.f32.xlu0 %v1706
        %v1708 = vpop.xlane.xlu0 %1707
        %v1709 = vsel %vm1448, %v1673, -inf
        %1710 = vmax.xlane.f32.xlu0 %v1709
        %v1711 = vpop.xlane.xlu0 %1710
        %v1712 = vsel %vm1448, %v1678, -inf
        %1713 = vmax.xlane.f32.xlu0 %v1712
        %v1714 = vpop.xlane.xlu0 %1713
        %v1715 = vsel %vm1448, %v1683, -inf
        %1716 = vmax.xlane.f32.xlu0 %v1715
        %v1717 = vpop.xlane.xlu0 %1716
        %v1718 = vsel %vm1448, %v1688, -inf
        %1719 = vmax.xlane.f32.xlu0 %v1718
        %v1720 = vpop.xlane.xlu0 %1719
        %v1721 = vsel %vm1448, %v1693, -inf
        %1722 = vmax.xlane.f32.xlu0 %v1721
        %v1723 = vpop.xlane.xlu0 %1722
        %v1724 = vsel %vm1448, %v1698, -inf
        %1725 = vmax.xlane.f32.xlu0 %v1724
        %v1726 = vpop.xlane.xlu0 %1725
        %v1727 = vsel %vm1448, %v1703, -inf
        %1728 = vmax.xlane.f32.xlu0 %v1727
        %v1729 = vpop.xlane.xlu0 %1728
        %v1730 = vsub.f32 %v1668, %v1708
        %v1731 = vsub.f32 %v1673, %v1711
        %v1732 = vsub.f32 %v1678, %v1714
        %v1733 = vsub.f32 %v1683, %v1717
        %v1734 = vsub.f32 %v1688, %v1720
        %v1735 = vsub.f32 %v1693, %v1723
        %v1736 = vsub.f32 %v1698, %v1726
        %v1737 = vsub.f32 %v1703, %v1729
        %v1738 = vmul.f32 %v1730, 1.442695
        %v1739 = vpow.pop %v1738
        %v1740 = vmul.f32 %v1731, 1.442695
        %v1741 = vpow.pop %v1740
        %v1742 = vmul.f32 %v1732, 1.442695
        %v1743 = vpow.pop %v1742
        %v1744 = vmul.f32 %v1733, 1.442695
        %v1745 = vpow.pop %v1744
        %v1746 = vmul.f32 %v1734, 1.442695
        %v1747 = vpow.pop %v1746
        %v1748 = vmul.f32 %v1735, 1.442695
        %v1749 = vpow.pop %v1748
        %v1750 = vmul.f32 %v1736, 1.442695
        %v1751 = vpow.pop %v1750
        %v1752 = vmul.f32 %v1737, 1.442695
        %v1753 = vpow.pop %v1752
        %v1754 = vsel %vm1448, %v1739, 0.0
        %1755 = vadd.xlane.f32.xlu0 %v1754
        %v1756 = vpop.xlane.xlu0 %1755
        %v1757 = vsel %vm1448, %v1741, 0.0
        %1758 = vadd.xlane.f32.xlu0 %v1757
        %v1759 = vpop.xlane.xlu0 %1758
        %v1760 = vsel %vm1448, %v1743, 0.0
        %1761 = vadd.xlane.f32.xlu0 %v1760
        %v1762 = vpop.xlane.xlu0 %1761
        %v1763 = vsel %vm1448, %v1745, 0.0
        %1764 = vadd.xlane.f32.xlu0 %v1763
        %v1765 = vpop.xlane.xlu0 %1764
        %v1766 = vsel %vm1448, %v1747, 0.0
        %1767 = vadd.xlane.f32.xlu0 %v1766
        %v1768 = vpop.xlane.xlu0 %1767
        %v1769 = vsel %vm1448, %v1749, 0.0
        %1770 = vadd.xlane.f32.xlu0 %v1769
        %v1771 = vpop.xlane.xlu0 %1770
        %v1772 = vsel %vm1448, %v1751, 0.0
        %1773 = vadd.xlane.f32.xlu0 %v1772
        %v1774 = vpop.xlane.xlu0 %1773
        %v1775 = vsel %vm1448, %v1753, 0.0
        %1776 = vadd.xlane.f32.xlu0 %v1775
        %v1777 = vpop.xlane.xlu0 %1776
        %v1778 = vrcp.pop %v1756
        %v1779 = vmul.f32 %v1739, %v1778
        %v1780 = vrcp.pop %v1759
        %v1781 = vmul.f32 %v1741, %v1780
        %v1782 = vrcp.pop %v1762
        %v1783 = vmul.f32 %v1743, %v1782
        %v1784 = vrcp.pop %v1765
        %v1785 = vmul.f32 %v1745, %v1784
        %v1786 = vrcp.pop %v1768
        %v1787 = vmul.f32 %v1747, %v1786
        %v1788 = vrcp.pop %v1771
        %v1789 = vmul.f32 %v1749, %v1788
        %v1790 = vrcp.pop %v1774
        %v1791 = vmul.f32 %v1751, %v1790
        %v1792 = vrcp.pop %v1777
        %v1793 = vmul.f32 %v1753, %v1792
        %1794 = vrot.lane.b32.xlu0 %v1151, 96
        %v1795 = vpop.permute.xlu0 %1794
        %1796 = vrot.lane.b32.xlu0 %v1156, 96
        %v1797 = vpop.permute.xlu0 %1796
        %1798 = vrot.lane.b32.xlu0 %v1161, 96
        %v1799 = vpop.permute.xlu0 %1798
        %1800 = vrot.lane.b32.xlu0 %v1166, 96
        %v1801 = vpop.permute.xlu0 %1800
        %1802 = vrot.lane.b32.xlu0 %v1171, 96
        %v1803 = vpop.permute.xlu0 %1802
        %1804 = vrot.lane.b32.xlu0 %v1176, 96
        %v1805 = vpop.permute.xlu0 %1804
        %1806 = vrot.lane.b32.xlu0 %v1181, 96
        %v1807 = vpop.permute.xlu0 %1806
        %1808 = vrot.lane.b32.xlu0 %v1186, 96
        %v1809 = vpop.permute.xlu0 %1808
        %1810 = vrot.lane.b32.xlu0 %v1256, 96
        %v1811 = vpop.permute.xlu0 %1810
        %1812 = vrot.lane.b32.xlu0 %v1261, 96
        %v1813 = vpop.permute.xlu0 %1812
        %1814 = vrot.lane.b32.xlu0 %v1266, 96
        %v1815 = vpop.permute.xlu0 %1814
        %1816 = vrot.lane.b32.xlu0 %v1271, 96
        %v1817 = vpop.permute.xlu0 %1816
        %1818 = vrot.lane.b32.xlu0 %v1276, 96
        %v1819 = vpop.permute.xlu0 %1818
        %1820 = vrot.lane.b32.xlu0 %v1281, 96
        %v1821 = vpop.permute.xlu0 %1820
        %1822 = vrot.lane.b32.xlu0 %v1286, 96
        %v1823 = vpop.permute.xlu0 %1822
        %1824 = vrot.lane.b32.xlu0 %v1291, 96
        %v1825 = vpop.permute.xlu0 %1824
        %v1826 = vsel %vm1294, %v1795, 0
        %v1828 = vsel %vm1294, %v1797, 0
        %v1830 = vsel %vm1294, %v1799, 0
        %v1832 = vsel %vm1294, %v1801, 0
        %v1834 = vsel %vm1294, %v1803, 0
        %v1836 = vsel %vm1294, %v1805, 0
        %v1838 = vsel %vm1294, %v1807, 0
        %v1840 = vsel %vm1294, %v1809, 0
        %v1842 = vsel %vm1294, %v1811, 0
        %v1844 = vsel %vm1294, %v1813, 0
        %v1846 = vsel %vm1294, %v1815, 0
        %v1848 = vsel %vm1294, %v1817, 0
        %v1850 = vsel %vm1294, %v1819, 0
        %v1852 = vsel %vm1294, %v1821, 0
        %v1854 = vsel %vm1294, %v1823, 0
        %v1856 = vsel %vm1294, %v1825, 0
        %1858 = vmatprep.subr.mxu0 0.0
        %1859 = vmatpush1.xpose.msra.mxu0 %v1842
        %1860 = vmatprep.subr.mxu0 0.0
        %1861 = vmatpush1.xpose.msra.mxu0 %v1844
        %1862 = vmatprep.subr.mxu0 0.0
        %1863 = vmatpush1.xpose.msra.mxu0 %v1846
        %1864 = vmatprep.subr.mxu0 0.0
        %1865 = vmatpush1.xpose.msra.mxu0 %v1848
        %1866 = vmatprep.subr.mxu0 0.0
        %1867 = vmatpush1.xpose.msra.mxu0 %v1850
        %1868 = vmatprep.subr.mxu0 0.0
        %1869 = vmatpush1.xpose.msra.mxu0 %v1852
        %1870 = vmatprep.subr.mxu0 0.0
        %1871 = vmatpush1.xpose.msra.mxu0 %v1854
        %1872 = vmatprep.subr.mxu0 0.0
        %1873 = vmatpush1.xpose.msra.mxu0 %v1856
        %1874 = vmatprep.subr.mxu0 0.0
        %1875 = vmatpush1.xpose.msra.mxu0 0.0
        %1876 = vmatprep.subr.mxu0 0.0
        %1877 = vmatpush1.xpose.msra.mxu0 0.0
        %1878 = vmatprep.subr.mxu0 0.0
        %1879 = vmatpush1.xpose.msra.mxu0 0.0
        %1880 = vmatprep.subr.mxu0 0.0
        %1881 = vmatpush1.xpose.msra.mxu0 0.0
        %1882 = vmatprep.subr.mxu0 0.0
        %1883 = vmatpush1.xpose.msra.mxu0 0.0
        %1884 = vmatprep.subr.mxu0 0.0
        %1885 = vmatpush1.xpose.msra.mxu0 0.0
        %1886 = vmatprep.subr.mxu0 0.0
        %1887 = vmatpush1.xpose.msra.mxu0 0.0
        %1888 = vmatprep.subr.mxu0 0.0
        %1889 = vmatpush1.xpose.msra.mxu0 0.0
        %1890 = vmatprep.subr.mxu0 0.0
        %1891 = vmatpush1.xpose.msra.mxu0 0.0
        %1892 = vmatprep.subr.mxu0 0.0
        %1893 = vmatpush1.xpose.msra.mxu0 0.0
        %1894 = vmatprep.subr.mxu0 0.0
        %1895 = vmatpush1.xpose.msra.mxu0 0.0
        %1896 = vmatprep.subr.mxu0 0.0
        %1897 = vmatpush1.xpose.msra.mxu0 0.0
        %1898 = vmatprep.subr.mxu0 0.0
        %1899 = vmatpush1.xpose.msra.mxu0 0.0
        %1900 = vmatprep.subr.mxu0 0.0
        %1901 = vmatpush1.xpose.msra.mxu0 0.0
        %1902 = vmatprep.subr.mxu0 0.0
        %1903 = vmatpush1.xpose.msra.mxu0 0.0
        %1904 = vmatprep.subr.mxu0 0.0
        %1905 = vmatpush1.xpose.msra.mxu0 0.0
        %1906 = vmatprep.subr.mxu0 0.0
        %1907 = vmatpush1.xpose.msra.mxu0 0.0
        %1908 = vmatprep.subr.mxu0 0.0
        %1909 = vmatpush1.xpose.msra.mxu0 0.0
        %1910 = vmatprep.subr.mxu0 0.0
        %1911 = vmatpush1.xpose.msra.mxu0 0.0
        %1912 = vmatprep.subr.mxu0 0.0
        %1913 = vmatpush1.xpose.msra.mxu0 0.0
        %1914 = vmatprep.subr.mxu0 0.0
        %1915 = vmatpush1.xpose.msra.mxu0 0.0
        %1916 = vmatprep.subr.mxu0 0.0
        %1917 = vmatpush1.xpose.msra.mxu0 0.0
        %1918 = vmatprep.subr.mxu0 0.0
        %1919 = vmatpush1.xpose.msra.mxu0 0.0
        %1920 = vmatprep.subr.mxu0 0.0
        %1921 = vmatpush1.xpose.msra.mxu0 0.0
        %1922 = vmatprep.mubr.f32.mxu0 0.0
        %1923 = vmatmul.mubr.f32.gmra.mrb[0].mxu0 %v1826
        %v1924 = vpop.f32.mrb[0].mxu0
        %v1925 = vadd.f32 0.0, %v1924
        %v1926 = vpop.f32.mrb[0].mxu0
        %1927 = vmatprep.mubr.f32.mxu0 0.0
        %1928 = vmatmul.mubr.f32.gmra.mrb[0].mxu0 %v1828
        %v1929 = vpop.f32.mrb[0].mxu0
        %v1930 = vadd.f32 0.0, %v1929
        %v1931 = vpop.f32.mrb[0].mxu0
        %1932 = vmatprep.mubr.f32.mxu0 0.0
        %1933 = vmatmul.mubr.f32.gmra.mrb[0].mxu0 %v1830
        %v1934 = vpop.f32.mrb[0].mxu0
        %v1935 = vadd.f32 0.0, %v1934
        %v1936 = vpop.f32.mrb[0].mxu0
        %1937 = vmatprep.mubr.f32.mxu0 0.0
        %1938 = vmatmul.mubr.f32.gmra.mrb[0].mxu0 %v1832
        %v1939 = vpop.f32.mrb[0].mxu0
        %v1940 = vadd.f32 0.0, %v1939
        %v1941 = vpop.f32.mrb[0].mxu0
        %1942 = vmatprep.mubr.f32.mxu0 0.0
        %1943 = vmatmul.mubr.f32.gmra.mrb[0].mxu0 %v1834
        %v1944 = vpop.f32.mrb[0].mxu0
        %v1945 = vadd.f32 0.0, %v1944
        %v1946 = vpop.f32.mrb[0].mxu0
        %1947 = vmatprep.mubr.f32.mxu0 0.0
        %1948 = vmatmul.mubr.f32.gmra.mrb[0].mxu0 %v1836
        %v1949 = vpop.f32.mrb[0].mxu0
        %v1950 = vadd.f32 0.0, %v1949
        %v1951 = vpop.f32.mrb[0].mxu0
        %1952 = vmatprep.mubr.f32.mxu0 0.0
        %1953 = vmatmul.mubr.f32.gmra.mrb[0].mxu0 %v1838
        %v1954 = vpop.f32.mrb[0].mxu0
        %v1955 = vadd.f32 0.0, %v1954
        %v1956 = vpop.f32.mrb[0].mxu0
        %1957 = vmatprep.mubr.f32.mxu0 0.0
        %1958 = vmatmul.mubr.f32.gmra.mrb[0].mxu0 %v1840
        %v1959 = vpop.f32.mrb[0].mxu0
        %v1960 = vadd.f32 0.0, %v1959
        %v1961 = vpop.f32.mrb[0].mxu0
        %1962 = vdwg.mxu0
        %v1963 = vsel %vm1448, %v1925, -inf
        %1964 = vmax.xlane.f32.xlu0 %v1963
        %v1965 = vpop.xlane.xlu0 %1964
        %v1966 = vsel %vm1448, %v1930, -inf
        %1967 = vmax.xlane.f32.xlu0 %v1966
        %v1968 = vpop.xlane.xlu0 %1967
        %v1969 = vsel %vm1448, %v1935, -inf
        %1970 = vmax.xlane.f32.xlu0 %v1969
        %v1971 = vpop.xlane.xlu0 %1970
        %v1972 = vsel %vm1448, %v1940, -inf
        %1973 = vmax.xlane.f32.xlu0 %v1972
        %v1974 = vpop.xlane.xlu0 %1973
        %v1975 = vsel %vm1448, %v1945, -inf
        %1976 = vmax.xlane.f32.xlu0 %v1975
        %v1977 = vpop.xlane.xlu0 %1976
        %v1978 = vsel %vm1448, %v1950, -inf
        %1979 = vmax.xlane.f32.xlu0 %v1978
        %v1980 = vpop.xlane.xlu0 %1979
        %v1981 = vsel %vm1448, %v1955, -inf
        %1982 = vmax.xlane.f32.xlu0 %v1981
        %v1983 = vpop.xlane.xlu0 %1982
        %v1984 = vsel %vm1448, %v1960, -inf
        %1985 = vmax.xlane.f32.xlu0 %v1984
        %v1986 = vpop.xlane.xlu0 %1985
        %v1987 = vsub.f32 %v1925, %v1965
        %v1988 = vsub.f32 %v1930, %v1968
        %v1989 = vsub.f32 %v1935, %v1971
        %v1990 = vsub.f32 %v1940, %v1974
        %v1991 = vsub.f32 %v1945, %v1977
        %v1992 = vsub.f32 %v1950, %v1980
        %v1993 = vsub.f32 %v1955, %v1983
        %v1994 = vsub.f32 %v1960, %v1986
        %v1995 = vmul.f32 %v1987, 1.442695
        %v1996 = vpow.pop %v1995
        %v1997 = vmul.f32 %v1988, 1.442695
        %v1998 = vpow.pop %v1997
        %v1999 = vmul.f32 %v1989, 1.442695
        %v2000 = vpow.pop %v1999
        %v2001 = vmul.f32 %v1990, 1.442695
        %v2002 = vpow.pop %v2001
        %v2003 = vmul.f32 %v1991, 1.442695
        %v2004 = vpow.pop %v2003
        %v2005 = vmul.f32 %v1992, 1.442695
        %v2006 = vpow.pop %v2005
        %v2007 = vmul.f32 %v1993, 1.442695
        %v2008 = vpow.pop %v2007
        %v2009 = vmul.f32 %v1994, 1.442695
        %v2010 = vpow.pop %v2009
        %v2011 = vsel %vm1448, %v1996, 0.0
        %2012 = vadd.xlane.f32.xlu0 %v2011
        %v2013 = vpop.xlane.xlu0 %2012
        %v2014 = vsel %vm1448, %v1998, 0.0
        %2015 = vadd.xlane.f32.xlu0 %v2014
        %v2016 = vpop.xlane.xlu0 %2015
        %v2017 = vsel %vm1448, %v2000, 0.0
        %2018 = vadd.xlane.f32.xlu0 %v2017
        %v2019 = vpop.xlane.xlu0 %2018
        %v2020 = vsel %vm1448, %v2002, 0.0
        %2021 = vadd.xlane.f32.xlu0 %v2020
        %v2022 = vpop.xlane.xlu0 %2021
        %v2023 = vsel %vm1448, %v2004, 0.0
        %2024 = vadd.xlane.f32.xlu0 %v2023
        %v2025 = vpop.xlane.xlu0 %2024
        %v2026 = vsel %vm1448, %v2006, 0.0
        %2027 = vadd.xlane.f32.xlu0 %v2026
        %v2028 = vpop.xlane.xlu0 %2027
        %v2029 = vsel %vm1448, %v2008, 0.0
        %2030 = vadd.xlane.f32.xlu0 %v2029
        %v2031 = vpop.xlane.xlu0 %2030
        %v2032 = vsel %vm1448, %v2010, 0.0
        %2033 = vadd.xlane.f32.xlu0 %v2032
        %v2034 = vpop.xlane.xlu0 %2033
        %v2035 = vrcp.pop %v2013
        %v2036 = vmul.f32 %v1996, %v2035
        %v2037 = vrcp.pop %v2016
        %v2038 = vmul.f32 %v1998, %v2037
        %v2039 = vrcp.pop %v2019
        %v2040 = vmul.f32 %v2000, %v2039
        %v2041 = vrcp.pop %v2022
        %v2042 = vmul.f32 %v2002, %v2041
        %v2043 = vrcp.pop %v2025
        %v2044 = vmul.f32 %v2004, %v2043
        %v2045 = vrcp.pop %v2028
        %v2046 = vmul.f32 %v2006, %v2045
        %v2047 = vrcp.pop %v2031
        %v2048 = vmul.f32 %v2008, %v2047
        %v2049 = vrcp.pop %v2034
        %v2050 = vmul.f32 %v2010, %v2049
        %2051 = vrot.lane.b32.xlu0 %v1151, 80
        %v2052 = vpop.permute.xlu0 %2051
        %2053 = vrot.lane.b32.xlu0 %v1156, 80
        %v2054 = vpop.permute.xlu0 %2053
        %2055 = vrot.lane.b32.xlu0 %v1161, 80
        %v2056 = vpop.permute.xlu0 %2055
        %2057 = vrot.lane.b32.xlu0 %v1166, 80
        %v2058 = vpop.permute.xlu0 %2057
        %2059 = vrot.lane.b32.xlu0 %v1171, 80
        %v2060 = vpop.permute.xlu0 %2059
        %2061 = vrot.lane.b32.xlu0 %v1176, 80
        %v2062 = vpop.permute.xlu0 %2061
        %2063 = vrot.lane.b32.xlu0 %v1181, 80
        %v2064 = vpop.permute.xlu0 %2063
        %2065 = vrot.lane.b32.xlu0 %v1186, 80
        %v2066 = vpop.permute.xlu0 %2065
        %2067 = vrot.lane.b32.xlu0 %v1256, 80
        %v2068 = vpop.permute.xlu0 %2067
        %2069 = vrot.lane.b32.xlu0 %v1261, 80
        %v2070 = vpop.permute.xlu0 %2069
        %2071 = vrot.lane.b32.xlu0 %v1266, 80
        %v2072 = vpop.permute.xlu0 %2071
        %2073 = vrot.lane.b32.xlu0 %v1271, 80
        %v2074 = vpop.permute.xlu0 %2073
        %2075 = vrot.lane.b32.xlu0 %v1276, 80
        %v2076 = vpop.permute.xlu0 %2075
        %2077 = vrot.lane.b32.xlu0 %v1281, 80
        %v2078 = vpop.permute.xlu0 %2077
        %2079 = vrot.lane.b32.xlu0 %v1286, 80
        %v2080 = vpop.permute.xlu0 %2079
        %2081 = vrot.lane.b32.xlu0 %v1291, 80
        %v2082 = vpop.permute.xlu0 %2081
        %v2083 = vsel %vm1294, %v2052, 0
        %v2085 = vsel %vm1294, %v2054, 0
        %v2087 = vsel %vm1294, %v2056, 0
        %v2089 = vsel %vm1294, %v2058, 0
        %v2091 = vsel %vm1294, %v2060, 0
        %v2093 = vsel %vm1294, %v2062, 0
        %v2095 = vsel %vm1294, %v2064, 0
        %v2097 = vsel %vm1294, %v2066, 0
        %v2099 = vsel %vm1294, %v2068, 0
        %v2101 = vsel %vm1294, %v2070, 0
        %v2103 = vsel %vm1294, %v2072, 0
        %v2105 = vsel %vm1294, %v2074, 0
        %v2107 = vsel %vm1294, %v2076, 0
        %v2109 = vsel %vm1294, %v2078, 0
        %v2111 = vsel %vm1294, %v2080, 0
        %v2113 = vsel %vm1294, %v2082, 0
        %2115 = vmatprep.subr.mxu0 0.0
        %2116 = vmatpush1.xpose.msra.mxu0 %v2099
        %2117 = vmatprep.subr.mxu0 0.0
        %2118 = vmatpush1.xpose.msra.mxu0 %v2101
        %2119 = vmatprep.subr.mxu0 0.0
        %2120 = vmatpush1.xpose.msra.mxu0 %v2103
        %2121 = vmatprep.subr.mxu0 0.0
        %2122 = vmatpush1.xpose.msra.mxu0 %v2105
        %2123 = vmatprep.subr.mxu0 0.0
        %2124 = vmatpush1.xpose.msra.mxu0 %v2107
        %2125 = vmatprep.subr.mxu0 0.0
        %2126 = vmatpush1.xpose.msra.mxu0 %v2109
        %2127 = vmatprep.subr.mxu0 0.0
        %2128 = vmatpush1.xpose.msra.mxu0 %v2111
        %2129 = vmatprep.subr.mxu0 0.0
        %2130 = vmatpush1.xpose.msra.mxu0 %v2113
        %2131 = vmatprep.subr.mxu0 0.0
        %2132 = vmatpush1.xpose.msra.mxu0 0.0
        %2133 = vmatprep.subr.mxu0 0.0
        %2134 = vmatpush1.xpose.msra.mxu0 0.0
        %2135 = vmatprep.subr.mxu0 0.0
        %2136 = vmatpush1.xpose.msra.mxu0 0.0
        %2137 = vmatprep.subr.mxu0 0.0
        %2138 = vmatpush1.xpose.msra.mxu0 0.0
        %2139 = vmatprep.subr.mxu0 0.0
        %2140 = vmatpush1.xpose.msra.mxu0 0.0
        %2141 = vmatprep.subr.mxu0 0.0
        %2142 = vmatpush1.xpose.msra.mxu0 0.0
        %2143 = vmatprep.subr.mxu0 0.0
        %2144 = vmatpush1.xpose.msra.mxu0 0.0
        %2145 = vmatprep.subr.mxu0 0.0
        %2146 = vmatpush1.xpose.msra.mxu0 0.0
        %2147 = vmatprep.subr.mxu0 0.0
        %2148 = vmatpush1.xpose.msra.mxu0 0.0
        %2149 = vmatprep.subr.mxu0 0.0
        %2150 = vmatpush1.xpose.msra.mxu0 0.0
        %2151 = vmatprep.subr.mxu0 0.0
        %2152 = vmatpush1.xpose.msra.mxu0 0.0
        %2153 = vmatprep.subr.mxu0 0.0
        %2154 = vmatpush1.xpose.msra.mxu0 0.0
        %2155 = vmatprep.subr.mxu0 0.0
        %2156 = vmatpush1.xpose.msra.mxu0 0.0
        %2157 = vmatprep.subr.mxu0 0.0
        %2158 = vmatpush1.xpose.msra.mxu0 0.0
        %2159 = vmatprep.subr.mxu0 0.0
        %2160 = vmatpush1.xpose.msra.mxu0 0.0
        %2161 = vmatprep.subr.mxu0 0.0
        %2162 = vmatpush1.xpose.msra.mxu0 0.0
        %2163 = vmatprep.subr.mxu0 0.0
        %2164 = vmatpush1.xpose.msra.mxu0 0.0
        %2165 = vmatprep.subr.mxu0 0.0
        %2166 = vmatpush1.xpose.msra.mxu0 0.0
        %2167 = vmatprep.subr.mxu0 0.0
        %2168 = vmatpush1.xpose.msra.mxu0 0.0
        %2169 = vmatprep.subr.mxu0 0.0
        %2170 = vmatpush1.xpose.msra.mxu0 0.0
        %2171 = vmatprep.subr.mxu0 0.0
        %2172 = vmatpush1.xpose.msra.mxu0 0.0
        %2173 = vmatprep.subr.mxu0 0.0
        %2174 = vmatpush1.xpose.msra.mxu0 0.0
        %2175 = vmatprep.subr.mxu0 0.0
        %2176 = vmatpush1.xpose.msra.mxu0 0.0
        %2177 = vmatprep.subr.mxu0 0.0
        %2178 = vmatpush1.xpose.msra.mxu0 0.0
        %2179 = vmatprep.mubr.f32.mxu0 0.0
        %2180 = vmatmul.mubr.f32.gmra.mrb[0].mxu0 %v2083
        %v2181 = vpop.f32.mrb[0].mxu0
        %v2182 = vadd.f32 0.0, %v2181
        %v2183 = vpop.f32.mrb[0].mxu0
        %2184 = vmatprep.mubr.f32.mxu0 0.0
        %2185 = vmatmul.mubr.f32.gmra.mrb[0].mxu0 %v2085
        %v2186 = vpop.f32.mrb[0].mxu0
        %v2187 = vadd.f32 0.0, %v2186
        %v2188 = vpop.f32.mrb[0].mxu0
        %2189 = vmatprep.mubr.f32.mxu0 0.0
        %2190 = vmatmul.mubr.f32.gmra.mrb[0].mxu0 %v2087
        %v2191 = vpop.f32.mrb[0].mxu0
        %v2192 = vadd.f32 0.0, %v2191
        %v2193 = vpop.f32.mrb[0].mxu0
        %2194 = vmatprep.mubr.f32.mxu0 0.0
        %2195 = vmatmul.mubr.f32.gmra.mrb[0].mxu0 %v2089
        %v2196 = vpop.f32.mrb[0].mxu0
        %v2197 = vadd.f32 0.0, %v2196
        %v2198 = vpop.f32.mrb[0].mxu0
        %2199 = vmatprep.mubr.f32.mxu0 0.0
        %2200 = vmatmul.mubr.f32.gmra.mrb[0].mxu0 %v2091
        %v2201 = vpop.f32.mrb[0].mxu0
        %v2202 = vadd.f32 0.0, %v2201
        %v2203 = vpop.f32.mrb[0].mxu0
        %2204 = vmatprep.mubr.f32.mxu0 0.0
        %2205 = vmatmul.mubr.f32.gmra.mrb[0].mxu0 %v2093
        %v2206 = vpop.f32.mrb[0].mxu0
        %v2207 = vadd.f32 0.0, %v2206
        %v2208 = vpop.f32.mrb[0].mxu0
        %2209 = vmatprep.mubr.f32.mxu0 0.0
        %2210 = vmatmul.mubr.f32.gmra.mrb[0].mxu0 %v2095
        %v2211 = vpop.f32.mrb[0].mxu0
        %v2212 = vadd.f32 0.0, %v2211
        %v2213 = vpop.f32.mrb[0].mxu0
        %2214 = vmatprep.mubr.f32.mxu0 0.0
        %2215 = vmatmul.mubr.f32.gmra.mrb[0].mxu0 %v2097
        %v2216 = vpop.f32.mrb[0].mxu0
        %v2217 = vadd.f32 0.0, %v2216
        %v2218 = vpop.f32.mrb[0].mxu0
        %2219 = vdwg.mxu0
        %v2220 = vsel %vm1448, %v2182, -inf
        %2221 = vmax.xlane.f32.xlu0 %v2220
        %v2222 = vpop.xlane.xlu0 %2221
        %v2223 = vsel %vm1448, %v2187, -inf
        %2224 = vmax.xlane.f32.xlu0 %v2223
        %v2225 = vpop.xlane.xlu0 %2224
        %v2226 = vsel %vm1448, %v2192, -inf
        %2227 = vmax.xlane.f32.xlu0 %v2226
        %v2228 = vpop.xlane.xlu0 %2227
        %v2229 = vsel %vm1448, %v2197, -inf
        %2230 = vmax.xlane.f32.xlu0 %v2229
        %v2231 = vpop.xlane.xlu0 %2230
        %v2232 = vsel %vm1448, %v2202, -inf
        %2233 = vmax.xlane.f32.xlu0 %v2232
        %v2234 = vpop.xlane.xlu0 %2233
        %v2235 = vsel %vm1448, %v2207, -inf
        %2236 = vmax.xlane.f32.xlu0 %v2235
        %v2237 = vpop.xlane.xlu0 %2236
        %v2238 = vsel %vm1448, %v2212, -inf
        %2239 = vmax.xlane.f32.xlu0 %v2238
        %v2240 = vpop.xlane.xlu0 %2239
        %v2241 = vsel %vm1448, %v2217, -inf
        %2242 = vmax.xlane.f32.xlu0 %v2241
        %v2243 = vpop.xlane.xlu0 %2242
        %v2244 = vsub.f32 %v2182, %v2222
        %v2245 = vsub.f32 %v2187, %v2225
        %v2246 = vsub.f32 %v2192, %v2228
        %v2247 = vsub.f32 %v2197, %v2231
        %v2248 = vsub.f32 %v2202, %v2234
        %v2249 = vsub.f32 %v2207, %v2237
        %v2250 = vsub.f32 %v2212, %v2240
        %v2251 = vsub.f32 %v2217, %v2243
        %v2252 = vmul.f32 %v2244, 1.442695
        %v2253 = vpow.pop %v2252
        %v2254 = vmul.f32 %v2245, 1.442695
        %v2255 = vpow.pop %v2254
        %v2256 = vmul.f32 %v2246, 1.442695
        %v2257 = vpow.pop %v2256
        %v2258 = vmul.f32 %v2247, 1.442695
        %v2259 = vpow.pop %v2258
        %v2260 = vmul.f32 %v2248, 1.442695
        %v2261 = vpow.pop %v2260
        %v2262 = vmul.f32 %v2249, 1.442695
        %v2263 = vpow.pop %v2262
        %v2264 = vmul.f32 %v2250, 1.442695
        %v2265 = vpow.pop %v2264
        %v2266 = vmul.f32 %v2251, 1.442695
        %v2267 = vpow.pop %v2266
        %v2268 = vsel %vm1448, %v2253, 0.0
        %2269 = vadd.xlane.f32.xlu0 %v2268
        %v2270 = vpop.xlane.xlu0 %2269
        %v2271 = vsel %vm1448, %v2255, 0.0
        %2272 = vadd.xlane.f32.xlu0 %v2271
        %v2273 = vpop.xlane.xlu0 %2272
        %v2274 = vsel %vm1448, %v2257, 0.0
        %2275 = vadd.xlane.f32.xlu0 %v2274
        %v2276 = vpop.xlane.xlu0 %2275
        %v2277 = vsel %vm1448, %v2259, 0.0
        %2278 = vadd.xlane.f32.xlu0 %v2277
        %v2279 = vpop.xlane.xlu0 %2278
        %v2280 = vsel %vm1448, %v2261, 0.0
        %2281 = vadd.xlane.f32.xlu0 %v2280
        %v2282 = vpop.xlane.xlu0 %2281
        %v2283 = vsel %vm1448, %v2263, 0.0
        %2284 = vadd.xlane.f32.xlu0 %v2283
        %v2285 = vpop.xlane.xlu0 %2284
        %v2286 = vsel %vm1448, %v2265, 0.0
        %2287 = vadd.xlane.f32.xlu0 %v2286
        %v2288 = vpop.xlane.xlu0 %2287
        %v2289 = vsel %vm1448, %v2267, 0.0
        %2290 = vadd.xlane.f32.xlu0 %v2289
        %v2291 = vpop.xlane.xlu0 %2290
        %v2292 = vrcp.pop %v2270
        %v2293 = vmul.f32 %v2253, %v2292
        %v2294 = vrcp.pop %v2273
        %v2295 = vmul.f32 %v2255, %v2294
        %v2296 = vrcp.pop %v2276
        %v2297 = vmul.f32 %v2257, %v2296
        %v2298 = vrcp.pop %v2279
        %v2299 = vmul.f32 %v2259, %v2298
        %v2300 = vrcp.pop %v2282
        %v2301 = vmul.f32 %v2261, %v2300
        %v2302 = vrcp.pop %v2285
        %v2303 = vmul.f32 %v2263, %v2302
        %v2304 = vrcp.pop %v2288
        %v2305 = vmul.f32 %v2265, %v2304
        %v2306 = vrcp.pop %v2291
        %v2307 = vmul.f32 %v2267, %v2306
        %2308 = vrot.lane.b32.xlu0 %v1151, 64
        %v2309 = vpop.permute.xlu0 %2308
        %2310 = vrot.lane.b32.xlu0 %v1156, 64
        %v2311 = vpop.permute.xlu0 %2310
        %2312 = vrot.lane.b32.xlu0 %v1161, 64
        %v2313 = vpop.permute.xlu0 %2312
        %2314 = vrot.lane.b32.xlu0 %v1166, 64
        %v2315 = vpop.permute.xlu0 %2314
        %2316 = vrot.lane.b32.xlu0 %v1171, 64
        %v2317 = vpop.permute.xlu0 %2316
        %2318 = vrot.lane.b32.xlu0 %v1176, 64
        %v2319 = vpop.permute.xlu0 %2318
        %2320 = vrot.lane.b32.xlu0 %v1181, 64
        %v2321 = vpop.permute.xlu0 %2320
        %2322 = vrot.lane.b32.xlu0 %v1186, 64
        %v2323 = vpop.permute.xlu0 %2322
        %2324 = vrot.lane.b32.xlu0 %v1256, 64
        %v2325 = vpop.permute.xlu0 %2324
        %2326 = vrot.lane.b32.xlu0 %v1261, 64
        %v2327 = vpop.permute.xlu0 %2326
        %2328 = vrot.lane.b32.xlu0 %v1266, 64
        %v2329 = vpop.permute.xlu0 %2328
        %2330 = vrot.lane.b32.xlu0 %v1271, 64
        %v2331 = vpop.permute.xlu0 %2330
        %2332 = vrot.lane.b32.xlu0 %v1276, 64
        %v2333 = vpop.permute.xlu0 %2332
        %2334 = vrot.lane.b32.xlu0 %v1281, 64
        %v2335 = vpop.permute.xlu0 %2334
        %2336 = vrot.lane.b32.xlu0 %v1286, 64
        %v2337 = vpop.permute.xlu0 %2336
        %2338 = vrot.lane.b32.xlu0 %v1291, 64
        %v2339 = vpop.permute.xlu0 %2338
        %v2340 = vsel %vm1294, %v2309, 0
        %v2342 = vsel %vm1294, %v2311, 0
        %v2344 = vsel %vm1294, %v2313, 0
        %v2346 = vsel %vm1294, %v2315, 0
        %v2348 = vsel %vm1294, %v2317, 0
        %v2350 = vsel %vm1294, %v2319, 0
        %v2352 = vsel %vm1294, %v2321, 0
        %v2354 = vsel %vm1294, %v2323, 0
        %v2356 = vsel %vm1294, %v2325, 0
        %v2358 = vsel %vm1294, %v2327, 0
        %v2360 = vsel %vm1294, %v2329, 0
        %v2362 = vsel %vm1294, %v2331, 0
        %v2364 = vsel %vm1294, %v2333, 0
        %v2366 = vsel %vm1294, %v2335, 0
        %v2368 = vsel %vm1294, %v2337, 0
        %v2370 = vsel %vm1294, %v2339, 0
        %2372 = vmatprep.subr.mxu0 0.0
        %2373 = vmatpush1.xpose.msra.mxu0 %v2356
        %2374 = vmatprep.subr.mxu0 0.0
        %2375 = vmatpush1.xpose.msra.mxu0 %v2358
        %2376 = vmatprep.subr.mxu0 0.0
        %2377 = vmatpush1.xpose.msra.mxu0 %v2360
        %2378 = vmatprep.subr.mxu0 0.0
        %2379 = vmatpush1.xpose.msra.mxu0 %v2362
        %2380 = vmatprep.subr.mxu0 0.0
        %2381 = vmatpush1.xpose.msra.mxu0 %v2364
        %2382 = vmatprep.subr.mxu0 0.0
        %2383 = vmatpush1.xpose.msra.mxu0 %v2366
        %2384 = vmatprep.subr.mxu0 0.0
        %2385 = vmatpush1.xpose.msra.mxu0 %v2368
        %2386 = vmatprep.subr.mxu0 0.0
        %2387 = vmatpush1.xpose.msra.mxu0 %v2370
        %2388 = vmatprep.subr.mxu0 0.0
        %2389 = vmatpush1.xpose.msra.mxu0 0.0
        %2390 = vmatprep.subr.mxu0 0.0
        %2391 = vmatpush1.xpose.msra.mxu0 0.0
        %2392 = vmatprep.subr.mxu0 0.0
        %2393 = vmatpush1.xpose.msra.mxu0 0.0
        %2394 = vmatprep.subr.mxu0 0.0
        %2395 = vmatpush1.xpose.msra.mxu0 0.0
        %2396 = vmatprep.subr.mxu0 0.0
        %2397 = vmatpush1.xpose.msra.mxu0 0.0
        %2398 = vmatprep.subr.mxu0 0.0
        %2399 = vmatpush1.xpose.msra.mxu0 0.0
        %2400 = vmatprep.subr.mxu0 0.0
        %2401 = vmatpush1.xpose.msra.mxu0 0.0
        %2402 = vmatprep.subr.mxu0 0.0
        %2403 = vmatpush1.xpose.msra.mxu0 0.0
        %2404 = vmatprep.subr.mxu0 0.0
        %2405 = vmatpush1.xpose.msra.mxu0 0.0
        %2406 = vmatprep.subr.mxu0 0.0
        %2407 = vmatpush1.xpose.msra.mxu0 0.0
        %2408 = vmatprep.subr.mxu0 0.0
        %2409 = vmatpush1.xpose.msra.mxu0 0.0
        %2410 = vmatprep.subr.mxu0 0.0
        %2411 = vmatpush1.xpose.msra.mxu0 0.0
        %2412 = vmatprep.subr.mxu0 0.0
        %2413 = vmatpush1.xpose.msra.mxu0 0.0
        %2414 = vmatprep.subr.mxu0 0.0
        %2415 = vmatpush1.xpose.msra.mxu0 0.0
        %2416 = vmatprep.subr.mxu0 0.0
        %2417 = vmatpush1.xpose.msra.mxu0 0.0
        %2418 = vmatprep.subr.mxu0 0.0
        %2419 = vmatpush1.xpose.msra.mxu0 0.0
        %2420 = vmatprep.subr.mxu0 0.0
        %2421 = vmatpush1.xpose.msra.mxu0 0.0
        %2422 = vmatprep.subr.mxu0 0.0
        %2423 = vmatpush1.xpose.msra.mxu0 0.0
        %2424 = vmatprep.subr.mxu0 0.0
        %2425 = vmatpush1.xpose.msra.mxu0 0.0
        %2426 = vmatprep.subr.mxu0 0.0
        %2427 = vmatpush1.xpose.msra.mxu0 0.0
        %2428 = vmatprep.subr.mxu0 0.0
        %2429 = vmatpush1.xpose.msra.mxu0 0.0
        %2430 = vmatprep.subr.mxu0 0.0
        %2431 = vmatpush1.xpose.msra.mxu0 0.0
        %2432 = vmatprep.subr.mxu0 0.0
        %2433 = vmatpush1.xpose.msra.mxu0 0.0
        %2434 = vmatprep.subr.mxu0 0.0
        %2435 = vmatpush1.xpose.msra.mxu0 0.0
        %2436 = vmatprep.mubr.f32.mxu0 0.0
        %2437 = vmatmul.mubr.f32.gmra.mrb[0].mxu0 %v2340
        %v2438 = vpop.f32.mrb[0].mxu0
        %v2439 = vadd.f32 0.0, %v2438
        %v2440 = vpop.f32.mrb[0].mxu0
        %2441 = vmatprep.mubr.f32.mxu0 0.0
        %2442 = vmatmul.mubr.f32.gmra.mrb[0].mxu0 %v2342
        %v2443 = vpop.f32.mrb[0].mxu0
        %v2444 = vadd.f32 0.0, %v2443
        %v2445 = vpop.f32.mrb[0].mxu0
        %2446 = vmatprep.mubr.f32.mxu0 0.0
        %2447 = vmatmul.mubr.f32.gmra.mrb[0].mxu0 %v2344
        %v2448 = vpop.f32.mrb[0].mxu0
        %v2449 = vadd.f32 0.0, %v2448
        %v2450 = vpop.f32.mrb[0].mxu0
        %2451 = vmatprep.mubr.f32.mxu0 0.0
        %2452 = vmatmul.mubr.f32.gmra.mrb[0].mxu0 %v2346
        %v2453 = vpop.f32.mrb[0].mxu0
        %v2454 = vadd.f32 0.0, %v2453
        %v2455 = vpop.f32.mrb[0].mxu0
        %2456 = vmatprep.mubr.f32.mxu0 0.0
        %2457 = vmatmul.mubr.f32.gmra.mrb[0].mxu0 %v2348
        %v2458 = vpop.f32.mrb[0].mxu0
        %v2459 = vadd.f32 0.0, %v2458
        %v2460 = vpop.f32.mrb[0].mxu0
        %2461 = vmatprep.mubr.f32.mxu0 0.0
        %2462 = vmatmul.mubr.f32.gmra.mrb[0].mxu0 %v2350
        %v2463 = vpop.f32.mrb[0].mxu0
        %v2464 = vadd.f32 0.0, %v2463
        %v2465 = vpop.f32.mrb[0].mxu0
        %2466 = vmatprep.mubr.f32.mxu0 0.0
        %2467 = vmatmul.mubr.f32.gmra.mrb[0].mxu0 %v2352
        %v2468 = vpop.f32.mrb[0].mxu0
        %v2469 = vadd.f32 0.0, %v2468
        %v2470 = vpop.f32.mrb[0].mxu0
        %2471 = vmatprep.mubr.f32.mxu0 0.0
        %2472 = vmatmul.mubr.f32.gmra.mrb[0].mxu0 %v2354
        %v2473 = vpop.f32.mrb[0].mxu0
        %v2474 = vadd.f32 0.0, %v2473
        %v2475 = vpop.f32.mrb[0].mxu0
        %2476 = vdwg.mxu0
        %v2477 = vsel %vm1448, %v2439, -inf
        %2478 = vmax.xlane.f32.xlu0 %v2477
        %v2479 = vpop.xlane.xlu0 %2478
        %v2480 = vsel %vm1448, %v2444, -inf
        %2481 = vmax.xlane.f32.xlu0 %v2480
        %v2482 = vpop.xlane.xlu0 %2481
        %v2483 = vsel %vm1448, %v2449, -inf
        %2484 = vmax.xlane.f32.xlu0 %v2483
        %v2485 = vpop.xlane.xlu0 %2484
        %v2486 = vsel %vm1448, %v2454, -inf
        %2487 = vmax.xlane.f32.xlu0 %v2486
        %v2488 = vpop.xlane.xlu0 %2487
        %v2489 = vsel %vm1448, %v2459, -inf
        %2490 = vmax.xlane.f32.xlu0 %v2489
        %v2491 = vpop.xlane.xlu0 %2490
        %v2492 = vsel %vm1448, %v2464, -inf
        %2493 = vmax.xlane.f32.xlu0 %v2492
        %v2494 = vpop.xlane.xlu0 %2493
        %v2495 = vsel %vm1448, %v2469, -inf
        %2496 = vmax.xlane.f32.xlu0 %v2495
        %v2497 = vpop.xlane.xlu0 %2496
        %v2498 = vsel %vm1448, %v2474, -inf
        %2499 = vmax.xlane.f32.xlu0 %v2498
        %v2500 = vpop.xlane.xlu0 %2499
        %v2501 = vsub.f32 %v2439, %v2479
        %v2502 = vsub.f32 %v2444, %v2482
        %v2503 = vsub.f32 %v2449, %v2485
        %v2504 = vsub.f32 %v2454, %v2488
        %v2505 = vsub.f32 %v2459, %v2491
        %v2506 = vsub.f32 %v2464, %v2494
        %v2507 = vsub.f32 %v2469, %v2497
        %v2508 = vsub.f32 %v2474, %v2500
        %v2509 = vmul.f32 %v2501, 1.442695
        %v2510 = vpow.pop %v2509
        %v2511 = vmul.f32 %v2502, 1.442695
        %v2512 = vpow.pop %v2511
        %v2513 = vmul.f32 %v2503, 1.442695
        %v2514 = vpow.pop %v2513
        %v2515 = vmul.f32 %v2504, 1.442695
        %v2516 = vpow.pop %v2515
        %v2517 = vmul.f32 %v2505, 1.442695
        %v2518 = vpow.pop %v2517
        %v2519 = vmul.f32 %v2506, 1.442695
        %v2520 = vpow.pop %v2519
        %v2521 = vmul.f32 %v2507, 1.442695
        %v2522 = vpow.pop %v2521
        %v2523 = vmul.f32 %v2508, 1.442695
        %v2524 = vpow.pop %v2523
        %v2525 = vsel %vm1448, %v2510, 0.0
        %2526 = vadd.xlane.f32.xlu0 %v2525
        %v2527 = vpop.xlane.xlu0 %2526
        %v2528 = vsel %vm1448, %v2512, 0.0
        %2529 = vadd.xlane.f32.xlu0 %v2528
        %v2530 = vpop.xlane.xlu0 %2529
        %v2531 = vsel %vm1448, %v2514, 0.0
        %2532 = vadd.xlane.f32.xlu0 %v2531
        %v2533 = vpop.xlane.xlu0 %2532
        %v2534 = vsel %vm1448, %v2516, 0.0
        %2535 = vadd.xlane.f32.xlu0 %v2534
        %v2536 = vpop.xlane.xlu0 %2535
        %v2537 = vsel %vm1448, %v2518, 0.0
        %2538 = vadd.xlane.f32.xlu0 %v2537
        %v2539 = vpop.xlane.xlu0 %2538
        %v2540 = vsel %vm1448, %v2520, 0.0
        %2541 = vadd.xlane.f32.xlu0 %v2540
        %v2542 = vpop.xlane.xlu0 %2541
        %v2543 = vsel %vm1448, %v2522, 0.0
        %2544 = vadd.xlane.f32.xlu0 %v2543
        %v2545 = vpop.xlane.xlu0 %2544
        %v2546 = vsel %vm1448, %v2524, 0.0
        %2547 = vadd.xlane.f32.xlu0 %v2546
        %v2548 = vpop.xlane.xlu0 %2547
        %v2549 = vrcp.pop %v2527
        %v2550 = vmul.f32 %v2510, %v2549
        %v2551 = vrcp.pop %v2530
        %v2552 = vmul.f32 %v2512, %v2551
        %v2553 = vrcp.pop %v2533
        %v2554 = vmul.f32 %v2514, %v2553
        %v2555 = vrcp.pop %v2536
        %v2556 = vmul.f32 %v2516, %v2555
        %v2557 = vrcp.pop %v2539
        %v2558 = vmul.f32 %v2518, %v2557
        %v2559 = vrcp.pop %v2542
        %v2560 = vmul.f32 %v2520, %v2559
        %v2561 = vrcp.pop %v2545
        %v2562 = vmul.f32 %v2522, %v2561
        %v2563 = vrcp.pop %v2548
        %v2564 = vmul.f32 %v2524, %v2563
        %2565 = vrot.lane.b32.xlu0 %v1151, 48
        %v2566 = vpop.permute.xlu0 %2565
        %2567 = vrot.lane.b32.xlu0 %v1156, 48
        %v2568 = vpop.permute.xlu0 %2567
        %2569 = vrot.lane.b32.xlu0 %v1161, 48
        %v2570 = vpop.permute.xlu0 %2569
        %2571 = vrot.lane.b32.xlu0 %v1166, 48
        %v2572 = vpop.permute.xlu0 %2571
        %2573 = vrot.lane.b32.xlu0 %v1171, 48
        %v2574 = vpop.permute.xlu0 %2573
        %2575 = vrot.lane.b32.xlu0 %v1176, 48
        %v2576 = vpop.permute.xlu0 %2575
        %2577 = vrot.lane.b32.xlu0 %v1181, 48
        %v2578 = vpop.permute.xlu0 %2577
        %2579 = vrot.lane.b32.xlu0 %v1186, 48
        %v2580 = vpop.permute.xlu0 %2579
        %2581 = vrot.lane.b32.xlu0 %v1256, 48
        %v2582 = vpop.permute.xlu0 %2581
        %2583 = vrot.lane.b32.xlu0 %v1261, 48
        %v2584 = vpop.permute.xlu0 %2583
        %2585 = vrot.lane.b32.xlu0 %v1266, 48
        %v2586 = vpop.permute.xlu0 %2585
        %2587 = vrot.lane.b32.xlu0 %v1271, 48
        %v2588 = vpop.permute.xlu0 %2587
        %2589 = vrot.lane.b32.xlu0 %v1276, 48
        %v2590 = vpop.permute.xlu0 %2589
        %2591 = vrot.lane.b32.xlu0 %v1281, 48
        %v2592 = vpop.permute.xlu0 %2591
        %2593 = vrot.lane.b32.xlu0 %v1286, 48
        %v2594 = vpop.permute.xlu0 %2593
        %2595 = vrot.lane.b32.xlu0 %v1291, 48
        %v2596 = vpop.permute.xlu0 %2595
        %v2597 = vsel %vm1294, %v2566, 0
        %v2599 = vsel %vm1294, %v2568, 0
        %v2601 = vsel %vm1294, %v2570, 0
        %v2603 = vsel %vm1294, %v2572, 0
        %v2605 = vsel %vm1294, %v2574, 0
        %v2607 = vsel %vm1294, %v2576, 0
        %v2609 = vsel %vm1294, %v2578, 0
        %v2611 = vsel %vm1294, %v2580, 0
        %v2613 = vsel %vm1294, %v2582, 0
        %v2615 = vsel %vm1294, %v2584, 0
        %v2617 = vsel %vm1294, %v2586, 0
        %v2619 = vsel %vm1294, %v2588, 0
        %v2621 = vsel %vm1294, %v2590, 0
        %v2623 = vsel %vm1294, %v2592, 0
        %v2625 = vsel %vm1294, %v2594, 0
        %v2627 = vsel %vm1294, %v2596, 0
        %2629 = vmatprep.subr.mxu0 0.0
        %2630 = vmatpush1.xpose.msra.mxu0 %v2613
        %2631 = vmatprep.subr.mxu0 0.0
        %2632 = vmatpush1.xpose.msra.mxu0 %v2615
        %2633 = vmatprep.subr.mxu0 0.0
        %2634 = vmatpush1.xpose.msra.mxu0 %v2617
        %2635 = vmatprep.subr.mxu0 0.0
        %2636 = vmatpush1.xpose.msra.mxu0 %v2619
        %2637 = vmatprep.subr.mxu0 0.0
        %2638 = vmatpush1.xpose.msra.mxu0 %v2621
        %2639 = vmatprep.subr.mxu0 0.0
        %2640 = vmatpush1.xpose.msra.mxu0 %v2623
        %2641 = vmatprep.subr.mxu0 0.0
        %2642 = vmatpush1.xpose.msra.mxu0 %v2625
        %2643 = vmatprep.subr.mxu0 0.0
        %2644 = vmatpush1.xpose.msra.mxu0 %v2627
        %2645 = vmatprep.subr.mxu0 0.0
        %2646 = vmatpush1.xpose.msra.mxu0 0.0
        %2647 = vmatprep.subr.mxu0 0.0
        %2648 = vmatpush1.xpose.msra.mxu0 0.0
        %2649 = vmatprep.subr.mxu0 0.0
        %2650 = vmatpush1.xpose.msra.mxu0 0.0
        %2651 = vmatprep.subr.mxu0 0.0
        %2652 = vmatpush1.xpose.msra.mxu0 0.0
        %2653 = vmatprep.subr.mxu0 0.0
        %2654 = vmatpush1.xpose.msra.mxu0 0.0
        %2655 = vmatprep.subr.mxu0 0.0
        %2656 = vmatpush1.xpose.msra.mxu0 0.0
        %2657 = vmatprep.subr.mxu0 0.0
        %2658 = vmatpush1.xpose.msra.mxu0 0.0
        %2659 = vmatprep.subr.mxu0 0.0
        %2660 = vmatpush1.xpose.msra.mxu0 0.0
        %2661 = vmatprep.subr.mxu0 0.0
        %2662 = vmatpush1.xpose.msra.mxu0 0.0
        %2663 = vmatprep.subr.mxu0 0.0
        %2664 = vmatpush1.xpose.msra.mxu0 0.0
        %2665 = vmatprep.subr.mxu0 0.0
        %2666 = vmatpush1.xpose.msra.mxu0 0.0
        %2667 = vmatprep.subr.mxu0 0.0
        %2668 = vmatpush1.xpose.msra.mxu0 0.0
        %2669 = vmatprep.subr.mxu0 0.0
        %2670 = vmatpush1.xpose.msra.mxu0 0.0
        %2671 = vmatprep.subr.mxu0 0.0
        %2672 = vmatpush1.xpose.msra.mxu0 0.0
        %2673 = vmatprep.subr.mxu0 0.0
        %2674 = vmatpush1.xpose.msra.mxu0 0.0
        %2675 = vmatprep.subr.mxu0 0.0
        %2676 = vmatpush1.xpose.msra.mxu0 0.0
        %2677 = vmatprep.subr.mxu0 0.0
        %2678 = vmatpush1.xpose.msra.mxu0 0.0
        %2679 = vmatprep.subr.mxu0 0.0
        %2680 = vmatpush1.xpose.msra.mxu0 0.0
        %2681 = vmatprep.subr.mxu0 0.0
        %2682 = vmatpush1.xpose.msra.mxu0 0.0
        %2683 = vmatprep.subr.mxu0 0.0
        %2684 = vmatpush1.xpose.msra.mxu0 0.0
        %2685 = vmatprep.subr.mxu0 0.0
        %2686 = vmatpush1.xpose.msra.mxu0 0.0
        %2687 = vmatprep.subr.mxu0 0.0
        %2688 = vmatpush1.xpose.msra.mxu0 0.0
        %2689 = vmatprep.subr.mxu0 0.0
        %2690 = vmatpush1.xpose.msra.mxu0 0.0
        %2691 = vmatprep.subr.mxu0 0.0
        %2692 = vmatpush1.xpose.msra.mxu0 0.0
        %2693 = vmatprep.mubr.f32.mxu0 0.0
        %2694 = vmatmul.mubr.f32.gmra.mrb[0].mxu0 %v2597
        %v2695 = vpop.f32.mrb[0].mxu0
        %v2696 = vadd.f32 0.0, %v2695
        %v2697 = vpop.f32.mrb[0].mxu0
        %2698 = vmatprep.mubr.f32.mxu0 0.0
        %2699 = vmatmul.mubr.f32.gmra.mrb[0].mxu0 %v2599
        %v2700 = vpop.f32.mrb[0].mxu0
        %v2701 = vadd.f32 0.0, %v2700
        %v2702 = vpop.f32.mrb[0].mxu0
        %2703 = vmatprep.mubr.f32.mxu0 0.0
        %2704 = vmatmul.mubr.f32.gmra.mrb[0].mxu0 %v2601
        %v2705 = vpop.f32.mrb[0].mxu0
        %v2706 = vadd.f32 0.0, %v2705
        %v2707 = vpop.f32.mrb[0].mxu0
        %2708 = vmatprep.mubr.f32.mxu0 0.0
        %2709 = vmatmul.mubr.f32.gmra.mrb[0].mxu0 %v2603
        %v2710 = vpop.f32.mrb[0].mxu0
        %v2711 = vadd.f32 0.0, %v2710
        %v2712 = vpop.f32.mrb[0].mxu0
        %2713 = vmatprep.mubr.f32.mxu0 0.0
        %2714 = vmatmul.mubr.f32.gmra.mrb[0].mxu0 %v2605
        %v2715 = vpop.f32.mrb[0].mxu0
        %v2716 = vadd.f32 0.0, %v2715
        %v2717 = vpop.f32.mrb[0].mxu0
        %2718 = vmatprep.mubr.f32.mxu0 0.0
        %2719 = vmatmul.mubr.f32.gmra.mrb[0].mxu0 %v2607
        %v2720 = vpop.f32.mrb[0].mxu0
        %v2721 = vadd.f32 0.0, %v2720
        %v2722 = vpop.f32.mrb[0].mxu0
        %2723 = vmatprep.mubr.f32.mxu0 0.0
        %2724 = vmatmul.mubr.f32.gmra.mrb[0].mxu0 %v2609
        %v2725 = vpop.f32.mrb[0].mxu0
        %v2726 = vadd.f32 0.0, %v2725
        %v2727 = vpop.f32.mrb[0].mxu0
        %2728 = vmatprep.mubr.f32.mxu0 0.0
        %2729 = vmatmul.mubr.f32.gmra.mrb[0].mxu0 %v2611
        %v2730 = vpop.f32.mrb[0].mxu0
        %v2731 = vadd.f32 0.0, %v2730
        %v2732 = vpop.f32.mrb[0].mxu0
        %2733 = vdwg.mxu0
        %v2734 = vsel %vm1448, %v2696, -inf
        %2735 = vmax.xlane.f32.xlu0 %v2734
        %v2736 = vpop.xlane.xlu0 %2735
        %v2737 = vsel %vm1448, %v2701, -inf
        %2738 = vmax.xlane.f32.xlu0 %v2737
        %v2739 = vpop.xlane.xlu0 %2738
        %v2740 = vsel %vm1448, %v2706, -inf
        %2741 = vmax.xlane.f32.xlu0 %v2740
        %v2742 = vpop.xlane.xlu0 %2741
        %v2743 = vsel %vm1448, %v2711, -inf
        %2744 = vmax.xlane.f32.xlu0 %v2743
        %v2745 = vpop.xlane.xlu0 %2744
        %v2746 = vsel %vm1448, %v2716, -inf
        %2747 = vmax.xlane.f32.xlu0 %v2746
        %v2748 = vpop.xlane.xlu0 %2747
        %v2749 = vsel %vm1448, %v2721, -inf
        %2750 = vmax.xlane.f32.xlu0 %v2749
        %v2751 = vpop.xlane.xlu0 %2750
        %v2752 = vsel %vm1448, %v2726, -inf
        %2753 = vmax.xlane.f32.xlu0 %v2752
        %v2754 = vpop.xlane.xlu0 %2753
        %v2755 = vsel %vm1448, %v2731, -inf
        %2756 = vmax.xlane.f32.xlu0 %v2755
        %v2757 = vpop.xlane.xlu0 %2756
        %v2758 = vsub.f32 %v2696, %v2736
        %v2759 = vsub.f32 %v2701, %v2739
        %v2760 = vsub.f32 %v2706, %v2742
        %v2761 = vsub.f32 %v2711, %v2745
        %v2762 = vsub.f32 %v2716, %v2748
        %v2763 = vsub.f32 %v2721, %v2751
        %v2764 = vsub.f32 %v2726, %v2754
        %v2765 = vsub.f32 %v2731, %v2757
        %v2766 = vmul.f32 %v2758, 1.442695
        %v2767 = vpow.pop %v2766
        %v2768 = vmul.f32 %v2759, 1.442695
        %v2769 = vpow.pop %v2768
        %v2770 = vmul.f32 %v2760, 1.442695
        %v2771 = vpow.pop %v2770
        %v2772 = vmul.f32 %v2761, 1.442695
        %v2773 = vpow.pop %v2772
        %v2774 = vmul.f32 %v2762, 1.442695
        %v2775 = vpow.pop %v2774
        %v2776 = vmul.f32 %v2763, 1.442695
        %v2777 = vpow.pop %v2776
        %v2778 = vmul.f32 %v2764, 1.442695
        %v2779 = vpow.pop %v2778
        %v2780 = vmul.f32 %v2765, 1.442695
        %v2781 = vpow.pop %v2780
        %v2782 = vsel %vm1448, %v2767, 0.0
        %2783 = vadd.xlane.f32.xlu0 %v2782
        %v2784 = vpop.xlane.xlu0 %2783
        %v2785 = vsel %vm1448, %v2769, 0.0
        %2786 = vadd.xlane.f32.xlu0 %v2785
        %v2787 = vpop.xlane.xlu0 %2786
        %v2788 = vsel %vm1448, %v2771, 0.0
        %2789 = vadd.xlane.f32.xlu0 %v2788
        %v2790 = vpop.xlane.xlu0 %2789
        %v2791 = vsel %vm1448, %v2773, 0.0
        %2792 = vadd.xlane.f32.xlu0 %v2791
        %v2793 = vpop.xlane.xlu0 %2792
        %v2794 = vsel %vm1448, %v2775, 0.0
        %2795 = vadd.xlane.f32.xlu0 %v2794
        %v2796 = vpop.xlane.xlu0 %2795
        %v2797 = vsel %vm1448, %v2777, 0.0
        %2798 = vadd.xlane.f32.xlu0 %v2797
        %v2799 = vpop.xlane.xlu0 %2798
        %v2800 = vsel %vm1448, %v2779, 0.0
        %2801 = vadd.xlane.f32.xlu0 %v2800
        %v2802 = vpop.xlane.xlu0 %2801
        %v2803 = vsel %vm1448, %v2781, 0.0
        %2804 = vadd.xlane.f32.xlu0 %v2803
        %v2805 = vpop.xlane.xlu0 %2804
        %v2806 = vrcp.pop %v2784
        %v2807 = vmul.f32 %v2767, %v2806
        %v2808 = vrcp.pop %v2787
        %v2809 = vmul.f32 %v2769, %v2808
        %v2810 = vrcp.pop %v2790
        %v2811 = vmul.f32 %v2771, %v2810
        %v2812 = vrcp.pop %v2793
        %v2813 = vmul.f32 %v2773, %v2812
        %v2814 = vrcp.pop %v2796
        %v2815 = vmul.f32 %v2775, %v2814
        %v2816 = vrcp.pop %v2799
        %v2817 = vmul.f32 %v2777, %v2816
        %v2818 = vrcp.pop %v2802
        %v2819 = vmul.f32 %v2779, %v2818
        %v2820 = vrcp.pop %v2805
        %v2821 = vmul.f32 %v2781, %v2820
        %2822 = vrot.lane.b32.xlu0 %v1151, 32
        %v2823 = vpop.permute.xlu0 %2822
        %2824 = vrot.lane.b32.xlu0 %v1156, 32
        %v2825 = vpop.permute.xlu0 %2824
        %2826 = vrot.lane.b32.xlu0 %v1161, 32
        %v2827 = vpop.permute.xlu0 %2826
        %2828 = vrot.lane.b32.xlu0 %v1166, 32
        %v2829 = vpop.permute.xlu0 %2828
        %2830 = vrot.lane.b32.xlu0 %v1171, 32
        %v2831 = vpop.permute.xlu0 %2830
        %2832 = vrot.lane.b32.xlu0 %v1176, 32
        %v2833 = vpop.permute.xlu0 %2832
        %2834 = vrot.lane.b32.xlu0 %v1181, 32
        %v2835 = vpop.permute.xlu0 %2834
        %2836 = vrot.lane.b32.xlu0 %v1186, 32
        %v2837 = vpop.permute.xlu0 %2836
        %2838 = vrot.lane.b32.xlu0 %v1256, 32
        %v2839 = vpop.permute.xlu0 %2838
        %2840 = vrot.lane.b32.xlu0 %v1261, 32
        %v2841 = vpop.permute.xlu0 %2840
        %2842 = vrot.lane.b32.xlu0 %v1266, 32
        %v2843 = vpop.permute.xlu0 %2842
        %2844 = vrot.lane.b32.xlu0 %v1271, 32
        %v2845 = vpop.permute.xlu0 %2844
        %2846 = vrot.lane.b32.xlu0 %v1276, 32
        %v2847 = vpop.permute.xlu0 %2846
        %2848 = vrot.lane.b32.xlu0 %v1281, 32
        %v2849 = vpop.permute.xlu0 %2848
        %2850 = vrot.lane.b32.xlu0 %v1286, 32
        %v2851 = vpop.permute.xlu0 %2850
        %2852 = vrot.lane.b32.xlu0 %v1291, 32
        %v2853 = vpop.permute.xlu0 %2852
        %v2854 = vsel %vm1294, %v2823, 0
        %v2856 = vsel %vm1294, %v2825, 0
        %v2858 = vsel %vm1294, %v2827, 0
        %v2860 = vsel %vm1294, %v2829, 0
        %v2862 = vsel %vm1294, %v2831, 0
        %v2864 = vsel %vm1294, %v2833, 0
        %v2866 = vsel %vm1294, %v2835, 0
        %v2868 = vsel %vm1294, %v2837, 0
        %v2870 = vsel %vm1294, %v2839, 0
        %v2872 = vsel %vm1294, %v2841, 0
        %v2874 = vsel %vm1294, %v2843, 0
        %v2876 = vsel %vm1294, %v2845, 0
        %v2878 = vsel %vm1294, %v2847, 0
        %v2880 = vsel %vm1294, %v2849, 0
        %v2882 = vsel %vm1294, %v2851, 0
        %v2884 = vsel %vm1294, %v2853, 0
        %2886 = vmatprep.subr.mxu0 0.0
        %2887 = vmatpush1.xpose.msra.mxu0 %v2870
        %2888 = vmatprep.subr.mxu0 0.0
        %2889 = vmatpush1.xpose.msra.mxu0 %v2872
        %2890 = vmatprep.subr.mxu0 0.0
        %2891 = vmatpush1.xpose.msra.mxu0 %v2874
        %2892 = vmatprep.subr.mxu0 0.0
        %2893 = vmatpush1.xpose.msra.mxu0 %v2876
        %2894 = vmatprep.subr.mxu0 0.0
        %2895 = vmatpush1.xpose.msra.mxu0 %v2878
        %2896 = vmatprep.subr.mxu0 0.0
        %2897 = vmatpush1.xpose.msra.mxu0 %v2880
        %2898 = vmatprep.subr.mxu0 0.0
        %2899 = vmatpush1.xpose.msra.mxu0 %v2882
        %2900 = vmatprep.subr.mxu0 0.0
        %2901 = vmatpush1.xpose.msra.mxu0 %v2884
        %2902 = vmatprep.subr.mxu0 0.0
        %2903 = vmatpush1.xpose.msra.mxu0 0.0
        %2904 = vmatprep.subr.mxu0 0.0
        %2905 = vmatpush1.xpose.msra.mxu0 0.0
        %2906 = vmatprep.subr.mxu0 0.0
        %2907 = vmatpush1.xpose.msra.mxu0 0.0
        %2908 = vmatprep.subr.mxu0 0.0
        %2909 = vmatpush1.xpose.msra.mxu0 0.0
        %2910 = vmatprep.subr.mxu0 0.0
        %2911 = vmatpush1.xpose.msra.mxu0 0.0
        %2912 = vmatprep.subr.mxu0 0.0
        %2913 = vmatpush1.xpose.msra.mxu0 0.0
        %2914 = vmatprep.subr.mxu0 0.0
        %2915 = vmatpush1.xpose.msra.mxu0 0.0
        %2916 = vmatprep.subr.mxu0 0.0
        %2917 = vmatpush1.xpose.msra.mxu0 0.0
        %2918 = vmatprep.subr.mxu0 0.0
        %2919 = vmatpush1.xpose.msra.mxu0 0.0
        %2920 = vmatprep.subr.mxu0 0.0
        %2921 = vmatpush1.xpose.msra.mxu0 0.0
        %2922 = vmatprep.subr.mxu0 0.0
        %2923 = vmatpush1.xpose.msra.mxu0 0.0
        %2924 = vmatprep.subr.mxu0 0.0
        %2925 = vmatpush1.xpose.msra.mxu0 0.0
        %2926 = vmatprep.subr.mxu0 0.0
        %2927 = vmatpush1.xpose.msra.mxu0 0.0
        %2928 = vmatprep.subr.mxu0 0.0
        %2929 = vmatpush1.xpose.msra.mxu0 0.0
        %2930 = vmatprep.subr.mxu0 0.0
        %2931 = vmatpush1.xpose.msra.mxu0 0.0
        %2932 = vmatprep.subr.mxu0 0.0
        %2933 = vmatpush1.xpose.msra.mxu0 0.0
        %2934 = vmatprep.subr.mxu0 0.0
        %2935 = vmatpush1.xpose.msra.mxu0 0.0
        %2936 = vmatprep.subr.mxu0 0.0
        %2937 = vmatpush1.xpose.msra.mxu0 0.0
        %2938 = vmatprep.subr.mxu0 0.0
        %2939 = vmatpush1.xpose.msra.mxu0 0.0
        %2940 = vmatprep.subr.mxu0 0.0
        %2941 = vmatpush1.xpose.msra.mxu0 0.0
        %2942 = vmatprep.subr.mxu0 0.0
        %2943 = vmatpush1.xpose.msra.mxu0 0.0
        %2944 = vmatprep.subr.mxu0 0.0
        %2945 = vmatpush1.xpose.msra.mxu0 0.0
        %2946 = vmatprep.subr.mxu0 0.0
        %2947 = vmatpush1.xpose.msra.mxu0 0.0
        %2948 = vmatprep.subr.mxu0 0.0
        %2949 = vmatpush1.xpose.msra.mxu0 0.0
        %2950 = vmatprep.mubr.f32.mxu0 0.0
        %2951 = vmatmul.mubr.f32.gmra.mrb[0].mxu0 %v2854
        %v2952 = vpop.f32.mrb[0].mxu0
        %v2953 = vadd.f32 0.0, %v2952
        %v2954 = vpop.f32.mrb[0].mxu0
        %2955 = vmatprep.mubr.f32.mxu0 0.0
        %2956 = vmatmul.mubr.f32.gmra.mrb[0].mxu0 %v2856
        %v2957 = vpop.f32.mrb[0].mxu0
        %v2958 = vadd.f32 0.0, %v2957
        %v2959 = vpop.f32.mrb[0].mxu0
        %2960 = vmatprep.mubr.f32.mxu0 0.0
        %2961 = vmatmul.mubr.f32.gmra.mrb[0].mxu0 %v2858
        %v2962 = vpop.f32.mrb[0].mxu0
        %v2963 = vadd.f32 0.0, %v2962
        %v2964 = vpop.f32.mrb[0].mxu0
        %2965 = vmatprep.mubr.f32.mxu0 0.0
        %2966 = vmatmul.mubr.f32.gmra.mrb[0].mxu0 %v2860
        %v2967 = vpop.f32.mrb[0].mxu0
        %v2968 = vadd.f32 0.0, %v2967
        %v2969 = vpop.f32.mrb[0].mxu0
        %2970 = vmatprep.mubr.f32.mxu0 0.0
        %2971 = vmatmul.mubr.f32.gmra.mrb[0].mxu0 %v2862
        %v2972 = vpop.f32.mrb[0].mxu0
        %v2973 = vadd.f32 0.0, %v2972
        %v2974 = vpop.f32.mrb[0].mxu0
        %2975 = vmatprep.mubr.f32.mxu0 0.0
        %2976 = vmatmul.mubr.f32.gmra.mrb[0].mxu0 %v2864
        %v2977 = vpop.f32.mrb[0].mxu0
        %v2978 = vadd.f32 0.0, %v2977
        %v2979 = vpop.f32.mrb[0].mxu0
        %2980 = vmatprep.mubr.f32.mxu0 0.0
        %2981 = vmatmul.mubr.f32.gmra.mrb[0].mxu0 %v2866
        %v2982 = vpop.f32.mrb[0].mxu0
        %v2983 = vadd.f32 0.0, %v2982
        %v2984 = vpop.f32.mrb[0].mxu0
        %2985 = vmatprep.mubr.f32.mxu0 0.0
        %2986 = vmatmul.mubr.f32.gmra.mrb[0].mxu0 %v2868
        %v2987 = vpop.f32.mrb[0].mxu0
        %v2988 = vadd.f32 0.0, %v2987
        %v2989 = vpop.f32.mrb[0].mxu0
        %2990 = vdwg.mxu0
        %v2991 = vsel %vm1448, %v2953, -inf
        %2992 = vmax.xlane.f32.xlu0 %v2991
        %v2993 = vpop.xlane.xlu0 %2992
        %v2994 = vsel %vm1448, %v2958, -inf
        %2995 = vmax.xlane.f32.xlu0 %v2994
        %v2996 = vpop.xlane.xlu0 %2995
        %v2997 = vsel %vm1448, %v2963, -inf
        %2998 = vmax.xlane.f32.xlu0 %v2997
        %v2999 = vpop.xlane.xlu0 %2998
        %v3000 = vsel %vm1448, %v2968, -inf
        %3001 = vmax.xlane.f32.xlu0 %v3000
        %v3002 = vpop.xlane.xlu0 %3001
        %v3003 = vsel %vm1448, %v2973, -inf
        %3004 = vmax.xlane.f32.xlu0 %v3003
        %v3005 = vpop.xlane.xlu0 %3004
        %v3006 = vsel %vm1448, %v2978, -inf
        %3007 = vmax.xlane.f32.xlu0 %v3006
        %v3008 = vpop.xlane.xlu0 %3007
        %v3009 = vsel %vm1448, %v2983, -inf
        %3010 = vmax.xlane.f32.xlu0 %v3009
        %v3011 = vpop.xlane.xlu0 %3010
        %v3012 = vsel %vm1448, %v2988, -inf
        %3013 = vmax.xlane.f32.xlu0 %v3012
        %v3014 = vpop.xlane.xlu0 %3013
        %v3015 = vsub.f32 %v2953, %v2993
        %v3016 = vsub.f32 %v2958, %v2996
        %v3017 = vsub.f32 %v2963, %v2999
        %v3018 = vsub.f32 %v2968, %v3002
        %v3019 = vsub.f32 %v2973, %v3005
        %v3020 = vsub.f32 %v2978, %v3008
        %v3021 = vsub.f32 %v2983, %v3011
        %v3022 = vsub.f32 %v2988, %v3014
        %v3023 = vmul.f32 %v3015, 1.442695
        %v3024 = vpow.pop %v3023
        %v3025 = vmul.f32 %v3016, 1.442695
        %v3026 = vpow.pop %v3025
        %v3027 = vmul.f32 %v3017, 1.442695
        %v3028 = vpow.pop %v3027
        %v3029 = vmul.f32 %v3018, 1.442695
        %v3030 = vpow.pop %v3029
        %v3031 = vmul.f32 %v3019, 1.442695
        %v3032 = vpow.pop %v3031
        %v3033 = vmul.f32 %v3020, 1.442695
        %v3034 = vpow.pop %v3033
        %v3035 = vmul.f32 %v3021, 1.442695
        %v3036 = vpow.pop %v3035
        %v3037 = vmul.f32 %v3022, 1.442695
        %v3038 = vpow.pop %v3037
        %v3039 = vsel %vm1448, %v3024, 0.0
        %3040 = vadd.xlane.f32.xlu0 %v3039
        %v3041 = vpop.xlane.xlu0 %3040
        %v3042 = vsel %vm1448, %v3026, 0.0
        %3043 = vadd.xlane.f32.xlu0 %v3042
        %v3044 = vpop.xlane.xlu0 %3043
        %v3045 = vsel %vm1448, %v3028, 0.0
        %3046 = vadd.xlane.f32.xlu0 %v3045
        %v3047 = vpop.xlane.xlu0 %3046
        %v3048 = vsel %vm1448, %v3030, 0.0
        %3049 = vadd.xlane.f32.xlu0 %v3048
        %v3050 = vpop.xlane.xlu0 %3049
        %v3051 = vsel %vm1448, %v3032, 0.0
        %3052 = vadd.xlane.f32.xlu0 %v3051
        %v3053 = vpop.xlane.xlu0 %3052
        %v3054 = vsel %vm1448, %v3034, 0.0
        %3055 = vadd.xlane.f32.xlu0 %v3054
        %v3056 = vpop.xlane.xlu0 %3055
        %v3057 = vsel %vm1448, %v3036, 0.0
        %3058 = vadd.xlane.f32.xlu0 %v3057
        %v3059 = vpop.xlane.xlu0 %3058
        %v3060 = vsel %vm1448, %v3038, 0.0
        %3061 = vadd.xlane.f32.xlu0 %v3060
        %v3062 = vpop.xlane.xlu0 %3061
        %v3063 = vrcp.pop %v3041
        %v3064 = vmul.f32 %v3024, %v3063
        %v3065 = vrcp.pop %v3044
        %v3066 = vmul.f32 %v3026, %v3065
        %v3067 = vrcp.pop %v3047
        %v3068 = vmul.f32 %v3028, %v3067
        %v3069 = vrcp.pop %v3050
        %v3070 = vmul.f32 %v3030, %v3069
        %v3071 = vrcp.pop %v3053
        %v3072 = vmul.f32 %v3032, %v3071
        %v3073 = vrcp.pop %v3056
        %v3074 = vmul.f32 %v3034, %v3073
        %v3075 = vrcp.pop %v3059
        %v3076 = vmul.f32 %v3036, %v3075
        %v3077 = vrcp.pop %v3062
        %v3078 = vmul.f32 %v3038, %v3077
        %3079 = vrot.lane.b32.xlu0 %v1151, 16
        %v3080 = vpop.permute.xlu0 %3079
        %3081 = vrot.lane.b32.xlu0 %v1156, 16
        %v3082 = vpop.permute.xlu0 %3081
        %3083 = vrot.lane.b32.xlu0 %v1161, 16
        %v3084 = vpop.permute.xlu0 %3083
        %3085 = vrot.lane.b32.xlu0 %v1166, 16
        %v3086 = vpop.permute.xlu0 %3085
        %3087 = vrot.lane.b32.xlu0 %v1171, 16
        %v3088 = vpop.permute.xlu0 %3087
        %3089 = vrot.lane.b32.xlu0 %v1176, 16
        %v3090 = vpop.permute.xlu0 %3089
        %3091 = vrot.lane.b32.xlu0 %v1181, 16
        %v3092 = vpop.permute.xlu0 %3091
        %3093 = vrot.lane.b32.xlu0 %v1186, 16
        %v3094 = vpop.permute.xlu0 %3093
        %3095 = vrot.lane.b32.xlu0 %v1256, 16
        %v3096 = vpop.permute.xlu0 %3095
        %3097 = vrot.lane.b32.xlu0 %v1261, 16
        %v3098 = vpop.permute.xlu0 %3097
        %3099 = vrot.lane.b32.xlu0 %v1266, 16
        %v3100 = vpop.permute.xlu0 %3099
        %3101 = vrot.lane.b32.xlu0 %v1271, 16
        %v3102 = vpop.permute.xlu0 %3101
        %3103 = vrot.lane.b32.xlu0 %v1276, 16
        %v3104 = vpop.permute.xlu0 %3103
        %3105 = vrot.lane.b32.xlu0 %v1281, 16
        %v3106 = vpop.permute.xlu0 %3105
        %3107 = vrot.lane.b32.xlu0 %v1286, 16
        %v3108 = vpop.permute.xlu0 %3107
        %3109 = vrot.lane.b32.xlu0 %v1291, 16
        %v3110 = vpop.permute.xlu0 %3109
        %v3111 = vsel %vm1294, %v3080, 0
        %v3113 = vsel %vm1294, %v3082, 0
        %v3115 = vsel %vm1294, %v3084, 0
        %v3117 = vsel %vm1294, %v3086, 0
        %v3119 = vsel %vm1294, %v3088, 0
        %v3121 = vsel %vm1294, %v3090, 0
        %v3123 = vsel %vm1294, %v3092, 0
        %v3125 = vsel %vm1294, %v3094, 0
        %v3127 = vsel %vm1294, %v3096, 0
        %v3129 = vsel %vm1294, %v3098, 0
        %v3131 = vsel %vm1294, %v3100, 0
        %v3133 = vsel %vm1294, %v3102, 0
        %v3135 = vsel %vm1294, %v3104, 0
        %v3137 = vsel %vm1294, %v3106, 0
        %v3139 = vsel %vm1294, %v3108, 0
        %v3141 = vsel %vm1294, %v3110, 0
        %3143 = vmatprep.subr.mxu0 0.0
        %3144 = vmatpush1.xpose.msra.mxu0 %v3127
        %3145 = vmatprep.subr.mxu0 0.0
        %3146 = vmatpush1.xpose.msra.mxu0 %v3129
        %3147 = vmatprep.subr.mxu0 0.0
        %3148 = vmatpush1.xpose.msra.mxu0 %v3131
        %3149 = vmatprep.subr.mxu0 0.0
        %3150 = vmatpush1.xpose.msra.mxu0 %v3133
        %3151 = vmatprep.subr.mxu0 0.0
        %3152 = vmatpush1.xpose.msra.mxu0 %v3135
        %3153 = vmatprep.subr.mxu0 0.0
        %3154 = vmatpush1.xpose.msra.mxu0 %v3137
        %3155 = vmatprep.subr.mxu0 0.0
        %3156 = vmatpush1.xpose.msra.mxu0 %v3139
        %3157 = vmatprep.subr.mxu0 0.0
        %3158 = vmatpush1.xpose.msra.mxu0 %v3141
        %3159 = vmatprep.subr.mxu0 0.0
        %3160 = vmatpush1.xpose.msra.mxu0 0.0
        %3161 = vmatprep.subr.mxu0 0.0
        %3162 = vmatpush1.xpose.msra.mxu0 0.0
        %3163 = vmatprep.subr.mxu0 0.0
        %3164 = vmatpush1.xpose.msra.mxu0 0.0
        %3165 = vmatprep.subr.mxu0 0.0
        %3166 = vmatpush1.xpose.msra.mxu0 0.0
        %3167 = vmatprep.subr.mxu0 0.0
        %3168 = vmatpush1.xpose.msra.mxu0 0.0
        %3169 = vmatprep.subr.mxu0 0.0
        %3170 = vmatpush1.xpose.msra.mxu0 0.0
        %3171 = vmatprep.subr.mxu0 0.0
        %3172 = vmatpush1.xpose.msra.mxu0 0.0
        %3173 = vmatprep.subr.mxu0 0.0
        %3174 = vmatpush1.xpose.msra.mxu0 0.0
        %3175 = vmatprep.subr.mxu0 0.0
        %3176 = vmatpush1.xpose.msra.mxu0 0.0
        %3177 = vmatprep.subr.mxu0 0.0
        %3178 = vmatpush1.xpose.msra.mxu0 0.0
        %3179 = vmatprep.subr.mxu0 0.0
        %3180 = vmatpush1.xpose.msra.mxu0 0.0
        %3181 = vmatprep.subr.mxu0 0.0
        %3182 = vmatpush1.xpose.msra.mxu0 0.0
        %3183 = vmatprep.subr.mxu0 0.0
        %3184 = vmatpush1.xpose.msra.mxu0 0.0
        %3185 = vmatprep.subr.mxu0 0.0
        %3186 = vmatpush1.xpose.msra.mxu0 0.0
        %3187 = vmatprep.subr.mxu0 0.0
        %3188 = vmatpush1.xpose.msra.mxu0 0.0
        %3189 = vmatprep.subr.mxu0 0.0
        %3190 = vmatpush1.xpose.msra.mxu0 0.0
        %3191 = vmatprep.subr.mxu0 0.0
        %3192 = vmatpush1.xpose.msra.mxu0 0.0
        %3193 = vmatprep.subr.mxu0 0.0
        %3194 = vmatpush1.xpose.msra.mxu0 0.0
        %3195 = vmatprep.subr.mxu0 0.0
        %3196 = vmatpush1.xpose.msra.mxu0 0.0
        %3197 = vmatprep.subr.mxu0 0.0
        %3198 = vmatpush1.xpose.msra.mxu0 0.0
        %3199 = vmatprep.subr.mxu0 0.0
        %3200 = vmatpush1.xpose.msra.mxu0 0.0
        %3201 = vmatprep.subr.mxu0 0.0
        %3202 = vmatpush1.xpose.msra.mxu0 0.0
        %3203 = vmatprep.subr.mxu0 0.0
        %3204 = vmatpush1.xpose.msra.mxu0 0.0
        %3205 = vmatprep.subr.mxu0 0.0
        %3206 = vmatpush1.xpose.msra.mxu0 0.0
        %3207 = vmatprep.mubr.f32.mxu0 0.0
        %3208 = vmatmul.mubr.f32.gmra.mrb[0].mxu0 %v3111
        %v3209 = vpop.f32.mrb[0].mxu0
        %v3210 = vadd.f32 0.0, %v3209
        %v3211 = vpop.f32.mrb[0].mxu0
        %3212 = vmatprep.mubr.f32.mxu0 0.0
        %3213 = vmatmul.mubr.f32.gmra.mrb[0].mxu0 %v3113
        %v3214 = vpop.f32.mrb[0].mxu0
        %v3215 = vadd.f32 0.0, %v3214
        %v3216 = vpop.f32.mrb[0].mxu0
        %3217 = vmatprep.mubr.f32.mxu0 0.0
        %3218 = vmatmul.mubr.f32.gmra.mrb[0].mxu0 %v3115
        %v3219 = vpop.f32.mrb[0].mxu0
        %v3220 = vadd.f32 0.0, %v3219
        %v3221 = vpop.f32.mrb[0].mxu0
        %3222 = vmatprep.mubr.f32.mxu0 0.0
        %3223 = vmatmul.mubr.f32.gmra.mrb[0].mxu0 %v3117
        %v3224 = vpop.f32.mrb[0].mxu0
        %v3225 = vadd.f32 0.0, %v3224
        %v3226 = vpop.f32.mrb[0].mxu0
        %3227 = vmatprep.mubr.f32.mxu0 0.0
        %3228 = vmatmul.mubr.f32.gmra.mrb[0].mxu0 %v3119
        %v3229 = vpop.f32.mrb[0].mxu0
        %v3230 = vadd.f32 0.0, %v3229
        %v3231 = vpop.f32.mrb[0].mxu0
        %3232 = vmatprep.mubr.f32.mxu0 0.0
        %3233 = vmatmul.mubr.f32.gmra.mrb[0].mxu0 %v3121
        %v3234 = vpop.f32.mrb[0].mxu0
        %v3235 = vadd.f32 0.0, %v3234
        %v3236 = vpop.f32.mrb[0].mxu0
        %3237 = vmatprep.mubr.f32.mxu0 0.0
        %3238 = vmatmul.mubr.f32.gmra.mrb[0].mxu0 %v3123
        %v3239 = vpop.f32.mrb[0].mxu0
        %v3240 = vadd.f32 0.0, %v3239
        %v3241 = vpop.f32.mrb[0].mxu0
        %3242 = vmatprep.mubr.f32.mxu0 0.0
        %3243 = vmatmul.mubr.f32.gmra.mrb[0].mxu0 %v3125
        %v3244 = vpop.f32.mrb[0].mxu0
        %v3245 = vadd.f32 0.0, %v3244
        %v3246 = vpop.f32.mrb[0].mxu0
        %3247 = vdwg.mxu0
        %v3248 = vsel %vm1448, %v3210, -inf
        %3249 = vmax.xlane.f32.xlu0 %v3248
        %v3250 = vpop.xlane.xlu0 %3249
        %v3251 = vsel %vm1448, %v3215, -inf
        %3252 = vmax.xlane.f32.xlu0 %v3251
        %v3253 = vpop.xlane.xlu0 %3252
        %v3254 = vsel %vm1448, %v3220, -inf
        %3255 = vmax.xlane.f32.xlu0 %v3254
        %v3256 = vpop.xlane.xlu0 %3255
        %v3257 = vsel %vm1448, %v3225, -inf
        %3258 = vmax.xlane.f32.xlu0 %v3257
        %v3259 = vpop.xlane.xlu0 %3258
        %v3260 = vsel %vm1448, %v3230, -inf
        %3261 = vmax.xlane.f32.xlu0 %v3260
        %v3262 = vpop.xlane.xlu0 %3261
        %v3263 = vsel %vm1448, %v3235, -inf
        %3264 = vmax.xlane.f32.xlu0 %v3263
        %v3265 = vpop.xlane.xlu0 %3264
        %v3266 = vsel %vm1448, %v3240, -inf
        %3267 = vmax.xlane.f32.xlu0 %v3266
        %v3268 = vpop.xlane.xlu0 %3267
        %v3269 = vsel %vm1448, %v3245, -inf
        %3270 = vmax.xlane.f32.xlu0 %v3269
        %v3271 = vpop.xlane.xlu0 %3270
        %v3272 = vsub.f32 %v3210, %v3250
        %v3273 = vsub.f32 %v3215, %v3253
        %v3274 = vsub.f32 %v3220, %v3256
        %v3275 = vsub.f32 %v3225, %v3259
        %v3276 = vsub.f32 %v3230, %v3262
        %v3277 = vsub.f32 %v3235, %v3265
        %v3278 = vsub.f32 %v3240, %v3268
        %v3279 = vsub.f32 %v3245, %v3271
        %v3280 = vmul.f32 %v3272, 1.442695
        %v3281 = vpow.pop %v3280
        %v3282 = vmul.f32 %v3273, 1.442695
        %v3283 = vpow.pop %v3282
        %v3284 = vmul.f32 %v3274, 1.442695
        %v3285 = vpow.pop %v3284
        %v3286 = vmul.f32 %v3275, 1.442695
        %v3287 = vpow.pop %v3286
        %v3288 = vmul.f32 %v3276, 1.442695
        %v3289 = vpow.pop %v3288
        %v3290 = vmul.f32 %v3277, 1.442695
        %v3291 = vpow.pop %v3290
        %v3292 = vmul.f32 %v3278, 1.442695
        %v3293 = vpow.pop %v3292
        %v3294 = vmul.f32 %v3279, 1.442695
        %v3295 = vpow.pop %v3294
        %v3296 = vsel %vm1448, %v3281, 0.0
        %3297 = vadd.xlane.f32.xlu0 %v3296
        %v3298 = vpop.xlane.xlu0 %3297
        %v3299 = vsel %vm1448, %v3283, 0.0
        %3300 = vadd.xlane.f32.xlu0 %v3299
        %v3301 = vpop.xlane.xlu0 %3300
        %v3302 = vsel %vm1448, %v3285, 0.0
        %3303 = vadd.xlane.f32.xlu0 %v3302
        %v3304 = vpop.xlane.xlu0 %3303
        %v3305 = vsel %vm1448, %v3287, 0.0
        %3306 = vadd.xlane.f32.xlu0 %v3305
        %v3307 = vpop.xlane.xlu0 %3306
        %v3308 = vsel %vm1448, %v3289, 0.0
        %3309 = vadd.xlane.f32.xlu0 %v3308
        %v3310 = vpop.xlane.xlu0 %3309
        %v3311 = vsel %vm1448, %v3291, 0.0
        %3312 = vadd.xlane.f32.xlu0 %v3311
        %v3313 = vpop.xlane.xlu0 %3312
        %v3314 = vsel %vm1448, %v3293, 0.0
        %3315 = vadd.xlane.f32.xlu0 %v3314
        %v3316 = vpop.xlane.xlu0 %3315
        %v3317 = vsel %vm1448, %v3295, 0.0
        %3318 = vadd.xlane.f32.xlu0 %v3317
        %v3319 = vpop.xlane.xlu0 %3318
        %v3320 = vrcp.pop %v3298
        %v3321 = vmul.f32 %v3281, %v3320
        %v3322 = vrcp.pop %v3301
        %v3323 = vmul.f32 %v3283, %v3322
        %v3324 = vrcp.pop %v3304
        %v3325 = vmul.f32 %v3285, %v3324
        %v3326 = vrcp.pop %v3307
        %v3327 = vmul.f32 %v3287, %v3326
        %v3328 = vrcp.pop %v3310
        %v3329 = vmul.f32 %v3289, %v3328
        %v3330 = vrcp.pop %v3313
        %v3331 = vmul.f32 %v3291, %v3330
        %v3332 = vrcp.pop %v3316
        %v3333 = vmul.f32 %v3293, %v3332
        %v3334 = vrcp.pop %v3319
        %v3335 = vmul.f32 %v3295, %v3334
        %3336 = vst.msk [vmem:[%s230] sm:$0xff] %vm1448, %v1522
        %3337 = vst.msk [vmem:[%s230 + $0x8] sm:$0xff] %vm1448, %v1524
        %3338 = vst.msk [vmem:[%s230 + $0x10] sm:$0xff] %vm1448, %v1526
        %3339 = vst.msk [vmem:[%s230 + $0x18] sm:$0xff] %vm1448, %v1528
        %3340 = vst.msk [vmem:[%s230 + $0x20] sm:$0xff] %vm1448, %v1530
        %3341 = vst.msk [vmem:[%s230 + $0x28] sm:$0xff] %vm1448, %v1532
        %3342 = vst.msk [vmem:[%s230 + $0x30] sm:$0xff] %vm1448, %v1534
        %3343 = vst.msk [vmem:[%s230 + $0x38] sm:$0xff] %vm1448, %v1536
        %3344 = vst.msk [vmem:[%s230 + $0x40] sm:$0xff] %vm1448, %v1779
        %3345 = vst.msk [vmem:[%s230 + $0x48] sm:$0xff] %vm1448, %v1781
        %3346 = vst.msk [vmem:[%s230 + $0x50] sm:$0xff] %vm1448, %v1783
        %3347 = vst.msk [vmem:[%s230 + $0x58] sm:$0xff] %vm1448, %v1785
        %3348 = vst.msk [vmem:[%s230 + $0x60] sm:$0xff] %vm1448, %v1787
        %3349 = vst.msk [vmem:[%s230 + $0x68] sm:$0xff] %vm1448, %v1789
        %3350 = vst.msk [vmem:[%s230 + $0x70] sm:$0xff] %vm1448, %v1791
        %3351 = vst.msk [vmem:[%s230 + $0x78] sm:$0xff] %vm1448, %v1793
        %3352 = vst.msk [vmem:[%s230 + $0x80] sm:$0xff] %vm1448, %v2036
        %3353 = vst.msk [vmem:[%s230 + $0x88] sm:$0xff] %vm1448, %v2038
        %3354 = vst.msk [vmem:[%s230 + $0x90] sm:$0xff] %vm1448, %v2040
        %3355 = vst.msk [vmem:[%s230 + $0x98] sm:$0xff] %vm1448, %v2042
        %3356 = vst.msk [vmem:[%s230 + $0xa0] sm:$0xff] %vm1448, %v2044
        %3357 = vst.msk [vmem:[%s230 + $0xa8] sm:$0xff] %vm1448, %v2046
        %3358 = vst.msk [vmem:[%s230 + $0xb0] sm:$0xff] %vm1448, %v2048
        %3359 = vst.msk [vmem:[%s230 + $0xb8] sm:$0xff] %vm1448, %v2050
        %3360 = vst.msk [vmem:[%s230 + $0xc0] sm:$0xff] %vm1448, %v2293
        %3361 = vst.msk [vmem:[%s230 + $0xc8] sm:$0xff] %vm1448, %v2295
        %3362 = vst.msk [vmem:[%s230 + $0xd0] sm:$0xff] %vm1448, %v2297
        %3363 = vst.msk [vmem:[%s230 + $0xd8] sm:$0xff] %vm1448, %v2299
        %3364 = vst.msk [vmem:[%s230 + $0xe0] sm:$0xff] %vm1448, %v2301
        %3365 = vst.msk [vmem:[%s230 + $0xe8] sm:$0xff] %vm1448, %v2303
        %3366 = vst.msk [vmem:[%s230 + $0xf0] sm:$0xff] %vm1448, %v2305
        %3367 = vst.msk [vmem:[%s230 + $0xf8] sm:$0xff] %vm1448, %v2307
        %3368 = vst.msk [vmem:[%s230 + $0x100] sm:$0xff] %vm1448, %v2550
        %3369 = vst.msk [vmem:[%s230 + $0x108] sm:$0xff] %vm1448, %v2552
        %3370 = vst.msk [vmem:[%s230 + $0x110] sm:$0xff] %vm1448, %v2554
        %3371 = vst.msk [vmem:[%s230 + $0x118] sm:$0xff] %vm1448, %v2556
        %3372 = vst.msk [vmem:[%s230 + $0x120] sm:$0xff] %vm1448, %v2558
        %3373 = vst.msk [vmem:[%s230 + $0x128] sm:$0xff] %vm1448, %v2560
        %3374 = vst.msk [vmem:[%s230 + $0x130] sm:$0xff] %vm1448, %v2562
        %3375 = vst.msk [vmem:[%s230 + $0x138] sm:$0xff] %vm1448, %v2564
        %3376 = vst.msk [vmem:[%s230 + $0x140] sm:$0xff] %vm1448, %v2807
        %3377 = vst.msk [vmem:[%s230 + $0x148] sm:$0xff] %vm1448, %v2809
        %3378 = vst.msk [vmem:[%s230 + $0x150] sm:$0xff] %vm1448, %v2811
        %3379 = vst.msk [vmem:[%s230 + $0x158] sm:$0xff] %vm1448, %v2813
        %3380 = vst.msk [vmem:[%s230 + $0x160] sm:$0xff] %vm1448, %v2815
        %3381 = vst.msk [vmem:[%s230 + $0x168] sm:$0xff] %vm1448, %v2817
        %3382 = vst.msk [vmem:[%s230 + $0x170] sm:$0xff] %vm1448, %v2819
        %3383 = vst.msk [vmem:[%s230 + $0x178] sm:$0xff] %vm1448, %v2821
        %3384 = vst.msk [vmem:[%s230 + $0x180] sm:$0xff] %vm1448, %v3064
        %3385 = vst.msk [vmem:[%s230 + $0x188] sm:$0xff] %vm1448, %v3066
        %3386 = vst.msk [vmem:[%s230 + $0x190] sm:$0xff] %vm1448, %v3068
        %3387 = vst.msk [vmem:[%s230 + $0x198] sm:$0xff] %vm1448, %v3070
        %3388 = vst.msk [vmem:[%s230 + $0x1a0] sm:$0xff] %vm1448, %v3072
        %3389 = vst.msk [vmem:[%s230 + $0x1a8] sm:$0xff] %vm1448, %v3074
        %3390 = vst.msk [vmem:[%s230 + $0x1b0] sm:$0xff] %vm1448, %v3076
        %3391 = vst.msk [vmem:[%s230 + $0x1b8] sm:$0xff] %vm1448, %v3078
        %3392 = vst.msk [vmem:[%s230 + $0x1c0] sm:$0xff] %vm1448, %v3321
        %3393 = vst.msk [vmem:[%s230 + $0x1c8] sm:$0xff] %vm1448, %v3323
        %3394 = vst.msk [vmem:[%s230 + $0x1d0] sm:$0xff] %vm1448, %v3325
        %3395 = vst.msk [vmem:[%s230 + $0x1d8] sm:$0xff] %vm1448, %v3327
        %3396 = vst.msk [vmem:[%s230 + $0x1e0] sm:$0xff] %vm1448, %v3329
        %3397 = vst.msk [vmem:[%s230 + $0x1e8] sm:$0xff] %vm1448, %v3331
        %3398 = vst.msk [vmem:[%s230 + $0x1f0] sm:$0xff] %vm1448, %v3333
        %3399 = vst.msk [vmem:[%s230 + $0x1f8] sm:$0xff] %vm1448, %v3335
        %s3400 = sand.u32 %s119, 1
        %s3401 = scalar_lea.sflag [#allocation4], %s3400
        %s3402 = sand.u32 %s119, 1
        %s3403 = smul.addr %s3402, 512
        %s3404 = scalar_lea.vmem [#allocation7], %s3403
        // Predicated region
        $region45: #{tpu_custom_call.1} parent=35 // pred_check
          %p3405 = pneg %p129
        $region46: #{tpu_custom_call.1} parent=35 // pred_check_branch
          %3407 = sbr.rel (%p3405) target = $region48
        $region47: #{tpu_custom_call.1} parent=35 // pred_region
          %s3409 = ssub.s32 8192, 8192
          %3410 = vsyncadd %s3401, %s3409
          %s3411 = smul.addr %s22, 64
          %s3412 = smul.addr %s3411, 128
          %s3413 = scalar_lea.hbm %s4, %s3412
          %s3414 = sshll.u32 %s3404, 4
          %s3415 = int_to_ptr.vmem [resolvable:$true] %s3414
          %3420 = dma.vmem_to_hbm [thread:$0]  %s3415, 8192, %s3413, %s3401, 128, 128, 8
        $region48: #{tpu_custom_call.1} parent=35 // pred_fallthru
          _
      $region36: #{tpu_custom_call.1} parent=5 // pred_fallthru
        _
      %p3421 = scmp.le.s32.totalorder 2, %s17
      // Predicated region
      $region49: #{tpu_custom_call.1} parent=5 // pred_check
        %p3422 = pneg %p3421
      $region50: #{tpu_custom_call.1} parent=5 // pred_check_branch
        %3424 = sbr.rel (%p3422) target = $region52
      $region51: #{tpu_custom_call.1} parent=5 // pred_region
        %s3425 = ssub.s32 %s17, 2
        // Predicated region
        $region53: #{tpu_custom_call.1} parent=51 // pred_check
          %p3426 = pneg %p135
        $region54: #{tpu_custom_call.1} parent=51 // pred_check_branch
          %3428 = sbr.rel (%p3426) target = $region56
        $region55: #{tpu_custom_call.1} parent=51 // pred_region
          %s3429 = sand.u32 %s120, 1
          %s3430 = scalar_lea.sflag [#allocation4], %s3429
          %s3431 = sand.u32 %s120, 1
          %s3432 = smul.addr %s3431, 512
          %s3433 = scalar_lea.vmem [#allocation7], %s3432
          %3434 = dma.done %s3430, 8192
        $region56: #{tpu_custom_call.1} parent=51 // pred_fallthru
          _
      $region52: #{tpu_custom_call.1} parent=5 // pred_fallthru
        _
    $region6: #{tpu_custom_call.1} parent=1 // loop_footer
      %s21 = sadd.s32 1, %s17
    $region7: #{tpu_custom_call.1} parent=1 // loop_footer_branch
      %16 = sbr.rel target = $region3
    $region8: #{tpu_custom_call.1} parent=1 // loop_exit
      _
    %3435 = vsyncpa [#allocation3], 1
    %s3436 = scalar_lea.sflag [#allocation3], 1
    %3437 = vsyncpa %s3436, 1
    %3438 = vsyncpa [#allocation6], 1
    %3439 = vsyncpa [#allocation4], 1
    %s3440 = scalar_lea.sflag [#allocation4], 1
    %3441 = vsyncpa %s3440, 1

</llo_original>
